<compile_context>
chip_gen: v6e
topology: v6e:2x2x1
jax: 0.10.0
libtpu: 0.0.40
codegen_flags: <defaults>
</compile_context>

<pallas_src>
import numpy as np
import jax
import jax.numpy as jnp
from jax.experimental import pallas as pl
from jax.experimental.pallas import tpu as pltpu


def _round_up(x, m):
    return ((x + m - 1) // m) * m


def make_iwact_call(N, C, H, W, K, Cb):
    """Builds the pallas_call for an NHWC tensor (N, H, W, C) with C % Cb == 0."""
    P = K // 2
    KK = K * K
    Hp = H + 2 * P                    # zero-padded rows (leading dim, no alignment need)
    Wp8 = _round_up(W + 2 * P, 8)     # padded + 8-rounded columns (sublane dim)

    # Row-strip height: keep acc (rows*ceil(W/8)) + per-kw partial sum (rows*Wp8/8)
    # vregs comfortably inside the 64-entry vreg file so the accumulator never spills.
    vregs_per_row = (-(-W // 8)) + (Wp8 // 8)
    Rb = max(1, min(8, 44 // vregs_per_row, H))
    n_full = H // Rb
    rem = H - n_full * Rb

    def kernel(x_ref, w_ref, b_ref, o_ref, xp_ref):
        # x_ref : (1, H, W, Cb)   VMEM  NHWC input block (channels on lanes)
        # w_ref : (KK, Cb)        VMEM  BN-scale-folded depthwise taps
        # b_ref : (1, Cb)         VMEM  fused BN bias
        # o_ref : (1, H, W, Cb)   VMEM
        # xp_ref: (Hp, Wp8, Cb)   VMEM scratch: ReLU'd plane + zero halo
        f32 = jnp.float32

        # --- halo-only zeroing (interior rows/cols are fully overwritten below) ---
        if P:
            xp_ref[0:P, :, :] = jnp.zeros((P, Wp8, Cb), f32)
            xp_ref[P + H:Hp, :, :] = jnp.zeros((P, Wp8, Cb), f32)
        if Wp8 > W:
            xp_ref[P:P + H, W:Wp8, :] = jnp.zeros((H, Wp8 - W, Cb), f32)

        # --- fused ReLU; interior written at column 0 (sublane-aligned store) -----
        xp_ref[P:P + H, 0:W, :] = jnp.maximum(x_ref[0], 0.0)

        bias = b_ref[0, :]                                           # (Cb,)

        def process_strip(r0, rows):
            # acc lives in vregs for the whole strip; a single store at the end.
            acc = None
            for kw in range(K):
                # Partial sum over kh for this kw: kh shifts are plain row offsets
                # (aligned, full-width band loads), computed on the padded width.
                a = None
                for kh in range(K):
                    band = xp_ref[pl.ds(r0 + kh, rows), :, :]        # (rows, Wp8, Cb)
                    term = band * w_ref[kh * K + kw, :]
                    a = term if a is None else a + term
                # One column shift per kw on the XLU (K rolls per strip total).
                # out[j] needs a[(j + kw - P) mod Wp8]; negative / >=W indices land
                # in the zeroed pad columns, so no extra edge masking is required.
                shift = (P - kw) % Wp8
                if shift:
                    a = pltpu.roll(a, shift=shift, axis=1)
                a = a[:, :W, :]
                acc = a if acc is None else acc + a
            acc = acc + bias                                         # epilogue bias
            o_ref[0, pl.ds(r0, rows), :, :] = acc.astype(o_ref.dtype)

        if n_full:
            @pl.loop(0, n_full)
            def _(s):
                process_strip(s * Rb, Rb)
        if rem:
            process_strip(n_full * Rb, rem)

    grid_spec = pltpu.PrefetchScalarGridSpec(
        num_scalar_prefetch=0,
        grid=(N, C // Cb),
        in_specs=[
            pl.BlockSpec((1, H, W, Cb), lambda n, j: (n, 0, 0, j)),
            pl.BlockSpec((KK, Cb), lambda n, j: (0, j)),
            pl.BlockSpec((1, Cb), lambda n, j: (0, j)),
        ],
        out_specs=pl.BlockSpec((1, H, W, Cb), lambda n, j: (n, 0, 0, j)),
        scratch_shapes=[pltpu.VMEM((Hp, Wp8, Cb), jnp.float32)],
    )

    return pl.pallas_call(
        kernel,
        out_shape=jax.ShapeDtypeStruct((N, H, W, C), jnp.float32),
        grid_spec=grid_spec,
        compiler_params=pltpu.CompilerParams(
            dimension_semantics=("parallel", "parallel"),
            # 48 MiB: enough for full-plane f32 blocks up to 112x112x128 on
            # v5e/v6e while staying inside v7x's 64 MiB physical VMEM.
            vmem_limit_bytes=48 * 1024 * 1024,
        ),
    )


def iwact_pallas(x, w, gamma, beta, running_mean, running_var, eps=1e-6):
    """IWAct forward: x (N,C,H,W) f32, w (C,1,K,K) f32 (PyTorch depthwise layout)."""
    N, C, H, W = x.shape
    K = w.shape[-1]

    # Fold eval-mode BN into the depthwise weights / a single bias (wrapper-side).
    scale = gamma / jnp.sqrt(running_var + eps)                 # (C,)
    bias = beta - running_mean * scale                          # (C,)
    w_eff = (w.reshape(C, K * K) * scale[:, None]).T            # (K*K, C), C on lanes

    # Channels-on-lanes layout (NCHW -> NHWC) + lane-dense channel padding so
    # every store in the kernel is an unmasked full-lane vst.
    Cb = 128
    C_pad = _round_up(max(C, Cb), Cb)
    x_nhwc = jnp.transpose(x, (0, 2, 3, 1)).astype(jnp.float32)
    w_eff = w_eff.astype(jnp.float32)
    bias = bias.astype(jnp.float32)
    if C_pad != C:
        pad = C_pad - C
        x_nhwc = jnp.pad(x_nhwc, ((0, 0), (0, 0), (0, 0), (0, pad)))
        w_eff = jnp.pad(w_eff, ((0, 0), (0, pad)))
        bias = jnp.pad(bias, ((0, pad),))

    fn = make_iwact_call(N, C_pad, H, W, K, Cb)
    y_nhwc = fn(x_nhwc, w_eff, bias.reshape(1, C_pad))
    return jnp.transpose(y_nhwc[..., :C], (0, 3, 1, 2))        # back to NCHW


def iwact_reference(x, w, gamma, beta, running_mean, running_var, eps=1e-6):
    """Pure-JAX reference mirroring the PyTorch forward (eval-mode BN)."""
    C = x.shape[1]
    xr = jnp.maximum(x, 0.0)
    y = jax.lax.conv_general_dilated(
        xr, w,
        window_strides=(1, 1),
        padding="SAME",
        dimension_numbers=("NCHW", "OIHW", "NCHW"),
        feature_group_count=C,
    )
    scale = (gamma / jnp.sqrt(running_var + eps)).reshape(1, C, 1, 1)
    bias = (beta - running_mean * gamma / jnp.sqrt(running_var + eps)).reshape(1, C, 1, 1)
    return y * scale + bias


if __name__ == "__main__":
    key = jax.random.PRNGKey(0)
    N, C, H, W = 2, 4, 16, 16
    act_radius = 3
    K = 2 * act_radius + 1  # 7

    k1, k2, k3, k4, k5, k6 = jax.random.split(key, 6)
    x = jax.random.normal(k1, (N, C, H, W), jnp.float32)
    # nn.Parameter(torch.randn(C,1,K,K)) with trunc_normal_(std=0.02)
    w = 0.02 * jax.random.normal(k2, (C, 1, K, K), jnp.float32)
    # BatchNorm2d(C, eps=1e-6) parameters / running stats (deterministic, non-trivial)
    gamma = 1.0 + 0.1 * jax.random.normal(k3, (C,), jnp.float32)
    beta = 0.1 * jax.random.normal(k4, (C,), jnp.float32)
    running_mean = 0.05 * jax.random.normal(k5, (C,), jnp.float32)
    running_var = jnp.abs(1.0 + 0.1 * jax.random.normal(k6, (C,), jnp.float32))
    eps = 1e-6  # IWAct constructs BatchNorm2d(channels, eps=1e-06)

    out = jax.block_until_ready(
        iwact_pallas(x, w, gamma, beta, running_mean, running_var, eps))
    ref = iwact_reference(x, w, gamma, beta, running_mean, running_var, eps)
    assert out.shape == (N, C, H, W)
    assert np.allclose(np.asarray(out), np.asarray(ref), atol=1e-4, rtol=1e-4)
    print("KERNEL_OK")
</pallas_src>

<mosaic_0001>
module attributes {stable_mosaic.version = 11 : i64} {
  func.func @kernel(%arg0: i32, %arg1: i32, %arg2: memref<1x16x16x128xf32, #tpu.memory_space<vmem>>, %arg3: memref<49x128xf32, #tpu.memory_space<vmem>>, %arg4: memref<1x128xf32, #tpu.memory_space<vmem>>, %arg5: memref<1x16x16x128xf32, #tpu.memory_space<vmem>>, %arg6: memref<22x24x128xf32, #tpu.memory_space<vmem>>) attributes {dimension_semantics = [#tpu.dimension_semantics<parallel>, #tpu.dimension_semantics<parallel>], iteration_bounds = array<i64: 2, 1>, scalar_prefetch = 0 : i64, scratch_operands = 1 : i64, tpu.core_type = #tpu.core_type<tc>, window_params = [{transform_indices = @transform_0, window_bounds = array<i64: 1, 16, 16, 128>}, {transform_indices = @transform_1, window_bounds = array<i64: 49, 128>}, {transform_indices = @transform_2, window_bounds = array<i64: 1, 128>}, {transform_indices = @transform_3, window_bounds = array<i64: 1, 16, 16, 128>}]} {
    %cst = arith.constant 0.000000e+00 : f32
    %0 = vector.broadcast %cst : f32 to vector<3x24x128xf32>
    %c0 = arith.constant 0 : index
    %c0_0 = arith.constant 0 : index
    %c0_1 = arith.constant 0 : index
    %1 = vector.load %arg6[%c0, %c0_0, %c0_1] : memref<22x24x128xf32, #tpu.memory_space<vmem>>, vector<3x24x128xf32>
    tpu.vector_store %arg6[%c0, %c0_0, %c0_1], %0 {strides = array<i32>} : memref<22x24x128xf32, #tpu.memory_space<vmem>>, vector<3x24x128xf32>,
    %cst_2 = arith.constant 0.000000e+00 : f32
    %2 = vector.broadcast %cst_2 : f32 to vector<3x24x128xf32>
    %c19 = arith.constant 19 : index
    %c0_3 = arith.constant 0 : index
    %c0_4 = arith.constant 0 : index
    %3 = vector.load %arg6[%c19, %c0_3, %c0_4] : memref<22x24x128xf32, #tpu.memory_space<vmem>>, vector<3x24x128xf32>
    tpu.vector_store %arg6[%c19, %c0_3, %c0_4], %2 {strides = array<i32>} : memref<22x24x128xf32, #tpu.memory_space<vmem>>, vector<3x24x128xf32>,
    %cst_5 = arith.constant 0.000000e+00 : f32
    %4 = vector.broadcast %cst_5 : f32 to vector<16x8x128xf32>
    %c3 = arith.constant 3 : index
    %c16 = arith.constant 16 : index
    %c0_6 = arith.constant 0 : index
    %5 = vector.load %arg6[%c3, %c16, %c0_6] : memref<22x24x128xf32, #tpu.memory_space<vmem>>, vector<16x8x128xf32>
    tpu.vector_store %arg6[%c3, %c16, %c0_6], %4 {strides = array<i32>} : memref<22x24x128xf32, #tpu.memory_space<vmem>>, vector<16x8x128xf32>,
    %c0_7 = arith.constant 0 : index
    %c0_8 = arith.constant 0 : index
    %c0_9 = arith.constant 0 : index
    %c0_10 = arith.constant 0 : index
    %6 = vector.load %arg2[%c0_7, %c0_8, %c0_9, %c0_10] : memref<1x16x16x128xf32, #tpu.memory_space<vmem>>, vector<1x16x16x128xf32>
    %7 = vector.shape_cast %6 : vector<1x16x16x128xf32> to vector<16x16x128xf32>
    %cst_11 = arith.constant 0.000000e+00 : f32
    %8 = vector.broadcast %cst_11 : f32 to vector<16x16x128xf32>
    %9 = arith.maximumf %7, %8 : vector<16x16x128xf32>
    %c3_12 = arith.constant 3 : index
    %c0_13 = arith.constant 0 : index
    %c0_14 = arith.constant 0 : index
    %10 = vector.load %arg6[%c3_12, %c0_13, %c0_14] : memref<22x24x128xf32, #tpu.memory_space<vmem>>, vector<16x16x128xf32>
    tpu.vector_store %arg6[%c3_12, %c0_13, %c0_14], %9 {strides = array<i32>} : memref<22x24x128xf32, #tpu.memory_space<vmem>>, vector<16x16x128xf32>,
    %c0_15 = arith.constant 0 : index
    %c0_16 = arith.constant 0 : index
    %11 = vector.load %arg4[%c0_15, %c0_16] : memref<1x128xf32, #tpu.memory_space<vmem>>, vector<1x128xf32>
    %12 = vector.shape_cast %11 : vector<1x128xf32> to vector<128xf32>
    %c0_i32 = arith.constant 0 : i32
    %c2_i32 = arith.constant 2 : i32
    %13 = arith.addi %c0_i32, %c2_i32 : i32
    %c1_i32 = arith.constant 1 : i32
    scf.for %arg7 = %c0_i32 to %13 step %c1_i32  : i32 {
      %c1_i32_18 = arith.constant 1 : i32
      %14 = arith.muli %arg7, %c1_i32_18 : i32
      %c0_i32_19 = arith.constant 0 : i32
      %15 = arith.addi %c0_i32_19, %14 : i32
      %c8_i32 = arith.constant 8 : i32
      %16 = arith.muli %15, %c8_i32 : i32
      %c0_i32_20 = arith.constant 0 : i32
      %17 = arith.addi %16, %c0_i32_20 : i32
      %18 = arith.index_cast %17 : i32 to index
      %c0_21 = arith.constant 0 : index
      %c0_22 = arith.constant 0 : index
      %19 = vector.load %arg6[%18, %c0_21, %c0_22] : memref<22x24x128xf32, #tpu.memory_space<vmem>>, vector<8x24x128xf32>
      %c0_23 = arith.constant 0 : index
      %c0_24 = arith.constant 0 : index
      %20 = vector.load %arg3[%c0_23, %c0_24] : memref<49x128xf32, #tpu.memory_space<vmem>>, vector<1x128xf32>
      %21 = vector.shape_cast %20 : vector<1x128xf32> to vector<128xf32>
      %22 = vector.shape_cast %21 : vector<128xf32> to vector<1x1x128xf32>
      %23 = vector.broadcast %22 : vector<1x1x128xf32> to vector<8x24x128xf32>
      %24 = arith.mulf %19, %23 : vector<8x24x128xf32>
      %c1_i32_25 = arith.constant 1 : i32
      %25 = arith.addi %16, %c1_i32_25 : i32
      %26 = arith.index_cast %25 : i32 to index
      %c0_26 = arith.constant 0 : index
      %c0_27 = arith.constant 0 : index
      %27 = vector.load %arg6[%26, %c0_26, %c0_27] : memref<22x24x128xf32, #tpu.memory_space<vmem>>, vector<8x24x128xf32>
      %c7 = arith.constant 7 : index
      %c0_28 = arith.constant 0 : index
      %28 = vector.load %arg3[%c7, %c0_28] : memref<49x128xf32, #tpu.memory_space<vmem>>, vector<1x128xf32>
      %29 = vector.shape_cast %28 : vector<1x128xf32> to vector<128xf32>
      %30 = vector.shape_cast %29 : vector<128xf32> to vector<1x1x128xf32>
      %31 = vector.broadcast %30 : vector<1x1x128xf32> to vector<8x24x128xf32>
      %32 = arith.mulf %27, %31 : vector<8x24x128xf32>
      %33 = arith.addf %24, %32 : vector<8x24x128xf32>
      %c2_i32_29 = arith.constant 2 : i32
      %34 = arith.addi %16, %c2_i32_29 : i32
      %35 = arith.index_cast %34 : i32 to index
      %c0_30 = arith.constant 0 : index
      %c0_31 = arith.constant 0 : index
      %36 = vector.load %arg6[%35, %c0_30, %c0_31] : memref<22x24x128xf32, #tpu.memory_space<vmem>>, vector<8x24x128xf32>
      %c14 = arith.constant 14 : index
      %c0_32 = arith.constant 0 : index
      %37 = vector.load %arg3[%c14, %c0_32] : memref<49x128xf32, #tpu.memory_space<vmem>>, vector<1x128xf32>
      %38 = vector.shape_cast %37 : vector<1x128xf32> to vector<128xf32>
      %39 = vector.shape_cast %38 : vector<128xf32> to vector<1x1x128xf32>
      %40 = vector.broadcast %39 : vector<1x1x128xf32> to vector<8x24x128xf32>
      %41 = arith.mulf %36, %40 : vector<8x24x128xf32>
      %42 = arith.addf %33, %41 : vector<8x24x128xf32>
      %c3_i32 = arith.constant 3 : i32
      %43 = arith.addi %16, %c3_i32 : i32
      %44 = arith.index_cast %43 : i32 to index
      %c0_33 = arith.constant 0 : index
      %c0_34 = arith.constant 0 : index
      %45 = vector.load %arg6[%44, %c0_33, %c0_34] : memref<22x24x128xf32, #tpu.memory_space<vmem>>, vector<8x24x128xf32>
      %c21 = arith.constant 21 : index
      %c0_35 = arith.constant 0 : index
      %46 = vector.load %arg3[%c21, %c0_35] : memref<49x128xf32, #tpu.memory_space<vmem>>, vector<1x128xf32>
      %47 = vector.shape_cast %46 : vector<1x128xf32> to vector<128xf32>
      %48 = vector.shape_cast %47 : vector<128xf32> to vector<1x1x128xf32>
      %49 = vector.broadcast %48 : vector<1x1x128xf32> to vector<8x24x128xf32>
      %50 = arith.mulf %45, %49 : vector<8x24x128xf32>
      %51 = arith.addf %42, %50 : vector<8x24x128xf32>
      %c4_i32 = arith.constant 4 : i32
      %52 = arith.addi %16, %c4_i32 : i32
      %53 = arith.index_cast %52 : i32 to index
      %c0_36 = arith.constant 0 : index
      %c0_37 = arith.constant 0 : index
      %54 = vector.load %arg6[%53, %c0_36, %c0_37] : memref<22x24x128xf32, #tpu.memory_space<vmem>>, vector<8x24x128xf32>
      %c28 = arith.constant 28 : index
      %c0_38 = arith.constant 0 : index
      %55 = vector.load %arg3[%c28, %c0_38] : memref<49x128xf32, #tpu.memory_space<vmem>>, vector<1x128xf32>
      %56 = vector.shape_cast %55 : vector<1x128xf32> to vector<128xf32>
      %57 = vector.shape_cast %56 : vector<128xf32> to vector<1x1x128xf32>
      %58 = vector.broadcast %57 : vector<1x1x128xf32> to vector<8x24x128xf32>
      %59 = arith.mulf %54, %58 : vector<8x24x128xf32>
      %60 = arith.addf %51, %59 : vector<8x24x128xf32>
      %c5_i32 = arith.constant 5 : i32
      %61 = arith.addi %16, %c5_i32 : i32
      %62 = arith.index_cast %61 : i32 to index
      %c0_39 = arith.constant 0 : index
      %c0_40 = arith.constant 0 : index
      %63 = vector.load %arg6[%62, %c0_39, %c0_40] : memref<22x24x128xf32, #tpu.memory_space<vmem>>, vector<8x24x128xf32>
      %c35 = arith.constant 35 : index
      %c0_41 = arith.constant 0 : index
      %64 = vector.load %arg3[%c35, %c0_41] : memref<49x128xf32, #tpu.memory_space<vmem>>, vector<1x128xf32>
      %65 = vector.shape_cast %64 : vector<1x128xf32> to vector<128xf32>
      %66 = vector.shape_cast %65 : vector<128xf32> to vector<1x1x128xf32>
      %67 = vector.broadcast %66 : vector<1x1x128xf32> to vector<8x24x128xf32>
      %68 = arith.mulf %63, %67 : vector<8x24x128xf32>
      %69 = arith.addf %60, %68 : vector<8x24x128xf32>
      %c6_i32 = arith.constant 6 : i32
      %70 = arith.addi %16, %c6_i32 : i32
      %71 = arith.index_cast %70 : i32 to index
      %c0_42 = arith.constant 0 : index
      %c0_43 = arith.constant 0 : index
      %72 = vector.load %arg6[%71, %c0_42, %c0_43] : memref<22x24x128xf32, #tpu.memory_space<vmem>>, vector<8x24x128xf32>
      %c42 = arith.constant 42 : index
      %c0_44 = arith.constant 0 : index
      %73 = vector.load %arg3[%c42, %c0_44] : memref<49x128xf32, #tpu.memory_space<vmem>>, vector<1x128xf32>
      %74 = vector.shape_cast %73 : vector<1x128xf32> to vector<128xf32>
      %75 = vector.shape_cast %74 : vector<128xf32> to vector<1x1x128xf32>
      %76 = vector.broadcast %75 : vector<1x1x128xf32> to vector<8x24x128xf32>
      %77 = arith.mulf %72, %76 : vector<8x24x128xf32>
      %78 = arith.addf %69, %77 : vector<8x24x128xf32>
      %c3_i32_45 = arith.constant 3 : i32
      %79 = tpu.dynamic_rotate %78 by %c3_i32_45 dim 1 : vector<8x24x128xf32>, i32 -> vector<8x24x128xf32>
      %80 = vector.extract_strided_slice %79 {offsets = [0, 0, 0], sizes = [8, 16, 128], strides = [1, 1, 1]} : vector<8x24x128xf32> to vector<8x16x128xf32>
      %c0_i32_46 = arith.constant 0 : i32
      %81 = arith.addi %16, %c0_i32_46 : i32
      %82 = arith.index_cast %81 : i32 to index
      %c0_47 = arith.constant 0 : index
      %c0_48 = arith.constant 0 : index
      %83 = vector.load %arg6[%82, %c0_47, %c0_48] : memref<22x24x128xf32, #tpu.memory_space<vmem>>, vector<8x24x128xf32>
      %c1 = arith.constant 1 : index
      %c0_49 = arith.constant 0 : index
      %84 = vector.load %arg3[%c1, %c0_49] : memref<49x128xf32, #tpu.memory_space<vmem>>, vector<1x128xf32>
      %85 = vector.shape_cast %84 : vector<1x128xf32> to vector<128xf32>
      %86 = vector.shape_cast %85 : vector<128xf32> to vector<1x1x128xf32>
      %87 = vector.broadcast %86 : vector<1x1x128xf32> to vector<8x24x128xf32>
      %88 = arith.mulf %83, %87 : vector<8x24x128xf32>
      %c1_i32_50 = arith.constant 1 : i32
      %89 = arith.addi %16, %c1_i32_50 : i32
      %90 = arith.index_cast %89 : i32 to index
      %c0_51 = arith.constant 0 : index
      %c0_52 = arith.constant 0 : index
      %91 = vector.load %arg6[%90, %c0_51, %c0_52] : memref<22x24x128xf32, #tpu.memory_space<vmem>>, vector<8x24x128xf32>
      %c8 = arith.constant 8 : index
      %c0_53 = arith.constant 0 : index
      %92 = vector.load %arg3[%c8, %c0_53] : memref<49x128xf32, #tpu.memory_space<vmem>>, vector<1x128xf32>
      %93 = vector.shape_cast %92 : vector<1x128xf32> to vector<128xf32>
      %94 = vector.shape_cast %93 : vector<128xf32> to vector<1x1x128xf32>
      %95 = vector.broadcast %94 : vector<1x1x128xf32> to vector<8x24x128xf32>
      %96 = arith.mulf %91, %95 : vector<8x24x128xf32>
      %97 = arith.addf %88, %96 : vector<8x24x128xf32>
      %c2_i32_54 = arith.constant 2 : i32
      %98 = arith.addi %16, %c2_i32_54 : i32
      %99 = arith.index_cast %98 : i32 to index
      %c0_55 = arith.constant 0 : index
      %c0_56 = arith.constant 0 : index
      %100 = vector.load %arg6[%99, %c0_55, %c0_56] : memref<22x24x128xf32, #tpu.memory_space<vmem>>, vector<8x24x128xf32>
      %c15 = arith.constant 15 : index
      %c0_57 = arith.constant 0 : index
      %101 = vector.load %arg3[%c15, %c0_57] : memref<49x128xf32, #tpu.memory_space<vmem>>, vector<1x128xf32>
      %102 = vector.shape_cast %101 : vector<1x128xf32> to vector<128xf32>
      %103 = vector.shape_cast %102 : vector<128xf32> to vector<1x1x128xf32>
      %104 = vector.broadcast %103 : vector<1x1x128xf32> to vector<8x24x128xf32>
      %105 = arith.mulf %100, %104 : vector<8x24x128xf32>
      %106 = arith.addf %97, %105 : vector<8x24x128xf32>
      %c3_i32_58 = arith.constant 3 : i32
      %107 = arith.addi %16, %c3_i32_58 : i32
      %108 = arith.index_cast %107 : i32 to index
      %c0_59 = arith.constant 0 : index
      %c0_60 = arith.constant 0 : index
      %109 = vector.load %arg6[%108, %c0_59, %c0_60] : memref<22x24x128xf32, #tpu.memory_space<vmem>>, vector<8x24x128xf32>
      %c22 = arith.constant 22 : index
      %c0_61 = arith.constant 0 : index
      %110 = vector.load %arg3[%c22, %c0_61] : memref<49x128xf32, #tpu.memory_space<vmem>>, vector<1x128xf32>
      %111 = vector.shape_cast %110 : vector<1x128xf32> to vector<128xf32>
      %112 = vector.shape_cast %111 : vector<128xf32> to vector<1x1x128xf32>
      %113 = vector.broadcast %112 : vector<1x1x128xf32> to vector<8x24x128xf32>
      %114 = arith.mulf %109, %113 : vector<8x24x128xf32>
      %115 = arith.addf %106, %114 : vector<8x24x128xf32>
      %c4_i32_62 = arith.constant 4 : i32
      %116 = arith.addi %16, %c4_i32_62 : i32
      %117 = arith.index_cast %116 : i32 to index
      %c0_63 = arith.constant 0 : index
      %c0_64 = arith.constant 0 : index
      %118 = vector.load %arg6[%117, %c0_63, %c0_64] : memref<22x24x128xf32, #tpu.memory_space<vmem>>, vector<8x24x128xf32>
      %c29 = arith.constant 29 : index
      %c0_65 = arith.constant 0 : index
      %119 = vector.load %arg3[%c29, %c0_65] : memref<49x128xf32, #tpu.memory_space<vmem>>, vector<1x128xf32>
      %120 = vector.shape_cast %119 : vector<1x128xf32> to vector<128xf32>
      %121 = vector.shape_cast %120 : vector<128xf32> to vector<1x1x128xf32>
      %122 = vector.broadcast %121 : vector<1x1x128xf32> to vector<8x24x128xf32>
      %123 = arith.mulf %118, %122 : vector<8x24x128xf32>
      %124 = arith.addf %115, %123 : vector<8x24x128xf32>
      %c5_i32_66 = arith.constant 5 : i32
      %125 = arith.addi %16, %c5_i32_66 : i32
      %126 = arith.index_cast %125 : i32 to index
      %c0_67 = arith.constant 0 : index
      %c0_68 = arith.constant 0 : index
      %127 = vector.load %arg6[%126, %c0_67, %c0_68] : memref<22x24x128xf32, #tpu.memory_space<vmem>>, vector<8x24x128xf32>
      %c36 = arith.constant 36 : index
      %c0_69 = arith.constant 0 : index
      %128 = vector.load %arg3[%c36, %c0_69] : memref<49x128xf32, #tpu.memory_space<vmem>>, vector<1x128xf32>
      %129 = vector.shape_cast %128 : vector<1x128xf32> to vector<128xf32>
      %130 = vector.shape_cast %129 : vector<128xf32> to vector<1x1x128xf32>
      %131 = vector.broadcast %130 : vector<1x1x128xf32> to vector<8x24x128xf32>
      %132 = arith.mulf %127, %131 : vector<8x24x128xf32>
      %133 = arith.addf %124, %132 : vector<8x24x128xf32>
      %c6_i32_70 = arith.constant 6 : i32
      %134 = arith.addi %16, %c6_i32_70 : i32
      %135 = arith.index_cast %134 : i32 to index
      %c0_71 = arith.constant 0 : index
      %c0_72 = arith.constant 0 : index
      %136 = vector.load %arg6[%135, %c0_71, %c0_72] : memref<22x24x128xf32, #tpu.memory_space<vmem>>, vector<8x24x128xf32>
      %c43 = arith.constant 43 : index
      %c0_73 = arith.constant 0 : index
      %137 = vector.load %arg3[%c43, %c0_73] : memref<49x128xf32, #tpu.memory_space<vmem>>, vector<1x128xf32>
      %138 = vector.shape_cast %137 : vector<1x128xf32> to vector<128xf32>
      %139 = vector.shape_cast %138 : vector<128xf32> to vector<1x1x128xf32>
      %140 = vector.broadcast %139 : vector<1x1x128xf32> to vector<8x24x128xf32>
      %141 = arith.mulf %136, %140 : vector<8x24x128xf32>
      %142 = arith.addf %133, %141 : vector<8x24x128xf32>
      %c2_i32_74 = arith.constant 2 : i32
      %143 = tpu.dynamic_rotate %142 by %c2_i32_74 dim 1 : vector<8x24x128xf32>, i32 -> vector<8x24x128xf32>
      %144 = vector.extract_strided_slice %143 {offsets = [0, 0, 0], sizes = [8, 16, 128], strides = [1, 1, 1]} : vector<8x24x128xf32> to vector<8x16x128xf32>
      %145 = arith.addf %80, %144 : vector<8x16x128xf32>
      %c0_i32_75 = arith.constant 0 : i32
      %146 = arith.addi %16, %c0_i32_75 : i32
      %147 = arith.index_cast %146 : i32 to index
      %c0_76 = arith.constant 0 : index
      %c0_77 = arith.constant 0 : index
      %148 = vector.load %arg6[%147, %c0_76, %c0_77] : memref<22x24x128xf32, #tpu.memory_space<vmem>>, vector<8x24x128xf32>
      %c2 = arith.constant 2 : index
      %c0_78 = arith.constant 0 : index
      %149 = vector.load %arg3[%c2, %c0_78] : memref<49x128xf32, #tpu.memory_space<vmem>>, vector<1x128xf32>
      %150 = vector.shape_cast %149 : vector<1x128xf32> to vector<128xf32>
      %151 = vector.shape_cast %150 : vector<128xf32> to vector<1x1x128xf32>
      %152 = vector.broadcast %151 : vector<1x1x128xf32> to vector<8x24x128xf32>
      %153 = arith.mulf %148, %152 : vector<8x24x128xf32>
      %c1_i32_79 = arith.constant 1 : i32
      %154 = arith.addi %16, %c1_i32_79 : i32
      %155 = arith.index_cast %154 : i32 to index
      %c0_80 = arith.constant 0 : index
      %c0_81 = arith.constant 0 : index
      %156 = vector.load %arg6[%155, %c0_80, %c0_81] : memref<22x24x128xf32, #tpu.memory_space<vmem>>, vector<8x24x128xf32>
      %c9 = arith.constant 9 : index
      %c0_82 = arith.constant 0 : index
      %157 = vector.load %arg3[%c9, %c0_82] : memref<49x128xf32, #tpu.memory_space<vmem>>, vector<1x128xf32>
      %158 = vector.shape_cast %157 : vector<1x128xf32> to vector<128xf32>
      %159 = vector.shape_cast %158 : vector<128xf32> to vector<1x1x128xf32>
      %160 = vector.broadcast %159 : vector<1x1x128xf32> to vector<8x24x128xf32>
      %161 = arith.mulf %156, %160 : vector<8x24x128xf32>
      %162 = arith.addf %153, %161 : vector<8x24x128xf32>
      %c2_i32_83 = arith.constant 2 : i32
      %163 = arith.addi %16, %c2_i32_83 : i32
      %164 = arith.index_cast %163 : i32 to index
      %c0_84 = arith.constant 0 : index
      %c0_85 = arith.constant 0 : index
      %165 = vector.load %arg6[%164, %c0_84, %c0_85] : memref<22x24x128xf32, #tpu.memory_space<vmem>>, vector<8x24x128xf32>
      %c16_86 = arith.constant 16 : index
      %c0_87 = arith.constant 0 : index
      %166 = vector.load %arg3[%c16_86, %c0_87] : memref<49x128xf32, #tpu.memory_space<vmem>>, vector<1x128xf32>
      %167 = vector.shape_cast %166 : vector<1x128xf32> to vector<128xf32>
      %168 = vector.shape_cast %167 : vector<128xf32> to vector<1x1x128xf32>
      %169 = vector.broadcast %168 : vector<1x1x128xf32> to vector<8x24x128xf32>
      %170 = arith.mulf %165, %169 : vector<8x24x128xf32>
      %171 = arith.addf %162, %170 : vector<8x24x128xf32>
      %c3_i32_88 = arith.constant 3 : i32
      %172 = arith.addi %16, %c3_i32_88 : i32
      %173 = arith.index_cast %172 : i32 to index
      %c0_89 = arith.constant 0 : index
      %c0_90 = arith.constant 0 : index
      %174 = vector.load %arg6[%173, %c0_89, %c0_90] : memref<22x24x128xf32, #tpu.memory_space<vmem>>, vector<8x24x128xf32>
      %c23 = arith.constant 23 : index
      %c0_91 = arith.constant 0 : index
      %175 = vector.load %arg3[%c23, %c0_91] : memref<49x128xf32, #tpu.memory_space<vmem>>, vector<1x128xf32>
      %176 = vector.shape_cast %175 : vector<1x128xf32> to vector<128xf32>
      %177 = vector.shape_cast %176 : vector<128xf32> to vector<1x1x128xf32>
      %178 = vector.broadcast %177 : vector<1x1x128xf32> to vector<8x24x128xf32>
      %179 = arith.mulf %174, %178 : vector<8x24x128xf32>
      %180 = arith.addf %171, %179 : vector<8x24x128xf32>
      %c4_i32_92 = arith.constant 4 : i32
      %181 = arith.addi %16, %c4_i32_92 : i32
      %182 = arith.index_cast %181 : i32 to index
      %c0_93 = arith.constant 0 : index
      %c0_94 = arith.constant 0 : index
      %183 = vector.load %arg6[%182, %c0_93, %c0_94] : memref<22x24x128xf32, #tpu.memory_space<vmem>>, vector<8x24x128xf32>
      %c30 = arith.constant 30 : index
      %c0_95 = arith.constant 0 : index
      %184 = vector.load %arg3[%c30, %c0_95] : memref<49x128xf32, #tpu.memory_space<vmem>>, vector<1x128xf32>
      %185 = vector.shape_cast %184 : vector<1x128xf32> to vector<128xf32>
      %186 = vector.shape_cast %185 : vector<128xf32> to vector<1x1x128xf32>
      %187 = vector.broadcast %186 : vector<1x1x128xf32> to vector<8x24x128xf32>
      %188 = arith.mulf %183, %187 : vector<8x24x128xf32>
      %189 = arith.addf %180, %188 : vector<8x24x128xf32>
      %c5_i32_96 = arith.constant 5 : i32
      %190 = arith.addi %16, %c5_i32_96 : i32
      %191 = arith.index_cast %190 : i32 to index
      %c0_97 = arith.constant 0 : index
      %c0_98 = arith.constant 0 : index
      %192 = vector.load %arg6[%191, %c0_97, %c0_98] : memref<22x24x128xf32, #tpu.memory_space<vmem>>, vector<8x24x128xf32>
      %c37 = arith.constant 37 : index
      %c0_99 = arith.constant 0 : index
      %193 = vector.load %arg3[%c37, %c0_99] : memref<49x128xf32, #tpu.memory_space<vmem>>, vector<1x128xf32>
      %194 = vector.shape_cast %193 : vector<1x128xf32> to vector<128xf32>
      %195 = vector.shape_cast %194 : vector<128xf32> to vector<1x1x128xf32>
      %196 = vector.broadcast %195 : vector<1x1x128xf32> to vector<8x24x128xf32>
      %197 = arith.mulf %192, %196 : vector<8x24x128xf32>
      %198 = arith.addf %189, %197 : vector<8x24x128xf32>
      %c6_i32_100 = arith.constant 6 : i32
      %199 = arith.addi %16, %c6_i32_100 : i32
      %200 = arith.index_cast %199 : i32 to index
      %c0_101 = arith.constant 0 : index
      %c0_102 = arith.constant 0 : index
      %201 = vector.load %arg6[%200, %c0_101, %c0_102] : memref<22x24x128xf32, #tpu.memory_space<vmem>>, vector<8x24x128xf32>
      %c44 = arith.constant 44 : index
      %c0_103 = arith.constant 0 : index
      %202 = vector.load %arg3[%c44, %c0_103] : memref<49x128xf32, #tpu.memory_space<vmem>>, vector<1x128xf32>
      %203 = vector.shape_cast %202 : vector<1x128xf32> to vector<128xf32>
      %204 = vector.shape_cast %203 : vector<128xf32> to vector<1x1x128xf32>
      %205 = vector.broadcast %204 : vector<1x1x128xf32> to vector<8x24x128xf32>
      %206 = arith.mulf %201, %205 : vector<8x24x128xf32>
      %207 = arith.addf %198, %206 : vector<8x24x128xf32>
      %c1_i32_104 = arith.constant 1 : i32
      %208 = tpu.dynamic_rotate %207 by %c1_i32_104 dim 1 : vector<8x24x128xf32>, i32 -> vector<8x24x128xf32>
      %209 = vector.extract_strided_slice %208 {offsets = [0, 0, 0], sizes = [8, 16, 128], strides = [1, 1, 1]} : vector<8x24x128xf32> to vector<8x16x128xf32>
      %210 = arith.addf %145, %209 : vector<8x16x128xf32>
      %c0_i32_105 = arith.constant 0 : i32
      %211 = arith.addi %16, %c0_i32_105 : i32
      %212 = arith.index_cast %211 : i32 to index
      %c0_106 = arith.constant 0 : index
      %c0_107 = arith.constant 0 : index
      %213 = vector.load %arg6[%212, %c0_106, %c0_107] : memref<22x24x128xf32, #tpu.memory_space<vmem>>, vector<8x24x128xf32>
      %c3_108 = arith.constant 3 : index
      %c0_109 = arith.constant 0 : index
      %214 = vector.load %arg3[%c3_108, %c0_109] : memref<49x128xf32, #tpu.memory_space<vmem>>, vector<1x128xf32>
      %215 = vector.shape_cast %214 : vector<1x128xf32> to vector<128xf32>
      %216 = vector.shape_cast %215 : vector<128xf32> to vector<1x1x128xf32>
      %217 = vector.broadcast %216 : vector<1x1x128xf32> to vector<8x24x128xf32>
      %218 = arith.mulf %213, %217 : vector<8x24x128xf32>
      %c1_i32_110 = arith.constant 1 : i32
      %219 = arith.addi %16, %c1_i32_110 : i32
      %220 = arith.index_cast %219 : i32 to index
      %c0_111 = arith.constant 0 : index
      %c0_112 = arith.constant 0 : index
      %221 = vector.load %arg6[%220, %c0_111, %c0_112] : memref<22x24x128xf32, #tpu.memory_space<vmem>>, vector<8x24x128xf32>
      %c10 = arith.constant 10 : index
      %c0_113 = arith.constant 0 : index
      %222 = vector.load %arg3[%c10, %c0_113] : memref<49x128xf32, #tpu.memory_space<vmem>>, vector<1x128xf32>
      %223 = vector.shape_cast %222 : vector<1x128xf32> to vector<128xf32>
      %224 = vector.shape_cast %223 : vector<128xf32> to vector<1x1x128xf32>
      %225 = vector.broadcast %224 : vector<1x1x128xf32> to vector<8x24x128xf32>
      %226 = arith.mulf %221, %225 : vector<8x24x128xf32>
      %227 = arith.addf %218, %226 : vector<8x24x128xf32>
      %c2_i32_114 = arith.constant 2 : i32
      %228 = arith.addi %16, %c2_i32_114 : i32
      %229 = arith.index_cast %228 : i32 to index
      %c0_115 = arith.constant 0 : index
      %c0_116 = arith.constant 0 : index
      %230 = vector.load %arg6[%229, %c0_115, %c0_116] : memref<22x24x128xf32, #tpu.memory_space<vmem>>, vector<8x24x128xf32>
      %c17 = arith.constant 17 : index
      %c0_117 = arith.constant 0 : index
      %231 = vector.load %arg3[%c17, %c0_117] : memref<49x128xf32, #tpu.memory_space<vmem>>, vector<1x128xf32>
      %232 = vector.shape_cast %231 : vector<1x128xf32> to vector<128xf32>
      %233 = vector.shape_cast %232 : vector<128xf32> to vector<1x1x128xf32>
      %234 = vector.broadcast %233 : vector<1x1x128xf32> to vector<8x24x128xf32>
      %235 = arith.mulf %230, %234 : vector<8x24x128xf32>
      %236 = arith.addf %227, %235 : vector<8x24x128xf32>
      %c3_i32_118 = arith.constant 3 : i32
      %237 = arith.addi %16, %c3_i32_118 : i32
      %238 = arith.index_cast %237 : i32 to index
      %c0_119 = arith.constant 0 : index
      %c0_120 = arith.constant 0 : index
      %239 = vector.load %arg6[%238, %c0_119, %c0_120] : memref<22x24x128xf32, #tpu.memory_space<vmem>>, vector<8x24x128xf32>
      %c24 = arith.constant 24 : index
      %c0_121 = arith.constant 0 : index
      %240 = vector.load %arg3[%c24, %c0_121] : memref<49x128xf32, #tpu.memory_space<vmem>>, vector<1x128xf32>
      %241 = vector.shape_cast %240 : vector<1x128xf32> to vector<128xf32>
      %242 = vector.shape_cast %241 : vector<128xf32> to vector<1x1x128xf32>
      %243 = vector.broadcast %242 : vector<1x1x128xf32> to vector<8x24x128xf32>
      %244 = arith.mulf %239, %243 : vector<8x24x128xf32>
      %245 = arith.addf %236, %244 : vector<8x24x128xf32>
      %c4_i32_122 = arith.constant 4 : i32
      %246 = arith.addi %16, %c4_i32_122 : i32
      %247 = arith.index_cast %246 : i32 to index
      %c0_123 = arith.constant 0 : index
      %c0_124 = arith.constant 0 : index
      %248 = vector.load %arg6[%247, %c0_123, %c0_124] : memref<22x24x128xf32, #tpu.memory_space<vmem>>, vector<8x24x128xf32>
      %c31 = arith.constant 31 : index
      %c0_125 = arith.constant 0 : index
      %249 = vector.load %arg3[%c31, %c0_125] : memref<49x128xf32, #tpu.memory_space<vmem>>, vector<1x128xf32>
      %250 = vector.shape_cast %249 : vector<1x128xf32> to vector<128xf32>
      %251 = vector.shape_cast %250 : vector<128xf32> to vector<1x1x128xf32>
      %252 = vector.broadcast %251 : vector<1x1x128xf32> to vector<8x24x128xf32>
      %253 = arith.mulf %248, %252 : vector<8x24x128xf32>
      %254 = arith.addf %245, %253 : vector<8x24x128xf32>
      %c5_i32_126 = arith.constant 5 : i32
      %255 = arith.addi %16, %c5_i32_126 : i32
      %256 = arith.index_cast %255 : i32 to index
      %c0_127 = arith.constant 0 : index
      %c0_128 = arith.constant 0 : index
      %257 = vector.load %arg6[%256, %c0_127, %c0_128] : memref<22x24x128xf32, #tpu.memory_space<vmem>>, vector<8x24x128xf32>
      %c38 = arith.constant 38 : index
      %c0_129 = arith.constant 0 : index
      %258 = vector.load %arg3[%c38, %c0_129] : memref<49x128xf32, #tpu.memory_space<vmem>>, vector<1x128xf32>
      %259 = vector.shape_cast %258 : vector<1x128xf32> to vector<128xf32>
      %260 = vector.shape_cast %259 : vector<128xf32> to vector<1x1x128xf32>
      %261 = vector.broadcast %260 : vector<1x1x128xf32> to vector<8x24x128xf32>
      %262 = arith.mulf %257, %261 : vector<8x24x128xf32>
      %263 = arith.addf %254, %262 : vector<8x24x128xf32>
      %c6_i32_130 = arith.constant 6 : i32
      %264 = arith.addi %16, %c6_i32_130 : i32
      %265 = arith.index_cast %264 : i32 to index
      %c0_131 = arith.constant 0 : index
      %c0_132 = arith.constant 0 : index
      %266 = vector.load %arg6[%265, %c0_131, %c0_132] : memref<22x24x128xf32, #tpu.memory_space<vmem>>, vector<8x24x128xf32>
      %c45 = arith.constant 45 : index
      %c0_133 = arith.constant 0 : index
      %267 = vector.load %arg3[%c45, %c0_133] : memref<49x128xf32, #tpu.memory_space<vmem>>, vector<1x128xf32>
      %268 = vector.shape_cast %267 : vector<1x128xf32> to vector<128xf32>
      %269 = vector.shape_cast %268 : vector<128xf32> to vector<1x1x128xf32>
      %270 = vector.broadcast %269 : vector<1x1x128xf32> to vector<8x24x128xf32>
      %271 = arith.mulf %266, %270 : vector<8x24x128xf32>
      %272 = arith.addf %263, %271 : vector<8x24x128xf32>
      %273 = vector.extract_strided_slice %272 {offsets = [0, 0, 0], sizes = [8, 16, 128], strides = [1, 1, 1]} : vector<8x24x128xf32> to vector<8x16x128xf32>
      %274 = arith.addf %210, %273 : vector<8x16x128xf32>
      %c0_i32_134 = arith.constant 0 : i32
      %275 = arith.addi %16, %c0_i32_134 : i32
      %276 = arith.index_cast %275 : i32 to index
      %c0_135 = arith.constant 0 : index
      %c0_136 = arith.constant 0 : index
      %277 = vector.load %arg6[%276, %c0_135, %c0_136] : memref<22x24x128xf32, #tpu.memory_space<vmem>>, vector<8x24x128xf32>
      %c4 = arith.constant 4 : index
      %c0_137 = arith.constant 0 : index
      %278 = vector.load %arg3[%c4, %c0_137] : memref<49x128xf32, #tpu.memory_space<vmem>>, vector<1x128xf32>
      %279 = vector.shape_cast %278 : vector<1x128xf32> to vector<128xf32>
      %280 = vector.shape_cast %279 : vector<128xf32> to vector<1x1x128xf32>
      %281 = vector.broadcast %280 : vector<1x1x128xf32> to vector<8x24x128xf32>
      %282 = arith.mulf %277, %281 : vector<8x24x128xf32>
      %c1_i32_138 = arith.constant 1 : i32
      %283 = arith.addi %16, %c1_i32_138 : i32
      %284 = arith.index_cast %283 : i32 to index
      %c0_139 = arith.constant 0 : index
      %c0_140 = arith.constant 0 : index
      %285 = vector.load %arg6[%284, %c0_139, %c0_140] : memref<22x24x128xf32, #tpu.memory_space<vmem>>, vector<8x24x128xf32>
      %c11 = arith.constant 11 : index
      %c0_141 = arith.constant 0 : index
      %286 = vector.load %arg3[%c11, %c0_141] : memref<49x128xf32, #tpu.memory_space<vmem>>, vector<1x128xf32>
      %287 = vector.shape_cast %286 : vector<1x128xf32> to vector<128xf32>
      %288 = vector.shape_cast %287 : vector<128xf32> to vector<1x1x128xf32>
      %289 = vector.broadcast %288 : vector<1x1x128xf32> to vector<8x24x128xf32>
      %290 = arith.mulf %285, %289 : vector<8x24x128xf32>
      %291 = arith.addf %282, %290 : vector<8x24x128xf32>
      %c2_i32_142 = arith.constant 2 : i32
      %292 = arith.addi %16, %c2_i32_142 : i32
      %293 = arith.index_cast %292 : i32 to index
      %c0_143 = arith.constant 0 : index
      %c0_144 = arith.constant 0 : index
      %294 = vector.load %arg6[%293, %c0_143, %c0_144] : memref<22x24x128xf32, #tpu.memory_space<vmem>>, vector<8x24x128xf32>
      %c18 = arith.constant 18 : index
      %c0_145 = arith.constant 0 : index
      %295 = vector.load %arg3[%c18, %c0_145] : memref<49x128xf32, #tpu.memory_space<vmem>>, vector<1x128xf32>
      %296 = vector.shape_cast %295 : vector<1x128xf32> to vector<128xf32>
      %297 = vector.shape_cast %296 : vector<128xf32> to vector<1x1x128xf32>
      %298 = vector.broadcast %297 : vector<1x1x128xf32> to vector<8x24x128xf32>
      %299 = arith.mulf %294, %298 : vector<8x24x128xf32>
      %300 = arith.addf %291, %299 : vector<8x24x128xf32>
      %c3_i32_146 = arith.constant 3 : i32
      %301 = arith.addi %16, %c3_i32_146 : i32
      %302 = arith.index_cast %301 : i32 to index
      %c0_147 = arith.constant 0 : index
      %c0_148 = arith.constant 0 : index
      %303 = vector.load %arg6[%302, %c0_147, %c0_148] : memref<22x24x128xf32, #tpu.memory_space<vmem>>, vector<8x24x128xf32>
      %c25 = arith.constant 25 : index
      %c0_149 = arith.constant 0 : index
      %304 = vector.load %arg3[%c25, %c0_149] : memref<49x128xf32, #tpu.memory_space<vmem>>, vector<1x128xf32>
      %305 = vector.shape_cast %304 : vector<1x128xf32> to vector<128xf32>
      %306 = vector.shape_cast %305 : vector<128xf32> to vector<1x1x128xf32>
      %307 = vector.broadcast %306 : vector<1x1x128xf32> to vector<8x24x128xf32>
      %308 = arith.mulf %303, %307 : vector<8x24x128xf32>
      %309 = arith.addf %300, %308 : vector<8x24x128xf32>
      %c4_i32_150 = arith.constant 4 : i32
      %310 = arith.addi %16, %c4_i32_150 : i32
      %311 = arith.index_cast %310 : i32 to index
      %c0_151 = arith.constant 0 : index
      %c0_152 = arith.constant 0 : index
      %312 = vector.load %arg6[%311, %c0_151, %c0_152] : memref<22x24x128xf32, #tpu.memory_space<vmem>>, vector<8x24x128xf32>
      %c32 = arith.constant 32 : index
      %c0_153 = arith.constant 0 : index
      %313 = vector.load %arg3[%c32, %c0_153] : memref<49x128xf32, #tpu.memory_space<vmem>>, vector<1x128xf32>
      %314 = vector.shape_cast %313 : vector<1x128xf32> to vector<128xf32>
      %315 = vector.shape_cast %314 : vector<128xf32> to vector<1x1x128xf32>
      %316 = vector.broadcast %315 : vector<1x1x128xf32> to vector<8x24x128xf32>
      %317 = arith.mulf %312, %316 : vector<8x24x128xf32>
      %318 = arith.addf %309, %317 : vector<8x24x128xf32>
      %c5_i32_154 = arith.constant 5 : i32
      %319 = arith.addi %16, %c5_i32_154 : i32
      %320 = arith.index_cast %319 : i32 to index
      %c0_155 = arith.constant 0 : index
      %c0_156 = arith.constant 0 : index
      %321 = vector.load %arg6[%320, %c0_155, %c0_156] : memref<22x24x128xf32, #tpu.memory_space<vmem>>, vector<8x24x128xf32>
      %c39 = arith.constant 39 : index
      %c0_157 = arith.constant 0 : index
      %322 = vector.load %arg3[%c39, %c0_157] : memref<49x128xf32, #tpu.memory_space<vmem>>, vector<1x128xf32>
      %323 = vector.shape_cast %322 : vector<1x128xf32> to vector<128xf32>
      %324 = vector.shape_cast %323 : vector<128xf32> to vector<1x1x128xf32>
      %325 = vector.broadcast %324 : vector<1x1x128xf32> to vector<8x24x128xf32>
      %326 = arith.mulf %321, %325 : vector<8x24x128xf32>
      %327 = arith.addf %318, %326 : vector<8x24x128xf32>
      %c6_i32_158 = arith.constant 6 : i32
      %328 = arith.addi %16, %c6_i32_158 : i32
      %329 = arith.index_cast %328 : i32 to index
      %c0_159 = arith.constant 0 : index
      %c0_160 = arith.constant 0 : index
      %330 = vector.load %arg6[%329, %c0_159, %c0_160] : memref<22x24x128xf32, #tpu.memory_space<vmem>>, vector<8x24x128xf32>
      %c46 = arith.constant 46 : index
      %c0_161 = arith.constant 0 : index
      %331 = vector.load %arg3[%c46, %c0_161] : memref<49x128xf32, #tpu.memory_space<vmem>>, vector<1x128xf32>
      %332 = vector.shape_cast %331 : vector<1x128xf32> to vector<128xf32>
      %333 = vector.shape_cast %332 : vector<128xf32> to vector<1x1x128xf32>
      %334 = vector.broadcast %333 : vector<1x1x128xf32> to vector<8x24x128xf32>
      %335 = arith.mulf %330, %334 : vector<8x24x128xf32>
      %336 = arith.addf %327, %335 : vector<8x24x128xf32>
      %c23_i32 = arith.constant 23 : i32
      %337 = tpu.dynamic_rotate %336 by %c23_i32 dim 1 : vector<8x24x128xf32>, i32 -> vector<8x24x128xf32>
      %338 = vector.extract_strided_slice %337 {offsets = [0, 0, 0], sizes = [8, 16, 128], strides = [1, 1, 1]} : vector<8x24x128xf32> to vector<8x16x128xf32>
      %339 = arith.addf %274, %338 : vector<8x16x128xf32>
      %c0_i32_162 = arith.constant 0 : i32
      %340 = arith.addi %16, %c0_i32_162 : i32
      %341 = arith.index_cast %340 : i32 to index
      %c0_163 = arith.constant 0 : index
      %c0_164 = arith.constant 0 : index
      %342 = vector.load %arg6[%341, %c0_163, %c0_164] : memref<22x24x128xf32, #tpu.memory_space<vmem>>, vector<8x24x128xf32>
      %c5 = arith.constant 5 : index
      %c0_165 = arith.constant 0 : index
      %343 = vector.load %arg3[%c5, %c0_165] : memref<49x128xf32, #tpu.memory_space<vmem>>, vector<1x128xf32>
      %344 = vector.shape_cast %343 : vector<1x128xf32> to vector<128xf32>
      %345 = vector.shape_cast %344 : vector<128xf32> to vector<1x1x128xf32>
      %346 = vector.broadcast %345 : vector<1x1x128xf32> to vector<8x24x128xf32>
      %347 = arith.mulf %342, %346 : vector<8x24x128xf32>
      %c1_i32_166 = arith.constant 1 : i32
      %348 = arith.addi %16, %c1_i32_166 : i32
      %349 = arith.index_cast %348 : i32 to index
      %c0_167 = arith.constant 0 : index
      %c0_168 = arith.constant 0 : index
      %350 = vector.load %arg6[%349, %c0_167, %c0_168] : memref<22x24x128xf32, #tpu.memory_space<vmem>>, vector<8x24x128xf32>
      %c12 = arith.constant 12 : index
      %c0_169 = arith.constant 0 : index
      %351 = vector.load %arg3[%c12, %c0_169] : memref<49x128xf32, #tpu.memory_space<vmem>>, vector<1x128xf32>
      %352 = vector.shape_cast %351 : vector<1x128xf32> to vector<128xf32>
      %353 = vector.shape_cast %352 : vector<128xf32> to vector<1x1x128xf32>
      %354 = vector.broadcast %353 : vector<1x1x128xf32> to vector<8x24x128xf32>
      %355 = arith.mulf %350, %354 : vector<8x24x128xf32>
      %356 = arith.addf %347, %355 : vector<8x24x128xf32>
      %c2_i32_170 = arith.constant 2 : i32
      %357 = arith.addi %16, %c2_i32_170 : i32
      %358 = arith.index_cast %357 : i32 to index
      %c0_171 = arith.constant 0 : index
      %c0_172 = arith.constant 0 : index
      %359 = vector.load %arg6[%358, %c0_171, %c0_172] : memref<22x24x128xf32, #tpu.memory_space<vmem>>, vector<8x24x128xf32>
      %c19_173 = arith.constant 19 : index
      %c0_174 = arith.constant 0 : index
      %360 = vector.load %arg3[%c19_173, %c0_174] : memref<49x128xf32, #tpu.memory_space<vmem>>, vector<1x128xf32>
      %361 = vector.shape_cast %360 : vector<1x128xf32> to vector<128xf32>
      %362 = vector.shape_cast %361 : vector<128xf32> to vector<1x1x128xf32>
      %363 = vector.broadcast %362 : vector<1x1x128xf32> to vector<8x24x128xf32>
      %364 = arith.mulf %359, %363 : vector<8x24x128xf32>
      %365 = arith.addf %356, %364 : vector<8x24x128xf32>
      %c3_i32_175 = arith.constant 3 : i32
      %366 = arith.addi %16, %c3_i32_175 : i32
      %367 = arith.index_cast %366 : i32 to index
      %c0_176 = arith.constant 0 : index
      %c0_177 = arith.constant 0 : index
      %368 = vector.load %arg6[%367, %c0_176, %c0_177] : memref<22x24x128xf32, #tpu.memory_space<vmem>>, vector<8x24x128xf32>
      %c26 = arith.constant 26 : index
      %c0_178 = arith.constant 0 : index
      %369 = vector.load %arg3[%c26, %c0_178] : memref<49x128xf32, #tpu.memory_space<vmem>>, vector<1x128xf32>
      %370 = vector.shape_cast %369 : vector<1x128xf32> to vector<128xf32>
      %371 = vector.shape_cast %370 : vector<128xf32> to vector<1x1x128xf32>
      %372 = vector.broadcast %371 : vector<1x1x128xf32> to vector<8x24x128xf32>
      %373 = arith.mulf %368, %372 : vector<8x24x128xf32>
      %374 = arith.addf %365, %373 : vector<8x24x128xf32>
      %c4_i32_179 = arith.constant 4 : i32
      %375 = arith.addi %16, %c4_i32_179 : i32
      %376 = arith.index_cast %375 : i32 to index
      %c0_180 = arith.constant 0 : index
      %c0_181 = arith.constant 0 : index
      %377 = vector.load %arg6[%376, %c0_180, %c0_181] : memref<22x24x128xf32, #tpu.memory_space<vmem>>, vector<8x24x128xf32>
      %c33 = arith.constant 33 : index
      %c0_182 = arith.constant 0 : index
      %378 = vector.load %arg3[%c33, %c0_182] : memref<49x128xf32, #tpu.memory_space<vmem>>, vector<1x128xf32>
      %379 = vector.shape_cast %378 : vector<1x128xf32> to vector<128xf32>
      %380 = vector.shape_cast %379 : vector<128xf32> to vector<1x1x128xf32>
      %381 = vector.broadcast %380 : vector<1x1x128xf32> to vector<8x24x128xf32>
      %382 = arith.mulf %377, %381 : vector<8x24x128xf32>
      %383 = arith.addf %374, %382 : vector<8x24x128xf32>
      %c5_i32_183 = arith.constant 5 : i32
      %384 = arith.addi %16, %c5_i32_183 : i32
      %385 = arith.index_cast %384 : i32 to index
      %c0_184 = arith.constant 0 : index
      %c0_185 = arith.constant 0 : index
      %386 = vector.load %arg6[%385, %c0_184, %c0_185] : memref<22x24x128xf32, #tpu.memory_space<vmem>>, vector<8x24x128xf32>
      %c40 = arith.constant 40 : index
      %c0_186 = arith.constant 0 : index
      %387 = vector.load %arg3[%c40, %c0_186] : memref<49x128xf32, #tpu.memory_space<vmem>>, vector<1x128xf32>
      %388 = vector.shape_cast %387 : vector<1x128xf32> to vector<128xf32>
      %389 = vector.shape_cast %388 : vector<128xf32> to vector<1x1x128xf32>
      %390 = vector.broadcast %389 : vector<1x1x128xf32> to vector<8x24x128xf32>
      %391 = arith.mulf %386, %390 : vector<8x24x128xf32>
      %392 = arith.addf %383, %391 : vector<8x24x128xf32>
      %c6_i32_187 = arith.constant 6 : i32
      %393 = arith.addi %16, %c6_i32_187 : i32
      %394 = arith.index_cast %393 : i32 to index
      %c0_188 = arith.constant 0 : index
      %c0_189 = arith.constant 0 : index
      %395 = vector.load %arg6[%394, %c0_188, %c0_189] : memref<22x24x128xf32, #tpu.memory_space<vmem>>, vector<8x24x128xf32>
      %c47 = arith.constant 47 : index
      %c0_190 = arith.constant 0 : index
      %396 = vector.load %arg3[%c47, %c0_190] : memref<49x128xf32, #tpu.memory_space<vmem>>, vector<1x128xf32>
      %397 = vector.shape_cast %396 : vector<1x128xf32> to vector<128xf32>
      %398 = vector.shape_cast %397 : vector<128xf32> to vector<1x1x128xf32>
      %399 = vector.broadcast %398 : vector<1x1x128xf32> to vector<8x24x128xf32>
      %400 = arith.mulf %395, %399 : vector<8x24x128xf32>
      %401 = arith.addf %392, %400 : vector<8x24x128xf32>
      %c22_i32 = arith.constant 22 : i32
      %402 = tpu.dynamic_rotate %401 by %c22_i32 dim 1 : vector<8x24x128xf32>, i32 -> vector<8x24x128xf32>
      %403 = vector.extract_strided_slice %402 {offsets = [0, 0, 0], sizes = [8, 16, 128], strides = [1, 1, 1]} : vector<8x24x128xf32> to vector<8x16x128xf32>
      %404 = arith.addf %339, %403 : vector<8x16x128xf32>
      %c0_i32_191 = arith.constant 0 : i32
      %405 = arith.addi %16, %c0_i32_191 : i32
      %406 = arith.index_cast %405 : i32 to index
      %c0_192 = arith.constant 0 : index
      %c0_193 = arith.constant 0 : index
      %407 = vector.load %arg6[%406, %c0_192, %c0_193] : memref<22x24x128xf32, #tpu.memory_space<vmem>>, vector<8x24x128xf32>
      %c6 = arith.constant 6 : index
      %c0_194 = arith.constant 0 : index
      %408 = vector.load %arg3[%c6, %c0_194] : memref<49x128xf32, #tpu.memory_space<vmem>>, vector<1x128xf32>
      %409 = vector.shape_cast %408 : vector<1x128xf32> to vector<128xf32>
      %410 = vector.shape_cast %409 : vector<128xf32> to vector<1x1x128xf32>
      %411 = vector.broadcast %410 : vector<1x1x128xf32> to vector<8x24x128xf32>
      %412 = arith.mulf %407, %411 : vector<8x24x128xf32>
      %c1_i32_195 = arith.constant 1 : i32
      %413 = arith.addi %16, %c1_i32_195 : i32
      %414 = arith.index_cast %413 : i32 to index
      %c0_196 = arith.constant 0 : index
      %c0_197 = arith.constant 0 : index
      %415 = vector.load %arg6[%414, %c0_196, %c0_197] : memref<22x24x128xf32, #tpu.memory_space<vmem>>, vector<8x24x128xf32>
      %c13 = arith.constant 13 : index
      %c0_198 = arith.constant 0 : index
      %416 = vector.load %arg3[%c13, %c0_198] : memref<49x128xf32, #tpu.memory_space<vmem>>, vector<1x128xf32>
      %417 = vector.shape_cast %416 : vector<1x128xf32> to vector<128xf32>
      %418 = vector.shape_cast %417 : vector<128xf32> to vector<1x1x128xf32>
      %419 = vector.broadcast %418 : vector<1x1x128xf32> to vector<8x24x128xf32>
      %420 = arith.mulf %415, %419 : vector<8x24x128xf32>
      %421 = arith.addf %412, %420 : vector<8x24x128xf32>
      %c2_i32_199 = arith.constant 2 : i32
      %422 = arith.addi %16, %c2_i32_199 : i32
      %423 = arith.index_cast %422 : i32 to index
      %c0_200 = arith.constant 0 : index
      %c0_201 = arith.constant 0 : index
      %424 = vector.load %arg6[%423, %c0_200, %c0_201] : memref<22x24x128xf32, #tpu.memory_space<vmem>>, vector<8x24x128xf32>
      %c20 = arith.constant 20 : index
      %c0_202 = arith.constant 0 : index
      %425 = vector.load %arg3[%c20, %c0_202] : memref<49x128xf32, #tpu.memory_space<vmem>>, vector<1x128xf32>
      %426 = vector.shape_cast %425 : vector<1x128xf32> to vector<128xf32>
      %427 = vector.shape_cast %426 : vector<128xf32> to vector<1x1x128xf32>
      %428 = vector.broadcast %427 : vector<1x1x128xf32> to vector<8x24x128xf32>
      %429 = arith.mulf %424, %428 : vector<8x24x128xf32>
      %430 = arith.addf %421, %429 : vector<8x24x128xf32>
      %c3_i32_203 = arith.constant 3 : i32
      %431 = arith.addi %16, %c3_i32_203 : i32
      %432 = arith.index_cast %431 : i32 to index
      %c0_204 = arith.constant 0 : index
      %c0_205 = arith.constant 0 : index
      %433 = vector.load %arg6[%432, %c0_204, %c0_205] : memref<22x24x128xf32, #tpu.memory_space<vmem>>, vector<8x24x128xf32>
      %c27 = arith.constant 27 : index
      %c0_206 = arith.constant 0 : index
      %434 = vector.load %arg3[%c27, %c0_206] : memref<49x128xf32, #tpu.memory_space<vmem>>, vector<1x128xf32>
      %435 = vector.shape_cast %434 : vector<1x128xf32> to vector<128xf32>
      %436 = vector.shape_cast %435 : vector<128xf32> to vector<1x1x128xf32>
      %437 = vector.broadcast %436 : vector<1x1x128xf32> to vector<8x24x128xf32>
      %438 = arith.mulf %433, %437 : vector<8x24x128xf32>
      %439 = arith.addf %430, %438 : vector<8x24x128xf32>
      %c4_i32_207 = arith.constant 4 : i32
      %440 = arith.addi %16, %c4_i32_207 : i32
      %441 = arith.index_cast %440 : i32 to index
      %c0_208 = arith.constant 0 : index
      %c0_209 = arith.constant 0 : index
      %442 = vector.load %arg6[%441, %c0_208, %c0_209] : memref<22x24x128xf32, #tpu.memory_space<vmem>>, vector<8x24x128xf32>
      %c34 = arith.constant 34 : index
      %c0_210 = arith.constant 0 : index
      %443 = vector.load %arg3[%c34, %c0_210] : memref<49x128xf32, #tpu.memory_space<vmem>>, vector<1x128xf32>
      %444 = vector.shape_cast %443 : vector<1x128xf32> to vector<128xf32>
      %445 = vector.shape_cast %444 : vector<128xf32> to vector<1x1x128xf32>
      %446 = vector.broadcast %445 : vector<1x1x128xf32> to vector<8x24x128xf32>
      %447 = arith.mulf %442, %446 : vector<8x24x128xf32>
      %448 = arith.addf %439, %447 : vector<8x24x128xf32>
      %c5_i32_211 = arith.constant 5 : i32
      %449 = arith.addi %16, %c5_i32_211 : i32
      %450 = arith.index_cast %449 : i32 to index
      %c0_212 = arith.constant 0 : index
      %c0_213 = arith.constant 0 : index
      %451 = vector.load %arg6[%450, %c0_212, %c0_213] : memref<22x24x128xf32, #tpu.memory_space<vmem>>, vector<8x24x128xf32>
      %c41 = arith.constant 41 : index
      %c0_214 = arith.constant 0 : index
      %452 = vector.load %arg3[%c41, %c0_214] : memref<49x128xf32, #tpu.memory_space<vmem>>, vector<1x128xf32>
      %453 = vector.shape_cast %452 : vector<1x128xf32> to vector<128xf32>
      %454 = vector.shape_cast %453 : vector<128xf32> to vector<1x1x128xf32>
      %455 = vector.broadcast %454 : vector<1x1x128xf32> to vector<8x24x128xf32>
      %456 = arith.mulf %451, %455 : vector<8x24x128xf32>
      %457 = arith.addf %448, %456 : vector<8x24x128xf32>
      %c6_i32_215 = arith.constant 6 : i32
      %458 = arith.addi %16, %c6_i32_215 : i32
      %459 = arith.index_cast %458 : i32 to index
      %c0_216 = arith.constant 0 : index
      %c0_217 = arith.constant 0 : index
      %460 = vector.load %arg6[%459, %c0_216, %c0_217] : memref<22x24x128xf32, #tpu.memory_space<vmem>>, vector<8x24x128xf32>
      %c48 = arith.constant 48 : index
      %c0_218 = arith.constant 0 : index
      %461 = vector.load %arg3[%c48, %c0_218] : memref<49x128xf32, #tpu.memory_space<vmem>>, vector<1x128xf32>
      %462 = vector.shape_cast %461 : vector<1x128xf32> to vector<128xf32>
      %463 = vector.shape_cast %462 : vector<128xf32> to vector<1x1x128xf32>
      %464 = vector.broadcast %463 : vector<1x1x128xf32> to vector<8x24x128xf32>
      %465 = arith.mulf %460, %464 : vector<8x24x128xf32>
      %466 = arith.addf %457, %465 : vector<8x24x128xf32>
      %c21_i32 = arith.constant 21 : i32
      %467 = tpu.dynamic_rotate %466 by %c21_i32 dim 1 : vector<8x24x128xf32>, i32 -> vector<8x24x128xf32>
      %468 = vector.extract_strided_slice %467 {offsets = [0, 0, 0], sizes = [8, 16, 128], strides = [1, 1, 1]} : vector<8x24x128xf32> to vector<8x16x128xf32>
      %469 = arith.addf %404, %468 : vector<8x16x128xf32>
      %470 = vector.shape_cast %12 : vector<128xf32> to vector<1x1x128xf32>
      %471 = vector.broadcast %470 : vector<1x1x128xf32> to vector<8x16x128xf32>
      %472 = arith.addf %469, %471 : vector<8x16x128xf32>
      %c0_219 = arith.constant 0 : index
      %473 = arith.index_cast %16 : i32 to index
      %c0_220 = arith.constant 0 : index
      %c0_221 = arith.constant 0 : index
      %474 = vector.load %arg5[%c0_219, %473, %c0_220, %c0_221] : memref<1x16x16x128xf32, #tpu.memory_space<vmem>>, vector<1x8x16x128xf32>
      %475 = vector.shape_cast %474 : vector<1x8x16x128xf32> to vector<8x16x128xf32>
      %476 = vector.shape_cast %472 : vector<8x16x128xf32> to vector<1x8x16x128xf32>
      tpu.vector_store %arg5[%c0_219, %473, %c0_220, %c0_221], %476 {strides = array<i32>} : memref<1x16x16x128xf32, #tpu.memory_space<vmem>>, vector<1x8x16x128xf32>,
    }
    %c2_i32_17 = arith.constant 2 : i32
    return
  }
  func.func @transform_0(%arg0: i32, %arg1: i32) -> (i32, i32, i32, i32) {
    %c0_i32 = arith.constant 0 : i32
    %c0_i32_0 = arith.constant 0 : i32
    %c0_i32_1 = arith.constant 0 : i32
    return %arg0, %c0_i32, %c0_i32_0, %arg1 : i32, i32, i32, i32
  }
  func.func @transform_1(%arg0: i32, %arg1: i32) -> (i32, i32) {
    %c0_i32 = arith.constant 0 : i32
    %c0_i32_0 = arith.constant 0 : i32
    return %c0_i32, %arg1 : i32, i32
  }
  func.func @transform_2(%arg0: i32, %arg1: i32) -> (i32, i32) {
    %c0_i32 = arith.constant 0 : i32
    %c0_i32_0 = arith.constant 0 : i32
    return %c0_i32, %arg1 : i32, i32
  }
  func.func @transform_3(%arg0: i32, %arg1: i32) -> (i32, i32, i32, i32) {
    %c0_i32 = arith.constant 0 : i32
    %c0_i32_0 = arith.constant 0 : i32
    %c0_i32_1 = arith.constant 0 : i32
    return %arg0, %c0_i32, %c0_i32_0, %arg1 : i32, i32, i32, i32
  }
}

</mosaic_0001>

<llo_original>
// kernel: tpu_custom_call.1
$region0: #{tpu_custom_call.1}
  #allocation0 [shape = 'u32[]', space=smem, size = 0x4, offset = 0x4, fixed_abs, tag = 'smem constant byte address 0x4 - core index']
  #allocation1 [shape = 'u32[144,128]{1,0:T(1,128)}', space=vmem, size = 0x12000, scoped, tag = 'internal scratch']
  #allocation2 [shape = 'f32[22,24,128]{2,1,0:T(8,128)}', space=vmem, size = 0x42000, scoped, tag = 'scratch operand']
  %s0 = inlined_call_operand.hbm [shape: f32[2,16,16,128], index: 0, kind: input, shape index: {}]
  %s1 = inlined_call_operand.hbm [shape: f32[49,128], index: 1, kind: input, shape index: {}]
  %s2 = inlined_call_operand.vmem [shape: f32[1,128], index: 2, kind: input, shape index: {}]
  %s3 = inlined_call_operand.hbm [shape: f32[2,16,16,128], index: 3, kind: output, shape index: {}]
  %s4 = sld [smem:[#allocation0]]
  $region60: #{tpu_custom_call.1} parent=0
    _
  %s6 = ssub.s32 1, %s4
  %s7 = scalar_select 0, %s6, %s4
  $region1: #{tpu_custom_call.1} parent=0
    #allocation3 [shape = 'u8[262144]{0}', space=vmem, size = 0x40000, scoped, tag = 'input window, operand 0']
    #allocation4 [shape = 's32[2]{0}', space=sflag, size = 0x8, scoped, tag = 'scoped memory for tpu_custom_call.1']
    #allocation5 [shape = 's32[2]{0}', space=sflag, size = 0x8, scoped, tag = 'scoped memory for tpu_custom_call.1']
    #allocation6 [shape = 'u8[28672]{0}', space=vmem, size = 0x7000, scoped, tag = 'input window, operand 1, single buffered']
    #allocation7 [shape = 's32[1]{0}', space=sflag, size = 0x4, scoped, tag = 'scoped memory for tpu_custom_call.1']
    #allocation8 [shape = 'u8[262144]{0}', space=vmem, size = 0x40000, scoped, tag = 'output window, operand 0']
    %8 = vsyncpa [#allocation4], 0
    %s9 = scalar_lea.sflag [#allocation4], 1
    %10 = vsyncpa %s9, 0
    %11 = vsyncpa [#allocation7], 0
    %12 = vsyncpa [#allocation5], 0
    %s13 = scalar_lea.sflag [#allocation5], 1
    %14 = vsyncpa %s13, 0
    loop: start=0, step=1, limit=4
    $region2: #{tpu_custom_call.1} parent=1 // loop_pre_header
      _
    $region3: #{tpu_custom_call.1} parent=1 // loop_header
      %s16 = sphi 0, %s20
      %p17 = scmp.ge.s32.totalorder %s16, 4
      %s23 = sphi 0, %s35
      %s24 = sphi 0, %s31
      %s25 = sphi 0, %s23
      %s26 = sphi 0, %s24
      %s27 = sphi 0, %s25
      %s28 = sphi 0, %s26
      %s40 = sphi 0, %s42
      %s43 = sphi 0, %s40
      %s44 = sphi 0, %s43
      %s60 = sphi 0, %s44
      %s66 = sphi 0, %s68
      %s69 = sphi 0, %s66
      %s70 = sphi 0, %s69
      %s86 = sphi 0, %s70
      %s92 = sphi 0, %s94
      %s95 = sphi 0, %s92
      %s96 = sphi 0, %s95
      %s112 = sphi 0, %s96
      %s120 = sphi 0, %s122
      %s123 = sphi 0, %s120
      %s124 = sphi 0, %s123
      %s140 = sphi 0, %s124
    $region4: #{tpu_custom_call.1} parent=1 // loop_header_branch
      %19 = sbr.rel (%p17) target = $region8
    $region5: #{tpu_custom_call.1} parent=1 // loop_body
      %s21 = ssub.s32 %s16, 1
      %s22 = ssub.s32 %s16, 2
      %s29 = sadd.s32 1, %s24
      %p30 = scmp.ge.s32.totalorder %s29, 1
      %s31 = scalar_select %p30, 0, %s29
      %s32 = sadd.s32 1, %s23
      %s33 = scalar_select %p30, %s32, %s23
      %p34 = scmp.ge.s32.totalorder %s33, 2
      %s35 = scalar_select %p34, 0, %s33
      %s36 = ssub.s32 %s23, %s35
      %s37 = ssub.s32 %s24, %s31
      %s38 = sor.u32 %s36, %s37
      %p39 = scmp.eq.s32.totalorder %s38, 0
      %s41 = sadd.s32 %s40, 1
      %s42 = scalar_select %p39, %s40, %s41
      %p45 = pneg %p39
      %p46 = scmp.eq.s32.totalorder %s16, 1
      %p47 = por %p45, %p46
      %p48 = scmp.ne.s32.totalorder %s40, %s43
      %p49 = scmp.eq.s32.totalorder %s16, 0
      %p50 = por %p48, %p49
      %p51 = scmp.ne.s32.totalorder %s40, %s43
      %p52 = scmp.eq.s32.totalorder %s21, 1
      %p53 = por %p51, %p52
      %p54 = scmp.ne.s32.totalorder %s43, %s44
      %p55 = scmp.eq.s32.totalorder %s21, 0
      %p56 = por %p54, %p55
      %p57 = scmp.ne.s32.totalorder %s43, %s44
      %p58 = scmp.eq.s32.totalorder %s22, 1
      %p59 = por %p57, %p58
      %p61 = scmp.ne.s32.totalorder %s44, %s60
      %p62 = scmp.eq.s32.totalorder %s22, 0
      %p63 = por %p61, %p62
      %s64 = ssub.s32 %s24, %s31
      %p65 = scmp.eq.s32.totalorder %s64, 0
      %s67 = sadd.s32 %s66, 1
      %s68 = scalar_select %p65, %s66, %s67
      %p71 = pneg %p65
      %p72 = scmp.eq.s32.totalorder %s16, 1
      %p73 = por %p71, %p72
      %p74 = scmp.ne.s32.totalorder %s66, %s69
      %p75 = scmp.eq.s32.totalorder %s16, 0
      %p76 = por %p74, %p75
      %p77 = scmp.ne.s32.totalorder %s66, %s69
      %p78 = scmp.eq.s32.totalorder %s21, 1
      %p79 = por %p77, %p78
      %p80 = scmp.ne.s32.totalorder %s69, %s70
      %p81 = scmp.eq.s32.totalorder %s21, 0
      %p82 = por %p80, %p81
      %p83 = scmp.ne.s32.totalorder %s69, %s70
      %p84 = scmp.eq.s32.totalorder %s22, 1
      %p85 = por %p83, %p84
      %p87 = scmp.ne.s32.totalorder %s70, %s86
      %p88 = scmp.eq.s32.totalorder %s22, 0
      %p89 = por %p87, %p88
      %s90 = ssub.s32 %s24, %s31
      %p91 = scmp.eq.s32.totalorder %s90, 0
      %s93 = sadd.s32 %s92, 1
      %s94 = scalar_select %p91, %s92, %s93
      %p97 = pneg %p91
      %p98 = scmp.eq.s32.totalorder %s16, 1
      %p99 = por %p97, %p98
      %p100 = scmp.ne.s32.totalorder %s92, %s95
      %p101 = scmp.eq.s32.totalorder %s16, 0
      %p102 = por %p100, %p101
      %p103 = scmp.ne.s32.totalorder %s92, %s95
      %p104 = scmp.eq.s32.totalorder %s21, 1
      %p105 = por %p103, %p104
      %p106 = scmp.ne.s32.totalorder %s95, %s96
      %p107 = scmp.eq.s32.totalorder %s21, 0
      %p108 = por %p106, %p107
      %p109 = scmp.ne.s32.totalorder %s95, %s96
      %p110 = scmp.eq.s32.totalorder %s22, 1
      %p111 = por %p109, %p110
      %p113 = scmp.ne.s32.totalorder %s96, %s112
      %p114 = scmp.eq.s32.totalorder %s22, 0
      %p115 = por %p113, %p114
      %s116 = ssub.s32 %s23, %s35
      %s117 = ssub.s32 %s24, %s31
      %s118 = sor.u32 %s116, %s117
      %p119 = scmp.eq.s32.totalorder %s118, 0
      %s121 = sadd.s32 %s120, 1
      %s122 = scalar_select %p119, %s120, %s121
      %p125 = pneg %p119
      %p126 = scmp.eq.s32.totalorder %s16, 1
      %p127 = por %p125, %p126
      %p128 = scmp.ne.s32.totalorder %s120, %s123
      %p129 = scmp.eq.s32.totalorder %s16, 0
      %p130 = por %p128, %p129
      %p131 = scmp.ne.s32.totalorder %s120, %s123
      %p132 = scmp.eq.s32.totalorder %s21, 1
      %p133 = por %p131, %p132
      %p134 = scmp.ne.s32.totalorder %s123, %s124
      %p135 = scmp.eq.s32.totalorder %s21, 0
      %p136 = por %p134, %p135
      %p137 = scmp.ne.s32.totalorder %s123, %s124
      %p138 = scmp.eq.s32.totalorder %s22, 1
      %p139 = por %p137, %p138
      %p141 = scmp.ne.s32.totalorder %s124, %s140
      %p142 = scmp.eq.s32.totalorder %s22, 0
      %p143 = por %p141, %p142
      %p144 = scmp.le.s32.totalorder 1, %s16
      %p145 = scmp.lt.s32.totalorder %s16, 3
      %p146 = pnand %p144, %p145
      %p147 = pneg %p146
      // Predicated region
      $region9: #{tpu_custom_call.1} parent=5 // pred_check
        _
      $region10: #{tpu_custom_call.1} parent=5 // pred_check_branch
        %149 = sbr.rel (%p146) target = $region12
      $region11: #{tpu_custom_call.1} parent=5 // pred_region
        %s150 = ssub.s32 %s16, 1
        // Predicated region
        $region13: #{tpu_custom_call.1} parent=11 // pred_check
          %p151 = pneg %p82
        $region14: #{tpu_custom_call.1} parent=11 // pred_check_branch
          %153 = sbr.rel (%p151) target = $region16
        $region15: #{tpu_custom_call.1} parent=11 // pred_region
          %s155 = ssub.s32 896, 896
          %156 = vsyncadd [#allocation7], %s155
          %s157 = smul.addr %s26, 128
          %s158 = scalar_lea.hbm %s1, %s157
          %s159 = sshll.u32 [#allocation6], 4
          %s160 = int_to_ptr.vmem [resolvable:$true] %s159
          %165 = dma.hbm_to_vmem [thread:$0]  %s158, 896, %s160, [#allocation7], 128, 128, 8
        $region16: #{tpu_custom_call.1} parent=11 // pred_fallthru
          _
        // Predicated region
        $region17: #{tpu_custom_call.1} parent=11 // pred_check
          %p166 = pneg %p108
        $region18: #{tpu_custom_call.1} parent=11 // pred_check_branch
          %168 = sbr.rel (%p166) target = $region20
        $region19: #{tpu_custom_call.1} parent=11 // pred_region
          %p169 = scmp.lt.s32.totalorder %s26, 0
          %s170 = scalar_select %p169, %s26, 0
          %s171 = scalar_lea.vmem %s2, %s170
        $region20: #{tpu_custom_call.1} parent=11 // pred_fallthru
          _
      $region12: #{tpu_custom_call.1} parent=5 // pred_fallthru
        _
      %p172 = scmp.lt.s32.totalorder %s16, 2
      // Predicated region
      $region21: #{tpu_custom_call.1} parent=5 // pred_check
        %p173 = pneg %p172
      $region22: #{tpu_custom_call.1} parent=5 // pred_check_branch
        %175 = sbr.rel (%p173) target = $region24
      $region23: #{tpu_custom_call.1} parent=5 // pred_region
        // Predicated region
        $region25: #{tpu_custom_call.1} parent=23 // pred_check
          %p176 = pneg %p50
        $region26: #{tpu_custom_call.1} parent=23 // pred_check_branch
          %178 = sbr.rel (%p176) target = $region28
        $region27: #{tpu_custom_call.1} parent=23 // pred_region
          %s179 = sand.u32 %s40, 1
          %s180 = scalar_lea.sflag [#allocation4], %s179
          %s181 = sand.u32 %s40, 1
          %s182 = smul.addr %s181, 256
          %s183 = scalar_lea.vmem [#allocation3], %s182
          %s185 = ssub.s32 4096, 4096
          %186 = vsyncadd %s180, %s185
          %s187 = smul.addr %s23, 32
          %s188 = sadd.s32 %s24, %s187
          %s189 = smul.addr %s188, 128
          %s190 = scalar_lea.hbm %s0, %s189
          %s191 = sshll.u32 %s183, 4
          %s192 = int_to_ptr.vmem [resolvable:$true] %s191
          %197 = dma.hbm_to_vmem [thread:$0]  %s190, 4096, %s192, %s180, 128, 128, 8
        $region28: #{tpu_custom_call.1} parent=23 // pred_fallthru
          _
      $region24: #{tpu_custom_call.1} parent=5 // pred_fallthru
        _
      %p198 = scmp.le.s32.totalorder 1, %s16
      %p199 = scmp.lt.s32.totalorder %s16, 3
      %p200 = pnand %p198, %p199
      %p201 = pneg %p200
      // Predicated region
      $region29: #{tpu_custom_call.1} parent=5 // pred_check
        _
      $region30: #{tpu_custom_call.1} parent=5 // pred_check_branch
        %203 = sbr.rel (%p200) target = $region32
      $region31: #{tpu_custom_call.1} parent=5 // pred_region
        %s204 = ssub.s32 %s16, 1
        %s205 = sand.u32 %s43, 1
        %s206 = scalar_lea.sflag [#allocation4], %s205
        %s207 = sand.u32 %s43, 1
        %s208 = smul.addr %s207, 256
        %s209 = scalar_lea.vmem [#allocation3], %s208
        // Predicated region
        $region33: #{tpu_custom_call.1} parent=31 // pred_check
          %p210 = pneg %p56
        $region34: #{tpu_custom_call.1} parent=31 // pred_check_branch
          %212 = sbr.rel (%p210) target = $region36
        $region35: #{tpu_custom_call.1} parent=31 // pred_region
          %213 = dma.done %s206, 4096
        $region36: #{tpu_custom_call.1} parent=31 // pred_fallthru
          _
        // Predicated region
        $region37: #{tpu_custom_call.1} parent=31 // pred_check
          %p214 = pneg %p82
        $region38: #{tpu_custom_call.1} parent=31 // pred_check_branch
          %216 = sbr.rel (%p214) target = $region40
        $region39: #{tpu_custom_call.1} parent=31 // pred_region
          %217 = dma.done [#allocation7], 896
        $region40: #{tpu_custom_call.1} parent=31 // pred_fallthru
          _
        %s218 = sand.u32 %s43, 1
        %s219 = scalar_lea.sflag [#allocation4], %s218
        %s220 = sand.u32 %s43, 1
        %s221 = smul.addr %s220, 256
        %s222 = scalar_lea.vmem [#allocation3], %s221
        %p223 = pneg %p56
        %p224 = pneg %p53
        %p225 = pneg %p82
        %p226 = pneg %p79
        %p227 = scmp.lt.s32.totalorder %s26, 0
        %s228 = scalar_select %p227, %s26, 0
        %s229 = scalar_lea.vmem %s2, %s228
        %p230 = pneg %p108
        %p231 = pneg %p105
        %p232 = pneg %p136
        %p233 = pneg %p133
        %s234 = sand.u32 %s123, 1
        %s235 = scalar_lea.sflag [#allocation5], %s234
        %s236 = sand.u32 %s123, 1
        %s237 = smul.addr %s236, 256
        %s238 = scalar_lea.vmem [#allocation8], %s237
        %p239 = scmp.lt.s32.totalorder %s26, 0
        %s240 = scalar_select %p239, %s26, 0
        %s241 = scalar_lea.vmem %s2, %s240
        %242 = vst [vmem:[#allocation2] sm:$0xff] 0.0
        %243 = vst [vmem:[#allocation2 + $0x8] sm:$0xff] 0.0
        %244 = vst [vmem:[#allocation2 + $0x10] sm:$0xff] 0.0
        %245 = vst [vmem:[#allocation2 + $0x18] sm:$0xff] 0.0
        %246 = vst [vmem:[#allocation2 + $0x20] sm:$0xff] 0.0
        %247 = vst [vmem:[#allocation2 + $0x28] sm:$0xff] 0.0
        %248 = vst [vmem:[#allocation2 + $0x30] sm:$0xff] 0.0
        %249 = vst [vmem:[#allocation2 + $0x38] sm:$0xff] 0.0
        %250 = vst [vmem:[#allocation2 + $0x40] sm:$0xff] 0.0
        %s251 = scalar_lea.vmem [#allocation2], 456
        %252 = vst [vmem:[%s251] sm:$0xff] 0.0
        %253 = vst [vmem:[%s251 + $0x8] sm:$0xff] 0.0
        %254 = vst [vmem:[%s251 + $0x10] sm:$0xff] 0.0
        %255 = vst [vmem:[%s251 + $0x18] sm:$0xff] 0.0
        %256 = vst [vmem:[%s251 + $0x20] sm:$0xff] 0.0
        %257 = vst [vmem:[%s251 + $0x28] sm:$0xff] 0.0
        %258 = vst [vmem:[%s251 + $0x30] sm:$0xff] 0.0
        %259 = vst [vmem:[%s251 + $0x38] sm:$0xff] 0.0
        %260 = vst [vmem:[%s251 + $0x40] sm:$0xff] 0.0
        %s261 = scalar_lea.vmem [#allocation2], 72
        %262 = vst [vmem:[%s261 + $0x10] sm:$0xff] 0.0
        %263 = vst [vmem:[%s261 + $0x28] sm:$0xff] 0.0
        %264 = vst [vmem:[%s261 + $0x40] sm:$0xff] 0.0
        %265 = vst [vmem:[%s261 + $0x58] sm:$0xff] 0.0
        %266 = vst [vmem:[%s261 + $0x70] sm:$0xff] 0.0
        %267 = vst [vmem:[%s261 + $0x88] sm:$0xff] 0.0
        %268 = vst [vmem:[%s261 + $0xa0] sm:$0xff] 0.0
        %269 = vst [vmem:[%s261 + $0xb8] sm:$0xff] 0.0
        %270 = vst [vmem:[%s261 + $0xd0] sm:$0xff] 0.0
        %271 = vst [vmem:[%s261 + $0xe8] sm:$0xff] 0.0
        %272 = vst [vmem:[%s261 + $0x100] sm:$0xff] 0.0
        %273 = vst [vmem:[%s261 + $0x118] sm:$0xff] 0.0
        %274 = vst [vmem:[%s261 + $0x130] sm:$0xff] 0.0
        %275 = vst [vmem:[%s261 + $0x148] sm:$0xff] 0.0
        %276 = vst [vmem:[%s261 + $0x160] sm:$0xff] 0.0
        %277 = vst [vmem:[%s261 + $0x178] sm:$0xff] 0.0
        %v278 = vld [vmem:[%s209] sm:$0xff]
        %v279 = vld [vmem:[%s209 + $0x8] sm:$0xff]
        %v280 = vld [vmem:[%s209 + $0x10] sm:$0xff]
        %v281 = vld [vmem:[%s209 + $0x18] sm:$0xff]
        %v282 = vld [vmem:[%s209 + $0x20] sm:$0xff]
        %v283 = vld [vmem:[%s209 + $0x28] sm:$0xff]
        %v284 = vld [vmem:[%s209 + $0x30] sm:$0xff]
        %v285 = vld [vmem:[%s209 + $0x38] sm:$0xff]
        %v286 = vld [vmem:[%s209 + $0x40] sm:$0xff]
        %v287 = vld [vmem:[%s209 + $0x48] sm:$0xff]
        %v288 = vld [vmem:[%s209 + $0x50] sm:$0xff]
        %v289 = vld [vmem:[%s209 + $0x58] sm:$0xff]
        %v290 = vld [vmem:[%s209 + $0x60] sm:$0xff]
        %v291 = vld [vmem:[%s209 + $0x68] sm:$0xff]
        %v292 = vld [vmem:[%s209 + $0x70] sm:$0xff]
        %v293 = vld [vmem:[%s209 + $0x78] sm:$0xff]
        %v294 = vld [vmem:[%s209 + $0x80] sm:$0xff]
        %v295 = vld [vmem:[%s209 + $0x88] sm:$0xff]
        %v296 = vld [vmem:[%s209 + $0x90] sm:$0xff]
        %v297 = vld [vmem:[%s209 + $0x98] sm:$0xff]
        %v298 = vld [vmem:[%s209 + $0xa0] sm:$0xff]
        %v299 = vld [vmem:[%s209 + $0xa8] sm:$0xff]
        %v300 = vld [vmem:[%s209 + $0xb0] sm:$0xff]
        %v301 = vld [vmem:[%s209 + $0xb8] sm:$0xff]
        %v302 = vld [vmem:[%s209 + $0xc0] sm:$0xff]
        %v303 = vld [vmem:[%s209 + $0xc8] sm:$0xff]
        %v304 = vld [vmem:[%s209 + $0xd0] sm:$0xff]
        %v305 = vld [vmem:[%s209 + $0xd8] sm:$0xff]
        %v306 = vld [vmem:[%s209 + $0xe0] sm:$0xff]
        %v307 = vld [vmem:[%s209 + $0xe8] sm:$0xff]
        %v308 = vld [vmem:[%s209 + $0xf0] sm:$0xff]
        %v309 = vld [vmem:[%s209 + $0xf8] sm:$0xff]
        %v310 = vmax.f32 %v278, 0.0
        %v311 = vmax.f32 %v279, 0.0
        %v312 = vmax.f32 %v280, 0.0
        %v313 = vmax.f32 %v281, 0.0
        %v314 = vmax.f32 %v282, 0.0
        %v315 = vmax.f32 %v283, 0.0
        %v316 = vmax.f32 %v284, 0.0
        %v317 = vmax.f32 %v285, 0.0
        %v318 = vmax.f32 %v286, 0.0
        %v319 = vmax.f32 %v287, 0.0
        %v320 = vmax.f32 %v288, 0.0
        %v321 = vmax.f32 %v289, 0.0
        %v322 = vmax.f32 %v290, 0.0
        %v323 = vmax.f32 %v291, 0.0
        %v324 = vmax.f32 %v292, 0.0
        %v325 = vmax.f32 %v293, 0.0
        %v326 = vmax.f32 %v294, 0.0
        %v327 = vmax.f32 %v295, 0.0
        %v328 = vmax.f32 %v296, 0.0
        %v329 = vmax.f32 %v297, 0.0
        %v330 = vmax.f32 %v298, 0.0
        %v331 = vmax.f32 %v299, 0.0
        %v332 = vmax.f32 %v300, 0.0
        %v333 = vmax.f32 %v301, 0.0
        %v334 = vmax.f32 %v302, 0.0
        %v335 = vmax.f32 %v303, 0.0
        %v336 = vmax.f32 %v304, 0.0
        %v337 = vmax.f32 %v305, 0.0
        %v338 = vmax.f32 %v306, 0.0
        %v339 = vmax.f32 %v307, 0.0
        %v340 = vmax.f32 %v308, 0.0
        %v341 = vmax.f32 %v309, 0.0
        %342 = vst [vmem:[%s261] sm:$0xff] %v310
        %343 = vst [vmem:[%s261 + $0x8] sm:$0xff] %v311
        %344 = vst [vmem:[%s261 + $0x18] sm:$0xff] %v312
        %345 = vst [vmem:[%s261 + $0x20] sm:$0xff] %v313
        %346 = vst [vmem:[%s261 + $0x30] sm:$0xff] %v314
        %347 = vst [vmem:[%s261 + $0x38] sm:$0xff] %v315
        %348 = vst [vmem:[%s261 + $0x48] sm:$0xff] %v316
        %349 = vst [vmem:[%s261 + $0x50] sm:$0xff] %v317
        %350 = vst [vmem:[%s261 + $0x60] sm:$0xff] %v318
        %351 = vst [vmem:[%s261 + $0x68] sm:$0xff] %v319
        %352 = vst [vmem:[%s261 + $0x78] sm:$0xff] %v320
        %353 = vst [vmem:[%s261 + $0x80] sm:$0xff] %v321
        %354 = vst [vmem:[%s261 + $0x90] sm:$0xff] %v322
        %355 = vst [vmem:[%s261 + $0x98] sm:$0xff] %v323
        %356 = vst [vmem:[%s261 + $0xa8] sm:$0xff] %v324
        %357 = vst [vmem:[%s261 + $0xb0] sm:$0xff] %v325
        %358 = vst [vmem:[%s261 + $0xc0] sm:$0xff] %v326
        %359 = vst [vmem:[%s261 + $0xc8] sm:$0xff] %v327
        %360 = vst [vmem:[%s261 + $0xd8] sm:$0xff] %v328
        %361 = vst [vmem:[%s261 + $0xe0] sm:$0xff] %v329
        %362 = vst [vmem:[%s261 + $0xf0] sm:$0xff] %v330
        %363 = vst [vmem:[%s261 + $0xf8] sm:$0xff] %v331
        %364 = vst [vmem:[%s261 + $0x108] sm:$0xff] %v332
        %365 = vst [vmem:[%s261 + $0x110] sm:$0xff] %v333
        %366 = vst [vmem:[%s261 + $0x120] sm:$0xff] %v334
        %367 = vst [vmem:[%s261 + $0x128] sm:$0xff] %v335
        %368 = vst [vmem:[%s261 + $0x138] sm:$0xff] %v336
        %369 = vst [vmem:[%s261 + $0x140] sm:$0xff] %v337
        %370 = vst [vmem:[%s261 + $0x150] sm:$0xff] %v338
        %371 = vst [vmem:[%s261 + $0x158] sm:$0xff] %v339
        %372 = vst [vmem:[%s261 + $0x168] sm:$0xff] %v340
        %373 = vst [vmem:[%s261 + $0x170] sm:$0xff] %v341
        %v374 = vld [vmem:[%s241] sm:$0x1]
        loop: start=0, step=1, limit=2
        $region41: #{tpu_custom_call.1} parent=31 // loop_pre_header
          _
        $region42: #{tpu_custom_call.1} parent=31 // loop_header
          %s376 = sphi 0, %s380
          %p377 = scmp.ge.s32.totalorder %s376, 2
        $region43: #{tpu_custom_call.1} parent=31 // loop_header_branch
          %379 = sbr.rel (%p377) target = $region47
        $region44: #{tpu_custom_call.1} parent=31 // loop_body
          %s381 = smul.u32 %s376, 8
          %s382 = smul.u32 %s381, 24
          %s383 = scalar_lea.vmem [#allocation2], %s382
          %v384 = vld [vmem:[%s383] sm:$0xff]
          %v385 = vld [vmem:[%s383 + $0x8] sm:$0xff]
          %v386 = vld [vmem:[%s383 + $0x10] sm:$0xff]
          %v387 = vld [vmem:[%s383 + $0x18] sm:$0xff]
          %v388 = vld [vmem:[%s383 + $0x20] sm:$0xff]
          %v389 = vld [vmem:[%s383 + $0x28] sm:$0xff]
          %v390 = vld [vmem:[%s383 + $0x30] sm:$0xff]
          %v391 = vld [vmem:[%s383 + $0x38] sm:$0xff]
          %v392 = vld [vmem:[%s383 + $0x40] sm:$0xff]
          %v393 = vld [vmem:[%s383 + $0x48] sm:$0xff]
          %v394 = vld [vmem:[%s383 + $0x50] sm:$0xff]
          %v395 = vld [vmem:[%s383 + $0x58] sm:$0xff]
          %v396 = vld [vmem:[%s383 + $0x60] sm:$0xff]
          %v397 = vld [vmem:[%s383 + $0x68] sm:$0xff]
          %v398 = vld [vmem:[%s383 + $0x70] sm:$0xff]
          %v399 = vld [vmem:[%s383 + $0x78] sm:$0xff]
          %v400 = vld [vmem:[%s383 + $0x80] sm:$0xff]
          %v401 = vld [vmem:[%s383 + $0x88] sm:$0xff]
          %v402 = vld [vmem:[%s383 + $0x90] sm:$0xff]
          %v403 = vld [vmem:[%s383 + $0x98] sm:$0xff]
          %v404 = vld [vmem:[%s383 + $0xa0] sm:$0xff]
          %v405 = vld [vmem:[%s383 + $0xa8] sm:$0xff]
          %v406 = vld [vmem:[%s383 + $0xb0] sm:$0xff]
          %v407 = vld [vmem:[%s383 + $0xb8] sm:$0xff]
          %v408 = vld [vmem:[#allocation6] sm:$0x1]
          %v409 = vlaneseq
          %v410 = vshrl.u32 %v409, 7
          %v411 = vsub.s32 0, %v410
          %v412 = vrot.slane %v408, %v411
          %v413 = vmul.f32 %v384, %v412
          %v414 = vmul.f32 %v385, %v412
          %v415 = vmul.f32 %v386, %v412
          %v416 = vmul.f32 %v387, %v412
          %v417 = vmul.f32 %v388, %v412
          %v418 = vmul.f32 %v389, %v412
          %v419 = vmul.f32 %v390, %v412
          %v420 = vmul.f32 %v391, %v412
          %v421 = vmul.f32 %v392, %v412
          %v422 = vmul.f32 %v393, %v412
          %v423 = vmul.f32 %v394, %v412
          %v424 = vmul.f32 %v395, %v412
          %v425 = vmul.f32 %v396, %v412
          %v426 = vmul.f32 %v397, %v412
          %v427 = vmul.f32 %v398, %v412
          %v428 = vmul.f32 %v399, %v412
          %v429 = vmul.f32 %v400, %v412
          %v430 = vmul.f32 %v401, %v412
          %v431 = vmul.f32 %v402, %v412
          %v432 = vmul.f32 %v403, %v412
          %v433 = vmul.f32 %v404, %v412
          %v434 = vmul.f32 %v405, %v412
          %v435 = vmul.f32 %v406, %v412
          %v436 = vmul.f32 %v407, %v412
          %s437 = sadd.s32 %s381, 1
          %s438 = smul.u32 %s437, 24
          %s439 = scalar_lea.vmem [#allocation2], %s438
          %v440 = vld [vmem:[%s439] sm:$0xff]
          %v441 = vld [vmem:[%s439 + $0x8] sm:$0xff]
          %v442 = vld [vmem:[%s439 + $0x10] sm:$0xff]
          %v443 = vld [vmem:[%s439 + $0x18] sm:$0xff]
          %v444 = vld [vmem:[%s439 + $0x20] sm:$0xff]
          %v445 = vld [vmem:[%s439 + $0x28] sm:$0xff]
          %v446 = vld [vmem:[%s439 + $0x30] sm:$0xff]
          %v447 = vld [vmem:[%s439 + $0x38] sm:$0xff]
          %v448 = vld [vmem:[%s439 + $0x40] sm:$0xff]
          %v449 = vld [vmem:[%s439 + $0x48] sm:$0xff]
          %v450 = vld [vmem:[%s439 + $0x50] sm:$0xff]
          %v451 = vld [vmem:[%s439 + $0x58] sm:$0xff]
          %v452 = vld [vmem:[%s439 + $0x60] sm:$0xff]
          %v453 = vld [vmem:[%s439 + $0x68] sm:$0xff]
          %v454 = vld [vmem:[%s439 + $0x70] sm:$0xff]
          %v455 = vld [vmem:[%s439 + $0x78] sm:$0xff]
          %v456 = vld [vmem:[%s439 + $0x80] sm:$0xff]
          %v457 = vld [vmem:[%s439 + $0x88] sm:$0xff]
          %v458 = vld [vmem:[%s439 + $0x90] sm:$0xff]
          %v459 = vld [vmem:[%s439 + $0x98] sm:$0xff]
          %v460 = vld [vmem:[%s439 + $0xa0] sm:$0xff]
          %v461 = vld [vmem:[%s439 + $0xa8] sm:$0xff]
          %v462 = vld [vmem:[%s439 + $0xb0] sm:$0xff]
          %v463 = vld [vmem:[%s439 + $0xb8] sm:$0xff]
          %v464 = vld [vmem:[#allocation6 + $0x7] sm:$0x1]
          %v465 = vlaneseq
          %v466 = vshrl.u32 %v465, 7
          %v467 = vsub.s32 0, %v466
          %v468 = vrot.slane %v464, %v467
          %v469 = vmul.f32 %v440, %v468
          %v470 = vmul.f32 %v441, %v468
          %v471 = vmul.f32 %v442, %v468
          %v472 = vmul.f32 %v443, %v468
          %v473 = vmul.f32 %v444, %v468
          %v474 = vmul.f32 %v445, %v468
          %v475 = vmul.f32 %v446, %v468
          %v476 = vmul.f32 %v447, %v468
          %v477 = vmul.f32 %v448, %v468
          %v478 = vmul.f32 %v449, %v468
          %v479 = vmul.f32 %v450, %v468
          %v480 = vmul.f32 %v451, %v468
          %v481 = vmul.f32 %v452, %v468
          %v482 = vmul.f32 %v453, %v468
          %v483 = vmul.f32 %v454, %v468
          %v484 = vmul.f32 %v455, %v468
          %v485 = vmul.f32 %v456, %v468
          %v486 = vmul.f32 %v457, %v468
          %v487 = vmul.f32 %v458, %v468
          %v488 = vmul.f32 %v459, %v468
          %v489 = vmul.f32 %v460, %v468
          %v490 = vmul.f32 %v461, %v468
          %v491 = vmul.f32 %v462, %v468
          %v492 = vmul.f32 %v463, %v468
          %v493 = vadd.f32 %v413, %v469
          %v494 = vadd.f32 %v414, %v470
          %v495 = vadd.f32 %v415, %v471
          %v496 = vadd.f32 %v416, %v472
          %v497 = vadd.f32 %v417, %v473
          %v498 = vadd.f32 %v418, %v474
          %v499 = vadd.f32 %v419, %v475
          %v500 = vadd.f32 %v420, %v476
          %v501 = vadd.f32 %v421, %v477
          %v502 = vadd.f32 %v422, %v478
          %v503 = vadd.f32 %v423, %v479
          %v504 = vadd.f32 %v424, %v480
          %v505 = vadd.f32 %v425, %v481
          %v506 = vadd.f32 %v426, %v482
          %v507 = vadd.f32 %v427, %v483
          %v508 = vadd.f32 %v428, %v484
          %v509 = vadd.f32 %v429, %v485
          %v510 = vadd.f32 %v430, %v486
          %v511 = vadd.f32 %v431, %v487
          %v512 = vadd.f32 %v432, %v488
          %v513 = vadd.f32 %v433, %v489
          %v514 = vadd.f32 %v434, %v490
          %v515 = vadd.f32 %v435, %v491
          %v516 = vadd.f32 %v436, %v492
          %s517 = sadd.s32 %s381, 2
          %s518 = smul.u32 %s517, 24
          %s519 = scalar_lea.vmem [#allocation2], %s518
          %v520 = vld [vmem:[%s519] sm:$0xff]
          %v521 = vld [vmem:[%s519 + $0x8] sm:$0xff]
          %v522 = vld [vmem:[%s519 + $0x10] sm:$0xff]
          %v523 = vld [vmem:[%s519 + $0x18] sm:$0xff]
          %v524 = vld [vmem:[%s519 + $0x20] sm:$0xff]
          %v525 = vld [vmem:[%s519 + $0x28] sm:$0xff]
          %v526 = vld [vmem:[%s519 + $0x30] sm:$0xff]
          %v527 = vld [vmem:[%s519 + $0x38] sm:$0xff]
          %v528 = vld [vmem:[%s519 + $0x40] sm:$0xff]
          %v529 = vld [vmem:[%s519 + $0x48] sm:$0xff]
          %v530 = vld [vmem:[%s519 + $0x50] sm:$0xff]
          %v531 = vld [vmem:[%s519 + $0x58] sm:$0xff]
          %v532 = vld [vmem:[%s519 + $0x60] sm:$0xff]
          %v533 = vld [vmem:[%s519 + $0x68] sm:$0xff]
          %v534 = vld [vmem:[%s519 + $0x70] sm:$0xff]
          %v535 = vld [vmem:[%s519 + $0x78] sm:$0xff]
          %v536 = vld [vmem:[%s519 + $0x80] sm:$0xff]
          %v537 = vld [vmem:[%s519 + $0x88] sm:$0xff]
          %v538 = vld [vmem:[%s519 + $0x90] sm:$0xff]
          %v539 = vld [vmem:[%s519 + $0x98] sm:$0xff]
          %v540 = vld [vmem:[%s519 + $0xa0] sm:$0xff]
          %v541 = vld [vmem:[%s519 + $0xa8] sm:$0xff]
          %v542 = vld [vmem:[%s519 + $0xb0] sm:$0xff]
          %v543 = vld [vmem:[%s519 + $0xb8] sm:$0xff]
          %v544 = vld [vmem:[#allocation6 + $0xe] sm:$0x1]
          %v545 = vlaneseq
          %v546 = vshrl.u32 %v545, 7
          %v547 = vsub.s32 0, %v546
          %v548 = vrot.slane %v544, %v547
          %v549 = vmul.f32 %v520, %v548
          %v550 = vmul.f32 %v521, %v548
          %v551 = vmul.f32 %v522, %v548
          %v552 = vmul.f32 %v523, %v548
          %v553 = vmul.f32 %v524, %v548
          %v554 = vmul.f32 %v525, %v548
          %v555 = vmul.f32 %v526, %v548
          %v556 = vmul.f32 %v527, %v548
          %v557 = vmul.f32 %v528, %v548
          %v558 = vmul.f32 %v529, %v548
          %v559 = vmul.f32 %v530, %v548
          %v560 = vmul.f32 %v531, %v548
          %v561 = vmul.f32 %v532, %v548
          %v562 = vmul.f32 %v533, %v548
          %v563 = vmul.f32 %v534, %v548
          %v564 = vmul.f32 %v535, %v548
          %v565 = vmul.f32 %v536, %v548
          %v566 = vmul.f32 %v537, %v548
          %v567 = vmul.f32 %v538, %v548
          %v568 = vmul.f32 %v539, %v548
          %v569 = vmul.f32 %v540, %v548
          %v570 = vmul.f32 %v541, %v548
          %v571 = vmul.f32 %v542, %v548
          %v572 = vmul.f32 %v543, %v548
          %v573 = vadd.f32 %v493, %v549
          %v574 = vadd.f32 %v494, %v550
          %v575 = vadd.f32 %v495, %v551
          %v576 = vadd.f32 %v496, %v552
          %v577 = vadd.f32 %v497, %v553
          %v578 = vadd.f32 %v498, %v554
          %v579 = vadd.f32 %v499, %v555
          %v580 = vadd.f32 %v500, %v556
          %v581 = vadd.f32 %v501, %v557
          %v582 = vadd.f32 %v502, %v558
          %v583 = vadd.f32 %v503, %v559
          %v584 = vadd.f32 %v504, %v560
          %v585 = vadd.f32 %v505, %v561
          %v586 = vadd.f32 %v506, %v562
          %v587 = vadd.f32 %v507, %v563
          %v588 = vadd.f32 %v508, %v564
          %v589 = vadd.f32 %v509, %v565
          %v590 = vadd.f32 %v510, %v566
          %v591 = vadd.f32 %v511, %v567
          %v592 = vadd.f32 %v512, %v568
          %v593 = vadd.f32 %v513, %v569
          %v594 = vadd.f32 %v514, %v570
          %v595 = vadd.f32 %v515, %v571
          %v596 = vadd.f32 %v516, %v572
          %s597 = sadd.s32 %s381, 3
          %s598 = smul.u32 %s597, 24
          %s599 = scalar_lea.vmem [#allocation2], %s598
          %v600 = vld [vmem:[%s599] sm:$0xff]
          %v601 = vld [vmem:[%s599 + $0x8] sm:$0xff]
          %v602 = vld [vmem:[%s599 + $0x10] sm:$0xff]
          %v603 = vld [vmem:[%s599 + $0x18] sm:$0xff]
          %v604 = vld [vmem:[%s599 + $0x20] sm:$0xff]
          %v605 = vld [vmem:[%s599 + $0x28] sm:$0xff]
          %v606 = vld [vmem:[%s599 + $0x30] sm:$0xff]
          %v607 = vld [vmem:[%s599 + $0x38] sm:$0xff]
          %v608 = vld [vmem:[%s599 + $0x40] sm:$0xff]
          %v609 = vld [vmem:[%s599 + $0x48] sm:$0xff]
          %v610 = vld [vmem:[%s599 + $0x50] sm:$0xff]
          %v611 = vld [vmem:[%s599 + $0x58] sm:$0xff]
          %v612 = vld [vmem:[%s599 + $0x60] sm:$0xff]
          %v613 = vld [vmem:[%s599 + $0x68] sm:$0xff]
          %v614 = vld [vmem:[%s599 + $0x70] sm:$0xff]
          %v615 = vld [vmem:[%s599 + $0x78] sm:$0xff]
          %v616 = vld [vmem:[%s599 + $0x80] sm:$0xff]
          %v617 = vld [vmem:[%s599 + $0x88] sm:$0xff]
          %v618 = vld [vmem:[%s599 + $0x90] sm:$0xff]
          %v619 = vld [vmem:[%s599 + $0x98] sm:$0xff]
          %v620 = vld [vmem:[%s599 + $0xa0] sm:$0xff]
          %v621 = vld [vmem:[%s599 + $0xa8] sm:$0xff]
          %v622 = vld [vmem:[%s599 + $0xb0] sm:$0xff]
          %v623 = vld [vmem:[%s599 + $0xb8] sm:$0xff]
          %v624 = vld [vmem:[#allocation6 + $0x15] sm:$0x1]
          %v625 = vlaneseq
          %v626 = vshrl.u32 %v625, 7
          %v627 = vsub.s32 0, %v626
          %v628 = vrot.slane %v624, %v627
          %v629 = vmul.f32 %v600, %v628
          %v630 = vmul.f32 %v601, %v628
          %v631 = vmul.f32 %v602, %v628
          %v632 = vmul.f32 %v603, %v628
          %v633 = vmul.f32 %v604, %v628
          %v634 = vmul.f32 %v605, %v628
          %v635 = vmul.f32 %v606, %v628
          %v636 = vmul.f32 %v607, %v628
          %v637 = vmul.f32 %v608, %v628
          %v638 = vmul.f32 %v609, %v628
          %v639 = vmul.f32 %v610, %v628
          %v640 = vmul.f32 %v611, %v628
          %v641 = vmul.f32 %v612, %v628
          %v642 = vmul.f32 %v613, %v628
          %v643 = vmul.f32 %v614, %v628
          %v644 = vmul.f32 %v615, %v628
          %v645 = vmul.f32 %v616, %v628
          %v646 = vmul.f32 %v617, %v628
          %v647 = vmul.f32 %v618, %v628
          %v648 = vmul.f32 %v619, %v628
          %v649 = vmul.f32 %v620, %v628
          %v650 = vmul.f32 %v621, %v628
          %v651 = vmul.f32 %v622, %v628
          %v652 = vmul.f32 %v623, %v628
          %v653 = vadd.f32 %v573, %v629
          %v654 = vadd.f32 %v574, %v630
          %v655 = vadd.f32 %v575, %v631
          %v656 = vadd.f32 %v576, %v632
          %v657 = vadd.f32 %v577, %v633
          %v658 = vadd.f32 %v578, %v634
          %v659 = vadd.f32 %v579, %v635
          %v660 = vadd.f32 %v580, %v636
          %v661 = vadd.f32 %v581, %v637
          %v662 = vadd.f32 %v582, %v638
          %v663 = vadd.f32 %v583, %v639
          %v664 = vadd.f32 %v584, %v640
          %v665 = vadd.f32 %v585, %v641
          %v666 = vadd.f32 %v586, %v642
          %v667 = vadd.f32 %v587, %v643
          %v668 = vadd.f32 %v588, %v644
          %v669 = vadd.f32 %v589, %v645
          %v670 = vadd.f32 %v590, %v646
          %v671 = vadd.f32 %v591, %v647
          %v672 = vadd.f32 %v592, %v648
          %v673 = vadd.f32 %v593, %v649
          %v674 = vadd.f32 %v594, %v650
          %v675 = vadd.f32 %v595, %v651
          %v676 = vadd.f32 %v596, %v652
          %s677 = sadd.s32 %s381, 4
          %s678 = smul.u32 %s677, 24
          %s679 = scalar_lea.vmem [#allocation2], %s678
          %v680 = vld [vmem:[%s679] sm:$0xff]
          %v681 = vld [vmem:[%s679 + $0x8] sm:$0xff]
          %v682 = vld [vmem:[%s679 + $0x10] sm:$0xff]
          %v683 = vld [vmem:[%s679 + $0x18] sm:$0xff]
          %v684 = vld [vmem:[%s679 + $0x20] sm:$0xff]
          %v685 = vld [vmem:[%s679 + $0x28] sm:$0xff]
          %v686 = vld [vmem:[%s679 + $0x30] sm:$0xff]
          %v687 = vld [vmem:[%s679 + $0x38] sm:$0xff]
          %v688 = vld [vmem:[%s679 + $0x40] sm:$0xff]
          %v689 = vld [vmem:[%s679 + $0x48] sm:$0xff]
          %v690 = vld [vmem:[%s679 + $0x50] sm:$0xff]
          %v691 = vld [vmem:[%s679 + $0x58] sm:$0xff]
          %v692 = vld [vmem:[%s679 + $0x60] sm:$0xff]
          %v693 = vld [vmem:[%s679 + $0x68] sm:$0xff]
          %v694 = vld [vmem:[%s679 + $0x70] sm:$0xff]
          %v695 = vld [vmem:[%s679 + $0x78] sm:$0xff]
          %v696 = vld [vmem:[%s679 + $0x80] sm:$0xff]
          %v697 = vld [vmem:[%s679 + $0x88] sm:$0xff]
          %v698 = vld [vmem:[%s679 + $0x90] sm:$0xff]
          %v699 = vld [vmem:[%s679 + $0x98] sm:$0xff]
          %v700 = vld [vmem:[%s679 + $0xa0] sm:$0xff]
          %v701 = vld [vmem:[%s679 + $0xa8] sm:$0xff]
          %v702 = vld [vmem:[%s679 + $0xb0] sm:$0xff]
          %v703 = vld [vmem:[%s679 + $0xb8] sm:$0xff]
          %v704 = vld [vmem:[#allocation6 + $0x1c] sm:$0x1]
          %v705 = vlaneseq
          %v706 = vshrl.u32 %v705, 7
          %v707 = vsub.s32 0, %v706
          %v708 = vrot.slane %v704, %v707
          %v709 = vmul.f32 %v680, %v708
          %v710 = vmul.f32 %v681, %v708
          %v711 = vmul.f32 %v682, %v708
          %v712 = vmul.f32 %v683, %v708
          %v713 = vmul.f32 %v684, %v708
          %v714 = vmul.f32 %v685, %v708
          %v715 = vmul.f32 %v686, %v708
          %v716 = vmul.f32 %v687, %v708
          %v717 = vmul.f32 %v688, %v708
          %v718 = vmul.f32 %v689, %v708
          %v719 = vmul.f32 %v690, %v708
          %v720 = vmul.f32 %v691, %v708
          %v721 = vmul.f32 %v692, %v708
          %v722 = vmul.f32 %v693, %v708
          %v723 = vmul.f32 %v694, %v708
          %v724 = vmul.f32 %v695, %v708
          %v725 = vmul.f32 %v696, %v708
          %v726 = vmul.f32 %v697, %v708
          %v727 = vmul.f32 %v698, %v708
          %v728 = vmul.f32 %v699, %v708
          %v729 = vmul.f32 %v700, %v708
          %v730 = vmul.f32 %v701, %v708
          %v731 = vmul.f32 %v702, %v708
          %v732 = vmul.f32 %v703, %v708
          %v733 = vadd.f32 %v653, %v709
          %v734 = vadd.f32 %v654, %v710
          %v735 = vadd.f32 %v655, %v711
          %v736 = vadd.f32 %v656, %v712
          %v737 = vadd.f32 %v657, %v713
          %v738 = vadd.f32 %v658, %v714
          %v739 = vadd.f32 %v659, %v715
          %v740 = vadd.f32 %v660, %v716
          %v741 = vadd.f32 %v661, %v717
          %v742 = vadd.f32 %v662, %v718
          %v743 = vadd.f32 %v663, %v719
          %v744 = vadd.f32 %v664, %v720
          %v745 = vadd.f32 %v665, %v721
          %v746 = vadd.f32 %v666, %v722
          %v747 = vadd.f32 %v667, %v723
          %v748 = vadd.f32 %v668, %v724
          %v749 = vadd.f32 %v669, %v725
          %v750 = vadd.f32 %v670, %v726
          %v751 = vadd.f32 %v671, %v727
          %v752 = vadd.f32 %v672, %v728
          %v753 = vadd.f32 %v673, %v729
          %v754 = vadd.f32 %v674, %v730
          %v755 = vadd.f32 %v675, %v731
          %v756 = vadd.f32 %v676, %v732
          %s757 = sadd.s32 %s381, 5
          %s758 = smul.u32 %s757, 24
          %s759 = scalar_lea.vmem [#allocation2], %s758
          %v760 = vld [vmem:[%s759] sm:$0xff]
          %v761 = vld [vmem:[%s759 + $0x8] sm:$0xff]
          %v762 = vld [vmem:[%s759 + $0x10] sm:$0xff]
          %v763 = vld [vmem:[%s759 + $0x18] sm:$0xff]
          %v764 = vld [vmem:[%s759 + $0x20] sm:$0xff]
          %v765 = vld [vmem:[%s759 + $0x28] sm:$0xff]
          %v766 = vld [vmem:[%s759 + $0x30] sm:$0xff]
          %v767 = vld [vmem:[%s759 + $0x38] sm:$0xff]
          %v768 = vld [vmem:[%s759 + $0x40] sm:$0xff]
          %v769 = vld [vmem:[%s759 + $0x48] sm:$0xff]
          %v770 = vld [vmem:[%s759 + $0x50] sm:$0xff]
          %v771 = vld [vmem:[%s759 + $0x58] sm:$0xff]
          %v772 = vld [vmem:[%s759 + $0x60] sm:$0xff]
          %v773 = vld [vmem:[%s759 + $0x68] sm:$0xff]
          %v774 = vld [vmem:[%s759 + $0x70] sm:$0xff]
          %v775 = vld [vmem:[%s759 + $0x78] sm:$0xff]
          %v776 = vld [vmem:[%s759 + $0x80] sm:$0xff]
          %v777 = vld [vmem:[%s759 + $0x88] sm:$0xff]
          %v778 = vld [vmem:[%s759 + $0x90] sm:$0xff]
          %v779 = vld [vmem:[%s759 + $0x98] sm:$0xff]
          %v780 = vld [vmem:[%s759 + $0xa0] sm:$0xff]
          %v781 = vld [vmem:[%s759 + $0xa8] sm:$0xff]
          %v782 = vld [vmem:[%s759 + $0xb0] sm:$0xff]
          %v783 = vld [vmem:[%s759 + $0xb8] sm:$0xff]
          %v784 = vld [vmem:[#allocation6 + $0x23] sm:$0x1]
          %v785 = vlaneseq
          %v786 = vshrl.u32 %v785, 7
          %v787 = vsub.s32 0, %v786
          %v788 = vrot.slane %v784, %v787
          %v789 = vmul.f32 %v760, %v788
          %v790 = vmul.f32 %v761, %v788
          %v791 = vmul.f32 %v762, %v788
          %v792 = vmul.f32 %v763, %v788
          %v793 = vmul.f32 %v764, %v788
          %v794 = vmul.f32 %v765, %v788
          %v795 = vmul.f32 %v766, %v788
          %v796 = vmul.f32 %v767, %v788
          %v797 = vmul.f32 %v768, %v788
          %v798 = vmul.f32 %v769, %v788
          %v799 = vmul.f32 %v770, %v788
          %v800 = vmul.f32 %v771, %v788
          %v801 = vmul.f32 %v772, %v788
          %v802 = vmul.f32 %v773, %v788
          %v803 = vmul.f32 %v774, %v788
          %v804 = vmul.f32 %v775, %v788
          %v805 = vmul.f32 %v776, %v788
          %v806 = vmul.f32 %v777, %v788
          %v807 = vmul.f32 %v778, %v788
          %v808 = vmul.f32 %v779, %v788
          %v809 = vmul.f32 %v780, %v788
          %v810 = vmul.f32 %v781, %v788
          %v811 = vmul.f32 %v782, %v788
          %v812 = vmul.f32 %v783, %v788
          %v813 = vadd.f32 %v733, %v789
          %v814 = vadd.f32 %v734, %v790
          %v815 = vadd.f32 %v735, %v791
          %v816 = vadd.f32 %v736, %v792
          %v817 = vadd.f32 %v737, %v793
          %v818 = vadd.f32 %v738, %v794
          %v819 = vadd.f32 %v739, %v795
          %v820 = vadd.f32 %v740, %v796
          %v821 = vadd.f32 %v741, %v797
          %v822 = vadd.f32 %v742, %v798
          %v823 = vadd.f32 %v743, %v799
          %v824 = vadd.f32 %v744, %v800
          %v825 = vadd.f32 %v745, %v801
          %v826 = vadd.f32 %v746, %v802
          %v827 = vadd.f32 %v747, %v803
          %v828 = vadd.f32 %v748, %v804
          %v829 = vadd.f32 %v749, %v805
          %v830 = vadd.f32 %v750, %v806
          %v831 = vadd.f32 %v751, %v807
          %v832 = vadd.f32 %v752, %v808
          %v833 = vadd.f32 %v753, %v809
          %v834 = vadd.f32 %v754, %v810
          %v835 = vadd.f32 %v755, %v811
          %v836 = vadd.f32 %v756, %v812
          %s837 = sadd.s32 %s381, 6
          %s838 = smul.u32 %s837, 24
          %s839 = scalar_lea.vmem [#allocation2], %s838
          %v840 = vld [vmem:[%s839] sm:$0xff]
          %v841 = vld [vmem:[%s839 + $0x8] sm:$0xff]
          %v842 = vld [vmem:[%s839 + $0x10] sm:$0xff]
          %v843 = vld [vmem:[%s839 + $0x18] sm:$0xff]
          %v844 = vld [vmem:[%s839 + $0x20] sm:$0xff]
          %v845 = vld [vmem:[%s839 + $0x28] sm:$0xff]
          %v846 = vld [vmem:[%s839 + $0x30] sm:$0xff]
          %v847 = vld [vmem:[%s839 + $0x38] sm:$0xff]
          %v848 = vld [vmem:[%s839 + $0x40] sm:$0xff]
          %v849 = vld [vmem:[%s839 + $0x48] sm:$0xff]
          %v850 = vld [vmem:[%s839 + $0x50] sm:$0xff]
          %v851 = vld [vmem:[%s839 + $0x58] sm:$0xff]
          %v852 = vld [vmem:[%s839 + $0x60] sm:$0xff]
          %v853 = vld [vmem:[%s839 + $0x68] sm:$0xff]
          %v854 = vld [vmem:[%s839 + $0x70] sm:$0xff]
          %v855 = vld [vmem:[%s839 + $0x78] sm:$0xff]
          %v856 = vld [vmem:[%s839 + $0x80] sm:$0xff]
          %v857 = vld [vmem:[%s839 + $0x88] sm:$0xff]
          %v858 = vld [vmem:[%s839 + $0x90] sm:$0xff]
          %v859 = vld [vmem:[%s839 + $0x98] sm:$0xff]
          %v860 = vld [vmem:[%s839 + $0xa0] sm:$0xff]
          %v861 = vld [vmem:[%s839 + $0xa8] sm:$0xff]
          %v862 = vld [vmem:[%s839 + $0xb0] sm:$0xff]
          %v863 = vld [vmem:[%s839 + $0xb8] sm:$0xff]
          %v864 = vld [vmem:[#allocation6 + $0x2a] sm:$0x1]
          %v865 = vlaneseq
          %v866 = vshrl.u32 %v865, 7
          %v867 = vsub.s32 0, %v866
          %v868 = vrot.slane %v864, %v867
          %v869 = vmul.f32 %v840, %v868
          %v870 = vmul.f32 %v841, %v868
          %v871 = vmul.f32 %v842, %v868
          %v872 = vmul.f32 %v843, %v868
          %v873 = vmul.f32 %v844, %v868
          %v874 = vmul.f32 %v845, %v868
          %v875 = vmul.f32 %v846, %v868
          %v876 = vmul.f32 %v847, %v868
          %v877 = vmul.f32 %v848, %v868
          %v878 = vmul.f32 %v849, %v868
          %v879 = vmul.f32 %v850, %v868
          %v880 = vmul.f32 %v851, %v868
          %v881 = vmul.f32 %v852, %v868
          %v882 = vmul.f32 %v853, %v868
          %v883 = vmul.f32 %v854, %v868
          %v884 = vmul.f32 %v855, %v868
          %v885 = vmul.f32 %v856, %v868
          %v886 = vmul.f32 %v857, %v868
          %v887 = vmul.f32 %v858, %v868
          %v888 = vmul.f32 %v859, %v868
          %v889 = vmul.f32 %v860, %v868
          %v890 = vmul.f32 %v861, %v868
          %v891 = vmul.f32 %v862, %v868
          %v892 = vmul.f32 %v863, %v868
          %v893 = vadd.f32 %v813, %v869
          %v894 = vadd.f32 %v814, %v870
          %v895 = vadd.f32 %v815, %v871
          %v896 = vadd.f32 %v816, %v872
          %v897 = vadd.f32 %v817, %v873
          %v898 = vadd.f32 %v818, %v874
          %v899 = vadd.f32 %v819, %v875
          %v900 = vadd.f32 %v820, %v876
          %v901 = vadd.f32 %v821, %v877
          %v902 = vadd.f32 %v822, %v878
          %v903 = vadd.f32 %v823, %v879
          %v904 = vadd.f32 %v824, %v880
          %v905 = vadd.f32 %v825, %v881
          %v906 = vadd.f32 %v826, %v882
          %v907 = vadd.f32 %v827, %v883
          %v908 = vadd.f32 %v828, %v884
          %v909 = vadd.f32 %v829, %v885
          %v910 = vadd.f32 %v830, %v886
          %v911 = vadd.f32 %v831, %v887
          %v912 = vadd.f32 %v832, %v888
          %v913 = vadd.f32 %v833, %v889
          %v914 = vadd.f32 %v834, %v890
          %v915 = vadd.f32 %v835, %v891
          %v916 = vadd.f32 %v836, %v892
          %v917 = vrot.slane %v893, 5
          %v918 = vrot.slane %v896, 5
          %v919 = vrot.slane %v899, 5
          %v920 = vrot.slane %v902, 5
          %v921 = vrot.slane %v905, 5
          %v922 = vrot.slane %v908, 5
          %v923 = vrot.slane %v911, 5
          %v924 = vrot.slane %v914, 5
          %v925 = vrot.slane %v894, 5
          %v926 = vrot.slane %v897, 5
          %v927 = vrot.slane %v900, 5
          %v928 = vrot.slane %v903, 5
          %v929 = vrot.slane %v906, 5
          %v930 = vrot.slane %v909, 5
          %v931 = vrot.slane %v912, 5
          %v932 = vrot.slane %v915, 5
          %v933 = vrot.slane %v895, 5
          %v934 = vrot.slane %v898, 5
          %v935 = vrot.slane %v901, 5
          %v936 = vrot.slane %v904, 5
          %v937 = vrot.slane %v907, 5
          %v938 = vrot.slane %v910, 5
          %v939 = vrot.slane %v913, 5
          %v940 = vrot.slane %v916, 5
          %v941 = vlaneseq
          %v942 = vshrl.u32 %v941, 7
          %vm943 = vcmp.lt.s32.totalorder %v942, 3
          %v944 = vsel %vm943, %v917, %v925
          %v945 = vsel %vm943, %v918, %v926
          %v946 = vsel %vm943, %v919, %v927
          %v947 = vsel %vm943, %v920, %v928
          %v948 = vsel %vm943, %v921, %v929
          %v949 = vsel %vm943, %v922, %v930
          %v950 = vsel %vm943, %v923, %v931
          %v951 = vsel %vm943, %v924, %v932
          %v952 = vsel %vm943, %v933, %v917
          %v953 = vsel %vm943, %v934, %v918
          %v954 = vsel %vm943, %v935, %v919
          %v955 = vsel %vm943, %v936, %v920
          %v956 = vsel %vm943, %v937, %v921
          %v957 = vsel %vm943, %v938, %v922
          %v958 = vsel %vm943, %v939, %v923
          %v959 = vsel %vm943, %v940, %v924
          %v960 = vld [vmem:[#allocation6 + $0x1] sm:$0x1]
          %v961 = vlaneseq
          %v962 = vshrl.u32 %v961, 7
          %v963 = vsub.s32 0, %v962
          %v964 = vrot.slane %v960, %v963
          %v965 = vmul.f32 %v384, %v964
          %v966 = vmul.f32 %v385, %v964
          %v967 = vmul.f32 %v386, %v964
          %v968 = vmul.f32 %v387, %v964
          %v969 = vmul.f32 %v388, %v964
          %v970 = vmul.f32 %v389, %v964
          %v971 = vmul.f32 %v390, %v964
          %v972 = vmul.f32 %v391, %v964
          %v973 = vmul.f32 %v392, %v964
          %v974 = vmul.f32 %v393, %v964
          %v975 = vmul.f32 %v394, %v964
          %v976 = vmul.f32 %v395, %v964
          %v977 = vmul.f32 %v396, %v964
          %v978 = vmul.f32 %v397, %v964
          %v979 = vmul.f32 %v398, %v964
          %v980 = vmul.f32 %v399, %v964
          %v981 = vmul.f32 %v400, %v964
          %v982 = vmul.f32 %v401, %v964
          %v983 = vmul.f32 %v402, %v964
          %v984 = vmul.f32 %v403, %v964
          %v985 = vmul.f32 %v404, %v964
          %v986 = vmul.f32 %v405, %v964
          %v987 = vmul.f32 %v406, %v964
          %v988 = vmul.f32 %v407, %v964
          %v989 = vld [vmem:[#allocation6 + $0x8] sm:$0x1]
          %v990 = vlaneseq
          %v991 = vshrl.u32 %v990, 7
          %v992 = vsub.s32 0, %v991
          %v993 = vrot.slane %v989, %v992
          %v994 = vmul.f32 %v440, %v993
          %v995 = vmul.f32 %v441, %v993
          %v996 = vmul.f32 %v442, %v993
          %v997 = vmul.f32 %v443, %v993
          %v998 = vmul.f32 %v444, %v993
          %v999 = vmul.f32 %v445, %v993
          %v1000 = vmul.f32 %v446, %v993
          %v1001 = vmul.f32 %v447, %v993
          %v1002 = vmul.f32 %v448, %v993
          %v1003 = vmul.f32 %v449, %v993
          %v1004 = vmul.f32 %v450, %v993
          %v1005 = vmul.f32 %v451, %v993
          %v1006 = vmul.f32 %v452, %v993
          %v1007 = vmul.f32 %v453, %v993
          %v1008 = vmul.f32 %v454, %v993
          %v1009 = vmul.f32 %v455, %v993
          %v1010 = vmul.f32 %v456, %v993
          %v1011 = vmul.f32 %v457, %v993
          %v1012 = vmul.f32 %v458, %v993
          %v1013 = vmul.f32 %v459, %v993
          %v1014 = vmul.f32 %v460, %v993
          %v1015 = vmul.f32 %v461, %v993
          %v1016 = vmul.f32 %v462, %v993
          %v1017 = vmul.f32 %v463, %v993
          %v1018 = vadd.f32 %v965, %v994
          %v1019 = vadd.f32 %v966, %v995
          %v1020 = vadd.f32 %v967, %v996
          %v1021 = vadd.f32 %v968, %v997
          %v1022 = vadd.f32 %v969, %v998
          %v1023 = vadd.f32 %v970, %v999
          %v1024 = vadd.f32 %v971, %v1000
          %v1025 = vadd.f32 %v972, %v1001
          %v1026 = vadd.f32 %v973, %v1002
          %v1027 = vadd.f32 %v974, %v1003
          %v1028 = vadd.f32 %v975, %v1004
          %v1029 = vadd.f32 %v976, %v1005
          %v1030 = vadd.f32 %v977, %v1006
          %v1031 = vadd.f32 %v978, %v1007
          %v1032 = vadd.f32 %v979, %v1008
          %v1033 = vadd.f32 %v980, %v1009
          %v1034 = vadd.f32 %v981, %v1010
          %v1035 = vadd.f32 %v982, %v1011
          %v1036 = vadd.f32 %v983, %v1012
          %v1037 = vadd.f32 %v984, %v1013
          %v1038 = vadd.f32 %v985, %v1014
          %v1039 = vadd.f32 %v986, %v1015
          %v1040 = vadd.f32 %v987, %v1016
          %v1041 = vadd.f32 %v988, %v1017
          %v1042 = vld [vmem:[#allocation6 + $0xf] sm:$0x1]
          %v1043 = vlaneseq
          %v1044 = vshrl.u32 %v1043, 7
          %v1045 = vsub.s32 0, %v1044
          %v1046 = vrot.slane %v1042, %v1045
          %v1047 = vmul.f32 %v520, %v1046
          %v1048 = vmul.f32 %v521, %v1046
          %v1049 = vmul.f32 %v522, %v1046
          %v1050 = vmul.f32 %v523, %v1046
          %v1051 = vmul.f32 %v524, %v1046
          %v1052 = vmul.f32 %v525, %v1046
          %v1053 = vmul.f32 %v526, %v1046
          %v1054 = vmul.f32 %v527, %v1046
          %v1055 = vmul.f32 %v528, %v1046
          %v1056 = vmul.f32 %v529, %v1046
          %v1057 = vmul.f32 %v530, %v1046
          %v1058 = vmul.f32 %v531, %v1046
          %v1059 = vmul.f32 %v532, %v1046
          %v1060 = vmul.f32 %v533, %v1046
          %v1061 = vmul.f32 %v534, %v1046
          %v1062 = vmul.f32 %v535, %v1046
          %v1063 = vmul.f32 %v536, %v1046
          %v1064 = vmul.f32 %v537, %v1046
          %v1065 = vmul.f32 %v538, %v1046
          %v1066 = vmul.f32 %v539, %v1046
          %v1067 = vmul.f32 %v540, %v1046
          %v1068 = vmul.f32 %v541, %v1046
          %v1069 = vmul.f32 %v542, %v1046
          %v1070 = vmul.f32 %v543, %v1046
          %v1071 = vadd.f32 %v1018, %v1047
          %v1072 = vadd.f32 %v1019, %v1048
          %v1073 = vadd.f32 %v1020, %v1049
          %v1074 = vadd.f32 %v1021, %v1050
          %v1075 = vadd.f32 %v1022, %v1051
          %v1076 = vadd.f32 %v1023, %v1052
          %v1077 = vadd.f32 %v1024, %v1053
          %v1078 = vadd.f32 %v1025, %v1054
          %v1079 = vadd.f32 %v1026, %v1055
          %v1080 = vadd.f32 %v1027, %v1056
          %v1081 = vadd.f32 %v1028, %v1057
          %v1082 = vadd.f32 %v1029, %v1058
          %v1083 = vadd.f32 %v1030, %v1059
          %v1084 = vadd.f32 %v1031, %v1060
          %v1085 = vadd.f32 %v1032, %v1061
          %v1086 = vadd.f32 %v1033, %v1062
          %v1087 = vadd.f32 %v1034, %v1063
          %v1088 = vadd.f32 %v1035, %v1064
          %v1089 = vadd.f32 %v1036, %v1065
          %v1090 = vadd.f32 %v1037, %v1066
          %v1091 = vadd.f32 %v1038, %v1067
          %v1092 = vadd.f32 %v1039, %v1068
          %v1093 = vadd.f32 %v1040, %v1069
          %v1094 = vadd.f32 %v1041, %v1070
          %v1095 = vld [vmem:[#allocation6 + $0x16] sm:$0x1]
          %v1096 = vlaneseq
          %v1097 = vshrl.u32 %v1096, 7
          %v1098 = vsub.s32 0, %v1097
          %v1099 = vrot.slane %v1095, %v1098
          %v1100 = vmul.f32 %v600, %v1099
          %v1101 = vmul.f32 %v601, %v1099
          %v1102 = vmul.f32 %v602, %v1099
          %v1103 = vmul.f32 %v603, %v1099
          %v1104 = vmul.f32 %v604, %v1099
          %v1105 = vmul.f32 %v605, %v1099
          %v1106 = vmul.f32 %v606, %v1099
          %v1107 = vmul.f32 %v607, %v1099
          %v1108 = vmul.f32 %v608, %v1099
          %v1109 = vmul.f32 %v609, %v1099
          %v1110 = vmul.f32 %v610, %v1099
          %v1111 = vmul.f32 %v611, %v1099
          %v1112 = vmul.f32 %v612, %v1099
          %v1113 = vmul.f32 %v613, %v1099
          %v1114 = vmul.f32 %v614, %v1099
          %v1115 = vmul.f32 %v615, %v1099
          %v1116 = vmul.f32 %v616, %v1099
          %v1117 = vmul.f32 %v617, %v1099
          %v1118 = vmul.f32 %v618, %v1099
          %v1119 = vmul.f32 %v619, %v1099
          %v1120 = vmul.f32 %v620, %v1099
          %v1121 = vmul.f32 %v621, %v1099
          %v1122 = vmul.f32 %v622, %v1099
          %v1123 = vmul.f32 %v623, %v1099
          %v1124 = vadd.f32 %v1071, %v1100
          %v1125 = vadd.f32 %v1072, %v1101
          %v1126 = vadd.f32 %v1073, %v1102
          %v1127 = vadd.f32 %v1074, %v1103
          %v1128 = vadd.f32 %v1075, %v1104
          %v1129 = vadd.f32 %v1076, %v1105
          %v1130 = vadd.f32 %v1077, %v1106
          %v1131 = vadd.f32 %v1078, %v1107
          %v1132 = vadd.f32 %v1079, %v1108
          %v1133 = vadd.f32 %v1080, %v1109
          %v1134 = vadd.f32 %v1081, %v1110
          %v1135 = vadd.f32 %v1082, %v1111
          %v1136 = vadd.f32 %v1083, %v1112
          %v1137 = vadd.f32 %v1084, %v1113
          %v1138 = vadd.f32 %v1085, %v1114
          %v1139 = vadd.f32 %v1086, %v1115
          %v1140 = vadd.f32 %v1087, %v1116
          %v1141 = vadd.f32 %v1088, %v1117
          %v1142 = vadd.f32 %v1089, %v1118
          %v1143 = vadd.f32 %v1090, %v1119
          %v1144 = vadd.f32 %v1091, %v1120
          %v1145 = vadd.f32 %v1092, %v1121
          %v1146 = vadd.f32 %v1093, %v1122
          %v1147 = vadd.f32 %v1094, %v1123
          %v1148 = vld [vmem:[#allocation6 + $0x1d] sm:$0x1]
          %v1149 = vlaneseq
          %v1150 = vshrl.u32 %v1149, 7
          %v1151 = vsub.s32 0, %v1150
          %v1152 = vrot.slane %v1148, %v1151
          %v1153 = vmul.f32 %v680, %v1152
          %v1154 = vmul.f32 %v681, %v1152
          %v1155 = vmul.f32 %v682, %v1152
          %v1156 = vmul.f32 %v683, %v1152
          %v1157 = vmul.f32 %v684, %v1152
          %v1158 = vmul.f32 %v685, %v1152
          %v1159 = vmul.f32 %v686, %v1152
          %v1160 = vmul.f32 %v687, %v1152
          %v1161 = vmul.f32 %v688, %v1152
          %v1162 = vmul.f32 %v689, %v1152
          %v1163 = vmul.f32 %v690, %v1152
          %v1164 = vmul.f32 %v691, %v1152
          %v1165 = vmul.f32 %v692, %v1152
          %v1166 = vmul.f32 %v693, %v1152
          %v1167 = vmul.f32 %v694, %v1152
          %v1168 = vmul.f32 %v695, %v1152
          %v1169 = vmul.f32 %v696, %v1152
          %v1170 = vmul.f32 %v697, %v1152
          %v1171 = vmul.f32 %v698, %v1152
          %v1172 = vmul.f32 %v699, %v1152
          %v1173 = vmul.f32 %v700, %v1152
          %v1174 = vmul.f32 %v701, %v1152
          %v1175 = vmul.f32 %v702, %v1152
          %v1176 = vmul.f32 %v703, %v1152
          %v1177 = vadd.f32 %v1124, %v1153
          %v1178 = vadd.f32 %v1125, %v1154
          %v1179 = vadd.f32 %v1126, %v1155
          %v1180 = vadd.f32 %v1127, %v1156
          %v1181 = vadd.f32 %v1128, %v1157
          %v1182 = vadd.f32 %v1129, %v1158
          %v1183 = vadd.f32 %v1130, %v1159
          %v1184 = vadd.f32 %v1131, %v1160
          %v1185 = vadd.f32 %v1132, %v1161
          %v1186 = vadd.f32 %v1133, %v1162
          %v1187 = vadd.f32 %v1134, %v1163
          %v1188 = vadd.f32 %v1135, %v1164
          %v1189 = vadd.f32 %v1136, %v1165
          %v1190 = vadd.f32 %v1137, %v1166
          %v1191 = vadd.f32 %v1138, %v1167
          %v1192 = vadd.f32 %v1139, %v1168
          %v1193 = vadd.f32 %v1140, %v1169
          %v1194 = vadd.f32 %v1141, %v1170
          %v1195 = vadd.f32 %v1142, %v1171
          %v1196 = vadd.f32 %v1143, %v1172
          %v1197 = vadd.f32 %v1144, %v1173
          %v1198 = vadd.f32 %v1145, %v1174
          %v1199 = vadd.f32 %v1146, %v1175
          %v1200 = vadd.f32 %v1147, %v1176
          %v1201 = vld [vmem:[#allocation6 + $0x24] sm:$0x1]
          %v1202 = vlaneseq
          %v1203 = vshrl.u32 %v1202, 7
          %v1204 = vsub.s32 0, %v1203
          %v1205 = vrot.slane %v1201, %v1204
          %v1206 = vmul.f32 %v760, %v1205
          %v1207 = vmul.f32 %v761, %v1205
          %v1208 = vmul.f32 %v762, %v1205
          %v1209 = vmul.f32 %v763, %v1205
          %v1210 = vmul.f32 %v764, %v1205
          %v1211 = vmul.f32 %v765, %v1205
          %v1212 = vmul.f32 %v766, %v1205
          %v1213 = vmul.f32 %v767, %v1205
          %v1214 = vmul.f32 %v768, %v1205
          %v1215 = vmul.f32 %v769, %v1205
          %v1216 = vmul.f32 %v770, %v1205
          %v1217 = vmul.f32 %v771, %v1205
          %v1218 = vmul.f32 %v772, %v1205
          %v1219 = vmul.f32 %v773, %v1205
          %v1220 = vmul.f32 %v774, %v1205
          %v1221 = vmul.f32 %v775, %v1205
          %v1222 = vmul.f32 %v776, %v1205
          %v1223 = vmul.f32 %v777, %v1205
          %v1224 = vmul.f32 %v778, %v1205
          %v1225 = vmul.f32 %v779, %v1205
          %v1226 = vmul.f32 %v780, %v1205
          %v1227 = vmul.f32 %v781, %v1205
          %v1228 = vmul.f32 %v782, %v1205
          %v1229 = vmul.f32 %v783, %v1205
          %v1230 = vadd.f32 %v1177, %v1206
          %v1231 = vadd.f32 %v1178, %v1207
          %v1232 = vadd.f32 %v1179, %v1208
          %v1233 = vadd.f32 %v1180, %v1209
          %v1234 = vadd.f32 %v1181, %v1210
          %v1235 = vadd.f32 %v1182, %v1211
          %v1236 = vadd.f32 %v1183, %v1212
          %v1237 = vadd.f32 %v1184, %v1213
          %v1238 = vadd.f32 %v1185, %v1214
          %v1239 = vadd.f32 %v1186, %v1215
          %v1240 = vadd.f32 %v1187, %v1216
          %v1241 = vadd.f32 %v1188, %v1217
          %v1242 = vadd.f32 %v1189, %v1218
          %v1243 = vadd.f32 %v1190, %v1219
          %v1244 = vadd.f32 %v1191, %v1220
          %v1245 = vadd.f32 %v1192, %v1221
          %v1246 = vadd.f32 %v1193, %v1222
          %v1247 = vadd.f32 %v1194, %v1223
          %v1248 = vadd.f32 %v1195, %v1224
          %v1249 = vadd.f32 %v1196, %v1225
          %v1250 = vadd.f32 %v1197, %v1226
          %v1251 = vadd.f32 %v1198, %v1227
          %v1252 = vadd.f32 %v1199, %v1228
          %v1253 = vadd.f32 %v1200, %v1229
          %v1254 = vld [vmem:[#allocation6 + $0x2b] sm:$0x1]
          %v1255 = vlaneseq
          %v1256 = vshrl.u32 %v1255, 7
          %v1257 = vsub.s32 0, %v1256
          %v1258 = vrot.slane %v1254, %v1257
          %v1259 = vmul.f32 %v840, %v1258
          %v1260 = vmul.f32 %v841, %v1258
          %v1261 = vmul.f32 %v842, %v1258
          %v1262 = vmul.f32 %v843, %v1258
          %v1263 = vmul.f32 %v844, %v1258
          %v1264 = vmul.f32 %v845, %v1258
          %v1265 = vmul.f32 %v846, %v1258
          %v1266 = vmul.f32 %v847, %v1258
          %v1267 = vmul.f32 %v848, %v1258
          %v1268 = vmul.f32 %v849, %v1258
          %v1269 = vmul.f32 %v850, %v1258
          %v1270 = vmul.f32 %v851, %v1258
          %v1271 = vmul.f32 %v852, %v1258
          %v1272 = vmul.f32 %v853, %v1258
          %v1273 = vmul.f32 %v854, %v1258
          %v1274 = vmul.f32 %v855, %v1258
          %v1275 = vmul.f32 %v856, %v1258
          %v1276 = vmul.f32 %v857, %v1258
          %v1277 = vmul.f32 %v858, %v1258
          %v1278 = vmul.f32 %v859, %v1258
          %v1279 = vmul.f32 %v860, %v1258
          %v1280 = vmul.f32 %v861, %v1258
          %v1281 = vmul.f32 %v862, %v1258
          %v1282 = vmul.f32 %v863, %v1258
          %v1283 = vadd.f32 %v1230, %v1259
          %v1284 = vadd.f32 %v1231, %v1260
          %v1285 = vadd.f32 %v1232, %v1261
          %v1286 = vadd.f32 %v1233, %v1262
          %v1287 = vadd.f32 %v1234, %v1263
          %v1288 = vadd.f32 %v1235, %v1264
          %v1289 = vadd.f32 %v1236, %v1265
          %v1290 = vadd.f32 %v1237, %v1266
          %v1291 = vadd.f32 %v1238, %v1267
          %v1292 = vadd.f32 %v1239, %v1268
          %v1293 = vadd.f32 %v1240, %v1269
          %v1294 = vadd.f32 %v1241, %v1270
          %v1295 = vadd.f32 %v1242, %v1271
          %v1296 = vadd.f32 %v1243, %v1272
          %v1297 = vadd.f32 %v1244, %v1273
          %v1298 = vadd.f32 %v1245, %v1274
          %v1299 = vadd.f32 %v1246, %v1275
          %v1300 = vadd.f32 %v1247, %v1276
          %v1301 = vadd.f32 %v1248, %v1277
          %v1302 = vadd.f32 %v1249, %v1278
          %v1303 = vadd.f32 %v1250, %v1279
          %v1304 = vadd.f32 %v1251, %v1280
          %v1305 = vadd.f32 %v1252, %v1281
          %v1306 = vadd.f32 %v1253, %v1282
          %v1307 = vrot.slane %v1283, 6
          %v1308 = vrot.slane %v1286, 6
          %v1309 = vrot.slane %v1289, 6
          %v1310 = vrot.slane %v1292, 6
          %v1311 = vrot.slane %v1295, 6
          %v1312 = vrot.slane %v1298, 6
          %v1313 = vrot.slane %v1301, 6
          %v1314 = vrot.slane %v1304, 6
          %v1315 = vrot.slane %v1284, 6
          %v1316 = vrot.slane %v1287, 6
          %v1317 = vrot.slane %v1290, 6
          %v1318 = vrot.slane %v1293, 6
          %v1319 = vrot.slane %v1296, 6
          %v1320 = vrot.slane %v1299, 6
          %v1321 = vrot.slane %v1302, 6
          %v1322 = vrot.slane %v1305, 6
          %v1323 = vrot.slane %v1285, 6
          %v1324 = vrot.slane %v1288, 6
          %v1325 = vrot.slane %v1291, 6
          %v1326 = vrot.slane %v1294, 6
          %v1327 = vrot.slane %v1297, 6
          %v1328 = vrot.slane %v1300, 6
          %v1329 = vrot.slane %v1303, 6
          %v1330 = vrot.slane %v1306, 6
          %vm1331 = vcmp.lt.s32.totalorder %v942, 2
          %v1332 = vsel %vm1331, %v1307, %v1315
          %v1333 = vsel %vm1331, %v1308, %v1316
          %v1334 = vsel %vm1331, %v1309, %v1317
          %v1335 = vsel %vm1331, %v1310, %v1318
          %v1336 = vsel %vm1331, %v1311, %v1319
          %v1337 = vsel %vm1331, %v1312, %v1320
          %v1338 = vsel %vm1331, %v1313, %v1321
          %v1339 = vsel %vm1331, %v1314, %v1322
          %v1340 = vsel %vm1331, %v1323, %v1307
          %v1341 = vsel %vm1331, %v1324, %v1308
          %v1342 = vsel %vm1331, %v1325, %v1309
          %v1343 = vsel %vm1331, %v1326, %v1310
          %v1344 = vsel %vm1331, %v1327, %v1311
          %v1345 = vsel %vm1331, %v1328, %v1312
          %v1346 = vsel %vm1331, %v1329, %v1313
          %v1347 = vsel %vm1331, %v1330, %v1314
          %v1348 = vadd.f32 %v952, %v1340
          %v1349 = vadd.f32 %v944, %v1332
          %v1350 = vadd.f32 %v953, %v1341
          %v1351 = vadd.f32 %v945, %v1333
          %v1352 = vadd.f32 %v954, %v1342
          %v1353 = vadd.f32 %v946, %v1334
          %v1354 = vadd.f32 %v955, %v1343
          %v1355 = vadd.f32 %v947, %v1335
          %v1356 = vadd.f32 %v956, %v1344
          %v1357 = vadd.f32 %v948, %v1336
          %v1358 = vadd.f32 %v957, %v1345
          %v1359 = vadd.f32 %v949, %v1337
          %v1360 = vadd.f32 %v958, %v1346
          %v1361 = vadd.f32 %v950, %v1338
          %v1362 = vadd.f32 %v959, %v1347
          %v1363 = vadd.f32 %v951, %v1339
          %v1364 = vld [vmem:[#allocation6 + $0x2] sm:$0x1]
          %v1365 = vlaneseq
          %v1366 = vshrl.u32 %v1365, 7
          %v1367 = vsub.s32 0, %v1366
          %v1368 = vrot.slane %v1364, %v1367
          %v1369 = vmul.f32 %v384, %v1368
          %v1370 = vmul.f32 %v385, %v1368
          %v1371 = vmul.f32 %v386, %v1368
          %v1372 = vmul.f32 %v387, %v1368
          %v1373 = vmul.f32 %v388, %v1368
          %v1374 = vmul.f32 %v389, %v1368
          %v1375 = vmul.f32 %v390, %v1368
          %v1376 = vmul.f32 %v391, %v1368
          %v1377 = vmul.f32 %v392, %v1368
          %v1378 = vmul.f32 %v393, %v1368
          %v1379 = vmul.f32 %v394, %v1368
          %v1380 = vmul.f32 %v395, %v1368
          %v1381 = vmul.f32 %v396, %v1368
          %v1382 = vmul.f32 %v397, %v1368
          %v1383 = vmul.f32 %v398, %v1368
          %v1384 = vmul.f32 %v399, %v1368
          %v1385 = vmul.f32 %v400, %v1368
          %v1386 = vmul.f32 %v401, %v1368
          %v1387 = vmul.f32 %v402, %v1368
          %v1388 = vmul.f32 %v403, %v1368
          %v1389 = vmul.f32 %v404, %v1368
          %v1390 = vmul.f32 %v405, %v1368
          %v1391 = vmul.f32 %v406, %v1368
          %v1392 = vmul.f32 %v407, %v1368
          %v1393 = vld [vmem:[#allocation6 + $0x9] sm:$0x1]
          %v1394 = vlaneseq
          %v1395 = vshrl.u32 %v1394, 7
          %v1396 = vsub.s32 0, %v1395
          %v1397 = vrot.slane %v1393, %v1396
          %v1398 = vmul.f32 %v440, %v1397
          %v1399 = vmul.f32 %v441, %v1397
          %v1400 = vmul.f32 %v442, %v1397
          %v1401 = vmul.f32 %v443, %v1397
          %v1402 = vmul.f32 %v444, %v1397
          %v1403 = vmul.f32 %v445, %v1397
          %v1404 = vmul.f32 %v446, %v1397
          %v1405 = vmul.f32 %v447, %v1397
          %v1406 = vmul.f32 %v448, %v1397
          %v1407 = vmul.f32 %v449, %v1397
          %v1408 = vmul.f32 %v450, %v1397
          %v1409 = vmul.f32 %v451, %v1397
          %v1410 = vmul.f32 %v452, %v1397
          %v1411 = vmul.f32 %v453, %v1397
          %v1412 = vmul.f32 %v454, %v1397
          %v1413 = vmul.f32 %v455, %v1397
          %v1414 = vmul.f32 %v456, %v1397
          %v1415 = vmul.f32 %v457, %v1397
          %v1416 = vmul.f32 %v458, %v1397
          %v1417 = vmul.f32 %v459, %v1397
          %v1418 = vmul.f32 %v460, %v1397
          %v1419 = vmul.f32 %v461, %v1397
          %v1420 = vmul.f32 %v462, %v1397
          %v1421 = vmul.f32 %v463, %v1397
          %v1422 = vadd.f32 %v1369, %v1398
          %v1423 = vadd.f32 %v1370, %v1399
          %v1424 = vadd.f32 %v1371, %v1400
          %v1425 = vadd.f32 %v1372, %v1401
          %v1426 = vadd.f32 %v1373, %v1402
          %v1427 = vadd.f32 %v1374, %v1403
          %v1428 = vadd.f32 %v1375, %v1404
          %v1429 = vadd.f32 %v1376, %v1405
          %v1430 = vadd.f32 %v1377, %v1406
          %v1431 = vadd.f32 %v1378, %v1407
          %v1432 = vadd.f32 %v1379, %v1408
          %v1433 = vadd.f32 %v1380, %v1409
          %v1434 = vadd.f32 %v1381, %v1410
          %v1435 = vadd.f32 %v1382, %v1411
          %v1436 = vadd.f32 %v1383, %v1412
          %v1437 = vadd.f32 %v1384, %v1413
          %v1438 = vadd.f32 %v1385, %v1414
          %v1439 = vadd.f32 %v1386, %v1415
          %v1440 = vadd.f32 %v1387, %v1416
          %v1441 = vadd.f32 %v1388, %v1417
          %v1442 = vadd.f32 %v1389, %v1418
          %v1443 = vadd.f32 %v1390, %v1419
          %v1444 = vadd.f32 %v1391, %v1420
          %v1445 = vadd.f32 %v1392, %v1421
          %v1446 = vld [vmem:[#allocation6 + $0x10] sm:$0x1]
          %v1447 = vlaneseq
          %v1448 = vshrl.u32 %v1447, 7
          %v1449 = vsub.s32 0, %v1448
          %v1450 = vrot.slane %v1446, %v1449
          %v1451 = vmul.f32 %v520, %v1450
          %v1452 = vmul.f32 %v521, %v1450
          %v1453 = vmul.f32 %v522, %v1450
          %v1454 = vmul.f32 %v523, %v1450
          %v1455 = vmul.f32 %v524, %v1450
          %v1456 = vmul.f32 %v525, %v1450
          %v1457 = vmul.f32 %v526, %v1450
          %v1458 = vmul.f32 %v527, %v1450
          %v1459 = vmul.f32 %v528, %v1450
          %v1460 = vmul.f32 %v529, %v1450
          %v1461 = vmul.f32 %v530, %v1450
          %v1462 = vmul.f32 %v531, %v1450
          %v1463 = vmul.f32 %v532, %v1450
          %v1464 = vmul.f32 %v533, %v1450
          %v1465 = vmul.f32 %v534, %v1450
          %v1466 = vmul.f32 %v535, %v1450
          %v1467 = vmul.f32 %v536, %v1450
          %v1468 = vmul.f32 %v537, %v1450
          %v1469 = vmul.f32 %v538, %v1450
          %v1470 = vmul.f32 %v539, %v1450
          %v1471 = vmul.f32 %v540, %v1450
          %v1472 = vmul.f32 %v541, %v1450
          %v1473 = vmul.f32 %v542, %v1450
          %v1474 = vmul.f32 %v543, %v1450
          %v1475 = vadd.f32 %v1422, %v1451
          %v1476 = vadd.f32 %v1423, %v1452
          %v1477 = vadd.f32 %v1424, %v1453
          %v1478 = vadd.f32 %v1425, %v1454
          %v1479 = vadd.f32 %v1426, %v1455
          %v1480 = vadd.f32 %v1427, %v1456
          %v1481 = vadd.f32 %v1428, %v1457
          %v1482 = vadd.f32 %v1429, %v1458
          %v1483 = vadd.f32 %v1430, %v1459
          %v1484 = vadd.f32 %v1431, %v1460
          %v1485 = vadd.f32 %v1432, %v1461
          %v1486 = vadd.f32 %v1433, %v1462
          %v1487 = vadd.f32 %v1434, %v1463
          %v1488 = vadd.f32 %v1435, %v1464
          %v1489 = vadd.f32 %v1436, %v1465
          %v1490 = vadd.f32 %v1437, %v1466
          %v1491 = vadd.f32 %v1438, %v1467
          %v1492 = vadd.f32 %v1439, %v1468
          %v1493 = vadd.f32 %v1440, %v1469
          %v1494 = vadd.f32 %v1441, %v1470
          %v1495 = vadd.f32 %v1442, %v1471
          %v1496 = vadd.f32 %v1443, %v1472
          %v1497 = vadd.f32 %v1444, %v1473
          %v1498 = vadd.f32 %v1445, %v1474
          %v1499 = vld [vmem:[#allocation6 + $0x17] sm:$0x1]
          %v1500 = vlaneseq
          %v1501 = vshrl.u32 %v1500, 7
          %v1502 = vsub.s32 0, %v1501
          %v1503 = vrot.slane %v1499, %v1502
          %v1504 = vmul.f32 %v600, %v1503
          %v1505 = vmul.f32 %v601, %v1503
          %v1506 = vmul.f32 %v602, %v1503
          %v1507 = vmul.f32 %v603, %v1503
          %v1508 = vmul.f32 %v604, %v1503
          %v1509 = vmul.f32 %v605, %v1503
          %v1510 = vmul.f32 %v606, %v1503
          %v1511 = vmul.f32 %v607, %v1503
          %v1512 = vmul.f32 %v608, %v1503
          %v1513 = vmul.f32 %v609, %v1503
          %v1514 = vmul.f32 %v610, %v1503
          %v1515 = vmul.f32 %v611, %v1503
          %v1516 = vmul.f32 %v612, %v1503
          %v1517 = vmul.f32 %v613, %v1503
          %v1518 = vmul.f32 %v614, %v1503
          %v1519 = vmul.f32 %v615, %v1503
          %v1520 = vmul.f32 %v616, %v1503
          %v1521 = vmul.f32 %v617, %v1503
          %v1522 = vmul.f32 %v618, %v1503
          %v1523 = vmul.f32 %v619, %v1503
          %v1524 = vmul.f32 %v620, %v1503
          %v1525 = vmul.f32 %v621, %v1503
          %v1526 = vmul.f32 %v622, %v1503
          %v1527 = vmul.f32 %v623, %v1503
          %v1528 = vadd.f32 %v1475, %v1504
          %v1529 = vadd.f32 %v1476, %v1505
          %v1530 = vadd.f32 %v1477, %v1506
          %v1531 = vadd.f32 %v1478, %v1507
          %v1532 = vadd.f32 %v1479, %v1508
          %v1533 = vadd.f32 %v1480, %v1509
          %v1534 = vadd.f32 %v1481, %v1510
          %v1535 = vadd.f32 %v1482, %v1511
          %v1536 = vadd.f32 %v1483, %v1512
          %v1537 = vadd.f32 %v1484, %v1513
          %v1538 = vadd.f32 %v1485, %v1514
          %v1539 = vadd.f32 %v1486, %v1515
          %v1540 = vadd.f32 %v1487, %v1516
          %v1541 = vadd.f32 %v1488, %v1517
          %v1542 = vadd.f32 %v1489, %v1518
          %v1543 = vadd.f32 %v1490, %v1519
          %v1544 = vadd.f32 %v1491, %v1520
          %v1545 = vadd.f32 %v1492, %v1521
          %v1546 = vadd.f32 %v1493, %v1522
          %v1547 = vadd.f32 %v1494, %v1523
          %v1548 = vadd.f32 %v1495, %v1524
          %v1549 = vadd.f32 %v1496, %v1525
          %v1550 = vadd.f32 %v1497, %v1526
          %v1551 = vadd.f32 %v1498, %v1527
          %v1552 = vld [vmem:[#allocation6 + $0x1e] sm:$0x1]
          %v1553 = vlaneseq
          %v1554 = vshrl.u32 %v1553, 7
          %v1555 = vsub.s32 0, %v1554
          %v1556 = vrot.slane %v1552, %v1555
          %v1557 = vmul.f32 %v680, %v1556
          %v1558 = vmul.f32 %v681, %v1556
          %v1559 = vmul.f32 %v682, %v1556
          %v1560 = vmul.f32 %v683, %v1556
          %v1561 = vmul.f32 %v684, %v1556
          %v1562 = vmul.f32 %v685, %v1556
          %v1563 = vmul.f32 %v686, %v1556
          %v1564 = vmul.f32 %v687, %v1556
          %v1565 = vmul.f32 %v688, %v1556
          %v1566 = vmul.f32 %v689, %v1556
          %v1567 = vmul.f32 %v690, %v1556
          %v1568 = vmul.f32 %v691, %v1556
          %v1569 = vmul.f32 %v692, %v1556
          %v1570 = vmul.f32 %v693, %v1556
          %v1571 = vmul.f32 %v694, %v1556
          %v1572 = vmul.f32 %v695, %v1556
          %v1573 = vmul.f32 %v696, %v1556
          %v1574 = vmul.f32 %v697, %v1556
          %v1575 = vmul.f32 %v698, %v1556
          %v1576 = vmul.f32 %v699, %v1556
          %v1577 = vmul.f32 %v700, %v1556
          %v1578 = vmul.f32 %v701, %v1556
          %v1579 = vmul.f32 %v702, %v1556
          %v1580 = vmul.f32 %v703, %v1556
          %v1581 = vadd.f32 %v1528, %v1557
          %v1582 = vadd.f32 %v1529, %v1558
          %v1583 = vadd.f32 %v1530, %v1559
          %v1584 = vadd.f32 %v1531, %v1560
          %v1585 = vadd.f32 %v1532, %v1561
          %v1586 = vadd.f32 %v1533, %v1562
          %v1587 = vadd.f32 %v1534, %v1563
          %v1588 = vadd.f32 %v1535, %v1564
          %v1589 = vadd.f32 %v1536, %v1565
          %v1590 = vadd.f32 %v1537, %v1566
          %v1591 = vadd.f32 %v1538, %v1567
          %v1592 = vadd.f32 %v1539, %v1568
          %v1593 = vadd.f32 %v1540, %v1569
          %v1594 = vadd.f32 %v1541, %v1570
          %v1595 = vadd.f32 %v1542, %v1571
          %v1596 = vadd.f32 %v1543, %v1572
          %v1597 = vadd.f32 %v1544, %v1573
          %v1598 = vadd.f32 %v1545, %v1574
          %v1599 = vadd.f32 %v1546, %v1575
          %v1600 = vadd.f32 %v1547, %v1576
          %v1601 = vadd.f32 %v1548, %v1577
          %v1602 = vadd.f32 %v1549, %v1578
          %v1603 = vadd.f32 %v1550, %v1579
          %v1604 = vadd.f32 %v1551, %v1580
          %v1605 = vld [vmem:[#allocation6 + $0x25] sm:$0x1]
          %v1606 = vlaneseq
          %v1607 = vshrl.u32 %v1606, 7
          %v1608 = vsub.s32 0, %v1607
          %v1609 = vrot.slane %v1605, %v1608
          %v1610 = vmul.f32 %v760, %v1609
          %v1611 = vmul.f32 %v761, %v1609
          %v1612 = vmul.f32 %v762, %v1609
          %v1613 = vmul.f32 %v763, %v1609
          %v1614 = vmul.f32 %v764, %v1609
          %v1615 = vmul.f32 %v765, %v1609
          %v1616 = vmul.f32 %v766, %v1609
          %v1617 = vmul.f32 %v767, %v1609
          %v1618 = vmul.f32 %v768, %v1609
          %v1619 = vmul.f32 %v769, %v1609
          %v1620 = vmul.f32 %v770, %v1609
          %v1621 = vmul.f32 %v771, %v1609
          %v1622 = vmul.f32 %v772, %v1609
          %v1623 = vmul.f32 %v773, %v1609
          %v1624 = vmul.f32 %v774, %v1609
          %v1625 = vmul.f32 %v775, %v1609
          %v1626 = vmul.f32 %v776, %v1609
          %v1627 = vmul.f32 %v777, %v1609
          %v1628 = vmul.f32 %v778, %v1609
          %v1629 = vmul.f32 %v779, %v1609
          %v1630 = vmul.f32 %v780, %v1609
          %v1631 = vmul.f32 %v781, %v1609
          %v1632 = vmul.f32 %v782, %v1609
          %v1633 = vmul.f32 %v783, %v1609
          %v1634 = vadd.f32 %v1581, %v1610
          %v1635 = vadd.f32 %v1582, %v1611
          %v1636 = vadd.f32 %v1583, %v1612
          %v1637 = vadd.f32 %v1584, %v1613
          %v1638 = vadd.f32 %v1585, %v1614
          %v1639 = vadd.f32 %v1586, %v1615
          %v1640 = vadd.f32 %v1587, %v1616
          %v1641 = vadd.f32 %v1588, %v1617
          %v1642 = vadd.f32 %v1589, %v1618
          %v1643 = vadd.f32 %v1590, %v1619
          %v1644 = vadd.f32 %v1591, %v1620
          %v1645 = vadd.f32 %v1592, %v1621
          %v1646 = vadd.f32 %v1593, %v1622
          %v1647 = vadd.f32 %v1594, %v1623
          %v1648 = vadd.f32 %v1595, %v1624
          %v1649 = vadd.f32 %v1596, %v1625
          %v1650 = vadd.f32 %v1597, %v1626
          %v1651 = vadd.f32 %v1598, %v1627
          %v1652 = vadd.f32 %v1599, %v1628
          %v1653 = vadd.f32 %v1600, %v1629
          %v1654 = vadd.f32 %v1601, %v1630
          %v1655 = vadd.f32 %v1602, %v1631
          %v1656 = vadd.f32 %v1603, %v1632
          %v1657 = vadd.f32 %v1604, %v1633
          %v1658 = vld [vmem:[#allocation6 + $0x2c] sm:$0x1]
          %v1659 = vlaneseq
          %v1660 = vshrl.u32 %v1659, 7
          %v1661 = vsub.s32 0, %v1660
          %v1662 = vrot.slane %v1658, %v1661
          %v1663 = vmul.f32 %v840, %v1662
          %v1664 = vmul.f32 %v841, %v1662
          %v1665 = vmul.f32 %v842, %v1662
          %v1666 = vmul.f32 %v843, %v1662
          %v1667 = vmul.f32 %v844, %v1662
          %v1668 = vmul.f32 %v845, %v1662
          %v1669 = vmul.f32 %v846, %v1662
          %v1670 = vmul.f32 %v847, %v1662
          %v1671 = vmul.f32 %v848, %v1662
          %v1672 = vmul.f32 %v849, %v1662
          %v1673 = vmul.f32 %v850, %v1662
          %v1674 = vmul.f32 %v851, %v1662
          %v1675 = vmul.f32 %v852, %v1662
          %v1676 = vmul.f32 %v853, %v1662
          %v1677 = vmul.f32 %v854, %v1662
          %v1678 = vmul.f32 %v855, %v1662
          %v1679 = vmul.f32 %v856, %v1662
          %v1680 = vmul.f32 %v857, %v1662
          %v1681 = vmul.f32 %v858, %v1662
          %v1682 = vmul.f32 %v859, %v1662
          %v1683 = vmul.f32 %v860, %v1662
          %v1684 = vmul.f32 %v861, %v1662
          %v1685 = vmul.f32 %v862, %v1662
          %v1686 = vmul.f32 %v863, %v1662
          %v1687 = vadd.f32 %v1634, %v1663
          %v1688 = vadd.f32 %v1635, %v1664
          %v1689 = vadd.f32 %v1636, %v1665
          %v1690 = vadd.f32 %v1637, %v1666
          %v1691 = vadd.f32 %v1638, %v1667
          %v1692 = vadd.f32 %v1639, %v1668
          %v1693 = vadd.f32 %v1640, %v1669
          %v1694 = vadd.f32 %v1641, %v1670
          %v1695 = vadd.f32 %v1642, %v1671
          %v1696 = vadd.f32 %v1643, %v1672
          %v1697 = vadd.f32 %v1644, %v1673
          %v1698 = vadd.f32 %v1645, %v1674
          %v1699 = vadd.f32 %v1646, %v1675
          %v1700 = vadd.f32 %v1647, %v1676
          %v1701 = vadd.f32 %v1648, %v1677
          %v1702 = vadd.f32 %v1649, %v1678
          %v1703 = vadd.f32 %v1650, %v1679
          %v1704 = vadd.f32 %v1651, %v1680
          %v1705 = vadd.f32 %v1652, %v1681
          %v1706 = vadd.f32 %v1653, %v1682
          %v1707 = vadd.f32 %v1654, %v1683
          %v1708 = vadd.f32 %v1655, %v1684
          %v1709 = vadd.f32 %v1656, %v1685
          %v1710 = vadd.f32 %v1657, %v1686
          %v1711 = vrot.slane %v1687, 7
          %v1712 = vrot.slane %v1690, 7
          %v1713 = vrot.slane %v1693, 7
          %v1714 = vrot.slane %v1696, 7
          %v1715 = vrot.slane %v1699, 7
          %v1716 = vrot.slane %v1702, 7
          %v1717 = vrot.slane %v1705, 7
          %v1718 = vrot.slane %v1708, 7
          %v1719 = vrot.slane %v1688, 7
          %v1720 = vrot.slane %v1691, 7
          %v1721 = vrot.slane %v1694, 7
          %v1722 = vrot.slane %v1697, 7
          %v1723 = vrot.slane %v1700, 7
          %v1724 = vrot.slane %v1703, 7
          %v1725 = vrot.slane %v1706, 7
          %v1726 = vrot.slane %v1709, 7
          %v1727 = vrot.slane %v1689, 7
          %v1728 = vrot.slane %v1692, 7
          %v1729 = vrot.slane %v1695, 7
          %v1730 = vrot.slane %v1698, 7
          %v1731 = vrot.slane %v1701, 7
          %v1732 = vrot.slane %v1704, 7
          %v1733 = vrot.slane %v1707, 7
          %v1734 = vrot.slane %v1710, 7
          %vm1735 = vcmp.lt.s32.totalorder %v942, 1
          %v1736 = vsel %vm1735, %v1711, %v1719
          %v1737 = vsel %vm1735, %v1712, %v1720
          %v1738 = vsel %vm1735, %v1713, %v1721
          %v1739 = vsel %vm1735, %v1714, %v1722
          %v1740 = vsel %vm1735, %v1715, %v1723
          %v1741 = vsel %vm1735, %v1716, %v1724
          %v1742 = vsel %vm1735, %v1717, %v1725
          %v1743 = vsel %vm1735, %v1718, %v1726
          %v1744 = vsel %vm1735, %v1727, %v1711
          %v1745 = vsel %vm1735, %v1728, %v1712
          %v1746 = vsel %vm1735, %v1729, %v1713
          %v1747 = vsel %vm1735, %v1730, %v1714
          %v1748 = vsel %vm1735, %v1731, %v1715
          %v1749 = vsel %vm1735, %v1732, %v1716
          %v1750 = vsel %vm1735, %v1733, %v1717
          %v1751 = vsel %vm1735, %v1734, %v1718
          %v1752 = vadd.f32 %v1348, %v1744
          %v1753 = vadd.f32 %v1349, %v1736
          %v1754 = vadd.f32 %v1350, %v1745
          %v1755 = vadd.f32 %v1351, %v1737
          %v1756 = vadd.f32 %v1352, %v1746
          %v1757 = vadd.f32 %v1353, %v1738
          %v1758 = vadd.f32 %v1354, %v1747
          %v1759 = vadd.f32 %v1355, %v1739
          %v1760 = vadd.f32 %v1356, %v1748
          %v1761 = vadd.f32 %v1357, %v1740
          %v1762 = vadd.f32 %v1358, %v1749
          %v1763 = vadd.f32 %v1359, %v1741
          %v1764 = vadd.f32 %v1360, %v1750
          %v1765 = vadd.f32 %v1361, %v1742
          %v1766 = vadd.f32 %v1362, %v1751
          %v1767 = vadd.f32 %v1363, %v1743
          %v1768 = vld [vmem:[#allocation6 + $0x3] sm:$0x1]
          %v1769 = vlaneseq
          %v1770 = vshrl.u32 %v1769, 7
          %v1771 = vsub.s32 0, %v1770
          %v1772 = vrot.slane %v1768, %v1771
          %v1773 = vmul.f32 %v384, %v1772
          %v1774 = vmul.f32 %v385, %v1772
          %v1775 = vmul.f32 %v387, %v1772
          %v1776 = vmul.f32 %v388, %v1772
          %v1777 = vmul.f32 %v390, %v1772
          %v1778 = vmul.f32 %v391, %v1772
          %v1779 = vmul.f32 %v393, %v1772
          %v1780 = vmul.f32 %v394, %v1772
          %v1781 = vmul.f32 %v396, %v1772
          %v1782 = vmul.f32 %v397, %v1772
          %v1783 = vmul.f32 %v399, %v1772
          %v1784 = vmul.f32 %v400, %v1772
          %v1785 = vmul.f32 %v402, %v1772
          %v1786 = vmul.f32 %v403, %v1772
          %v1787 = vmul.f32 %v405, %v1772
          %v1788 = vmul.f32 %v406, %v1772
          %v1789 = vld [vmem:[#allocation6 + $0xa] sm:$0x1]
          %v1790 = vlaneseq
          %v1791 = vshrl.u32 %v1790, 7
          %v1792 = vsub.s32 0, %v1791
          %v1793 = vrot.slane %v1789, %v1792
          %v1794 = vmul.f32 %v440, %v1793
          %v1795 = vmul.f32 %v441, %v1793
          %v1796 = vmul.f32 %v443, %v1793
          %v1797 = vmul.f32 %v444, %v1793
          %v1798 = vmul.f32 %v446, %v1793
          %v1799 = vmul.f32 %v447, %v1793
          %v1800 = vmul.f32 %v449, %v1793
          %v1801 = vmul.f32 %v450, %v1793
          %v1802 = vmul.f32 %v452, %v1793
          %v1803 = vmul.f32 %v453, %v1793
          %v1804 = vmul.f32 %v455, %v1793
          %v1805 = vmul.f32 %v456, %v1793
          %v1806 = vmul.f32 %v458, %v1793
          %v1807 = vmul.f32 %v459, %v1793
          %v1808 = vmul.f32 %v461, %v1793
          %v1809 = vmul.f32 %v462, %v1793
          %v1810 = vadd.f32 %v1773, %v1794
          %v1811 = vadd.f32 %v1774, %v1795
          %v1812 = vadd.f32 %v1775, %v1796
          %v1813 = vadd.f32 %v1776, %v1797
          %v1814 = vadd.f32 %v1777, %v1798
          %v1815 = vadd.f32 %v1778, %v1799
          %v1816 = vadd.f32 %v1779, %v1800
          %v1817 = vadd.f32 %v1780, %v1801
          %v1818 = vadd.f32 %v1781, %v1802
          %v1819 = vadd.f32 %v1782, %v1803
          %v1820 = vadd.f32 %v1783, %v1804
          %v1821 = vadd.f32 %v1784, %v1805
          %v1822 = vadd.f32 %v1785, %v1806
          %v1823 = vadd.f32 %v1786, %v1807
          %v1824 = vadd.f32 %v1787, %v1808
          %v1825 = vadd.f32 %v1788, %v1809
          %v1826 = vld [vmem:[#allocation6 + $0x11] sm:$0x1]
          %v1827 = vlaneseq
          %v1828 = vshrl.u32 %v1827, 7
          %v1829 = vsub.s32 0, %v1828
          %v1830 = vrot.slane %v1826, %v1829
          %v1831 = vmul.f32 %v520, %v1830
          %v1832 = vmul.f32 %v521, %v1830
          %v1833 = vmul.f32 %v523, %v1830
          %v1834 = vmul.f32 %v524, %v1830
          %v1835 = vmul.f32 %v526, %v1830
          %v1836 = vmul.f32 %v527, %v1830
          %v1837 = vmul.f32 %v529, %v1830
          %v1838 = vmul.f32 %v530, %v1830
          %v1839 = vmul.f32 %v532, %v1830
          %v1840 = vmul.f32 %v533, %v1830
          %v1841 = vmul.f32 %v535, %v1830
          %v1842 = vmul.f32 %v536, %v1830
          %v1843 = vmul.f32 %v538, %v1830
          %v1844 = vmul.f32 %v539, %v1830
          %v1845 = vmul.f32 %v541, %v1830
          %v1846 = vmul.f32 %v542, %v1830
          %v1847 = vadd.f32 %v1810, %v1831
          %v1848 = vadd.f32 %v1811, %v1832
          %v1849 = vadd.f32 %v1812, %v1833
          %v1850 = vadd.f32 %v1813, %v1834
          %v1851 = vadd.f32 %v1814, %v1835
          %v1852 = vadd.f32 %v1815, %v1836
          %v1853 = vadd.f32 %v1816, %v1837
          %v1854 = vadd.f32 %v1817, %v1838
          %v1855 = vadd.f32 %v1818, %v1839
          %v1856 = vadd.f32 %v1819, %v1840
          %v1857 = vadd.f32 %v1820, %v1841
          %v1858 = vadd.f32 %v1821, %v1842
          %v1859 = vadd.f32 %v1822, %v1843
          %v1860 = vadd.f32 %v1823, %v1844
          %v1861 = vadd.f32 %v1824, %v1845
          %v1862 = vadd.f32 %v1825, %v1846
          %v1863 = vld [vmem:[#allocation6 + $0x18] sm:$0x1]
          %v1864 = vlaneseq
          %v1865 = vshrl.u32 %v1864, 7
          %v1866 = vsub.s32 0, %v1865
          %v1867 = vrot.slane %v1863, %v1866
          %v1868 = vmul.f32 %v600, %v1867
          %v1869 = vmul.f32 %v601, %v1867
          %v1870 = vmul.f32 %v603, %v1867
          %v1871 = vmul.f32 %v604, %v1867
          %v1872 = vmul.f32 %v606, %v1867
          %v1873 = vmul.f32 %v607, %v1867
          %v1874 = vmul.f32 %v609, %v1867
          %v1875 = vmul.f32 %v610, %v1867
          %v1876 = vmul.f32 %v612, %v1867
          %v1877 = vmul.f32 %v613, %v1867
          %v1878 = vmul.f32 %v615, %v1867
          %v1879 = vmul.f32 %v616, %v1867
          %v1880 = vmul.f32 %v618, %v1867
          %v1881 = vmul.f32 %v619, %v1867
          %v1882 = vmul.f32 %v621, %v1867
          %v1883 = vmul.f32 %v622, %v1867
          %v1884 = vadd.f32 %v1847, %v1868
          %v1885 = vadd.f32 %v1848, %v1869
          %v1886 = vadd.f32 %v1849, %v1870
          %v1887 = vadd.f32 %v1850, %v1871
          %v1888 = vadd.f32 %v1851, %v1872
          %v1889 = vadd.f32 %v1852, %v1873
          %v1890 = vadd.f32 %v1853, %v1874
          %v1891 = vadd.f32 %v1854, %v1875
          %v1892 = vadd.f32 %v1855, %v1876
          %v1893 = vadd.f32 %v1856, %v1877
          %v1894 = vadd.f32 %v1857, %v1878
          %v1895 = vadd.f32 %v1858, %v1879
          %v1896 = vadd.f32 %v1859, %v1880
          %v1897 = vadd.f32 %v1860, %v1881
          %v1898 = vadd.f32 %v1861, %v1882
          %v1899 = vadd.f32 %v1862, %v1883
          %v1900 = vld [vmem:[#allocation6 + $0x1f] sm:$0x1]
          %v1901 = vlaneseq
          %v1902 = vshrl.u32 %v1901, 7
          %v1903 = vsub.s32 0, %v1902
          %v1904 = vrot.slane %v1900, %v1903
          %v1905 = vmul.f32 %v680, %v1904
          %v1906 = vmul.f32 %v681, %v1904
          %v1907 = vmul.f32 %v683, %v1904
          %v1908 = vmul.f32 %v684, %v1904
          %v1909 = vmul.f32 %v686, %v1904
          %v1910 = vmul.f32 %v687, %v1904
          %v1911 = vmul.f32 %v689, %v1904
          %v1912 = vmul.f32 %v690, %v1904
          %v1913 = vmul.f32 %v692, %v1904
          %v1914 = vmul.f32 %v693, %v1904
          %v1915 = vmul.f32 %v695, %v1904
          %v1916 = vmul.f32 %v696, %v1904
          %v1917 = vmul.f32 %v698, %v1904
          %v1918 = vmul.f32 %v699, %v1904
          %v1919 = vmul.f32 %v701, %v1904
          %v1920 = vmul.f32 %v702, %v1904
          %v1921 = vadd.f32 %v1884, %v1905
          %v1922 = vadd.f32 %v1885, %v1906
          %v1923 = vadd.f32 %v1886, %v1907
          %v1924 = vadd.f32 %v1887, %v1908
          %v1925 = vadd.f32 %v1888, %v1909
          %v1926 = vadd.f32 %v1889, %v1910
          %v1927 = vadd.f32 %v1890, %v1911
          %v1928 = vadd.f32 %v1891, %v1912
          %v1929 = vadd.f32 %v1892, %v1913
          %v1930 = vadd.f32 %v1893, %v1914
          %v1931 = vadd.f32 %v1894, %v1915
          %v1932 = vadd.f32 %v1895, %v1916
          %v1933 = vadd.f32 %v1896, %v1917
          %v1934 = vadd.f32 %v1897, %v1918
          %v1935 = vadd.f32 %v1898, %v1919
          %v1936 = vadd.f32 %v1899, %v1920
          %v1937 = vld [vmem:[#allocation6 + $0x26] sm:$0x1]
          %v1938 = vlaneseq
          %v1939 = vshrl.u32 %v1938, 7
          %v1940 = vsub.s32 0, %v1939
          %v1941 = vrot.slane %v1937, %v1940
          %v1942 = vmul.f32 %v760, %v1941
          %v1943 = vmul.f32 %v761, %v1941
          %v1944 = vmul.f32 %v763, %v1941
          %v1945 = vmul.f32 %v764, %v1941
          %v1946 = vmul.f32 %v766, %v1941
          %v1947 = vmul.f32 %v767, %v1941
          %v1948 = vmul.f32 %v769, %v1941
          %v1949 = vmul.f32 %v770, %v1941
          %v1950 = vmul.f32 %v772, %v1941
          %v1951 = vmul.f32 %v773, %v1941
          %v1952 = vmul.f32 %v775, %v1941
          %v1953 = vmul.f32 %v776, %v1941
          %v1954 = vmul.f32 %v778, %v1941
          %v1955 = vmul.f32 %v779, %v1941
          %v1956 = vmul.f32 %v781, %v1941
          %v1957 = vmul.f32 %v782, %v1941
          %v1958 = vadd.f32 %v1921, %v1942
          %v1959 = vadd.f32 %v1922, %v1943
          %v1960 = vadd.f32 %v1923, %v1944
          %v1961 = vadd.f32 %v1924, %v1945
          %v1962 = vadd.f32 %v1925, %v1946
          %v1963 = vadd.f32 %v1926, %v1947
          %v1964 = vadd.f32 %v1927, %v1948
          %v1965 = vadd.f32 %v1928, %v1949
          %v1966 = vadd.f32 %v1929, %v1950
          %v1967 = vadd.f32 %v1930, %v1951
          %v1968 = vadd.f32 %v1931, %v1952
          %v1969 = vadd.f32 %v1932, %v1953
          %v1970 = vadd.f32 %v1933, %v1954
          %v1971 = vadd.f32 %v1934, %v1955
          %v1972 = vadd.f32 %v1935, %v1956
          %v1973 = vadd.f32 %v1936, %v1957
          %v1974 = vld [vmem:[#allocation6 + $0x2d] sm:$0x1]
          %v1975 = vlaneseq
          %v1976 = vshrl.u32 %v1975, 7
          %v1977 = vsub.s32 0, %v1976
          %v1978 = vrot.slane %v1974, %v1977
          %v1979 = vmul.f32 %v840, %v1978
          %v1980 = vmul.f32 %v841, %v1978
          %v1981 = vmul.f32 %v843, %v1978
          %v1982 = vmul.f32 %v844, %v1978
          %v1983 = vmul.f32 %v846, %v1978
          %v1984 = vmul.f32 %v847, %v1978
          %v1985 = vmul.f32 %v849, %v1978
          %v1986 = vmul.f32 %v850, %v1978
          %v1987 = vmul.f32 %v852, %v1978
          %v1988 = vmul.f32 %v853, %v1978
          %v1989 = vmul.f32 %v855, %v1978
          %v1990 = vmul.f32 %v856, %v1978
          %v1991 = vmul.f32 %v858, %v1978
          %v1992 = vmul.f32 %v859, %v1978
          %v1993 = vmul.f32 %v861, %v1978
          %v1994 = vmul.f32 %v862, %v1978
          %v1995 = vadd.f32 %v1958, %v1979
          %v1996 = vadd.f32 %v1959, %v1980
          %v1997 = vadd.f32 %v1960, %v1981
          %v1998 = vadd.f32 %v1961, %v1982
          %v1999 = vadd.f32 %v1962, %v1983
          %v2000 = vadd.f32 %v1963, %v1984
          %v2001 = vadd.f32 %v1964, %v1985
          %v2002 = vadd.f32 %v1965, %v1986
          %v2003 = vadd.f32 %v1966, %v1987
          %v2004 = vadd.f32 %v1967, %v1988
          %v2005 = vadd.f32 %v1968, %v1989
          %v2006 = vadd.f32 %v1969, %v1990
          %v2007 = vadd.f32 %v1970, %v1991
          %v2008 = vadd.f32 %v1971, %v1992
          %v2009 = vadd.f32 %v1972, %v1993
          %v2010 = vadd.f32 %v1973, %v1994
          %v2011 = vadd.f32 %v1752, %v1995
          %v2012 = vadd.f32 %v1753, %v1996
          %v2013 = vadd.f32 %v1754, %v1997
          %v2014 = vadd.f32 %v1755, %v1998
          %v2015 = vadd.f32 %v1756, %v1999
          %v2016 = vadd.f32 %v1757, %v2000
          %v2017 = vadd.f32 %v1758, %v2001
          %v2018 = vadd.f32 %v1759, %v2002
          %v2019 = vadd.f32 %v1760, %v2003
          %v2020 = vadd.f32 %v1761, %v2004
          %v2021 = vadd.f32 %v1762, %v2005
          %v2022 = vadd.f32 %v1763, %v2006
          %v2023 = vadd.f32 %v1764, %v2007
          %v2024 = vadd.f32 %v1765, %v2008
          %v2025 = vadd.f32 %v1766, %v2009
          %v2026 = vadd.f32 %v1767, %v2010
          %v2027 = vld [vmem:[#allocation6 + $0x4] sm:$0x1]
          %v2028 = vlaneseq
          %v2029 = vshrl.u32 %v2028, 7
          %v2030 = vsub.s32 0, %v2029
          %v2031 = vrot.slane %v2027, %v2030
          %v2032 = vmul.f32 %v384, %v2031
          %v2033 = vmul.f32 %v385, %v2031
          %v2034 = vmul.f32 %v386, %v2031
          %v2035 = vmul.f32 %v387, %v2031
          %v2036 = vmul.f32 %v388, %v2031
          %v2037 = vmul.f32 %v389, %v2031
          %v2038 = vmul.f32 %v390, %v2031
          %v2039 = vmul.f32 %v391, %v2031
          %v2040 = vmul.f32 %v392, %v2031
          %v2041 = vmul.f32 %v393, %v2031
          %v2042 = vmul.f32 %v394, %v2031
          %v2043 = vmul.f32 %v395, %v2031
          %v2044 = vmul.f32 %v396, %v2031
          %v2045 = vmul.f32 %v397, %v2031
          %v2046 = vmul.f32 %v398, %v2031
          %v2047 = vmul.f32 %v399, %v2031
          %v2048 = vmul.f32 %v400, %v2031
          %v2049 = vmul.f32 %v401, %v2031
          %v2050 = vmul.f32 %v402, %v2031
          %v2051 = vmul.f32 %v403, %v2031
          %v2052 = vmul.f32 %v404, %v2031
          %v2053 = vmul.f32 %v405, %v2031
          %v2054 = vmul.f32 %v406, %v2031
          %v2055 = vmul.f32 %v407, %v2031
          %v2056 = vld [vmem:[#allocation6 + $0xb] sm:$0x1]
          %v2057 = vlaneseq
          %v2058 = vshrl.u32 %v2057, 7
          %v2059 = vsub.s32 0, %v2058
          %v2060 = vrot.slane %v2056, %v2059
          %v2061 = vmul.f32 %v440, %v2060
          %v2062 = vmul.f32 %v441, %v2060
          %v2063 = vmul.f32 %v442, %v2060
          %v2064 = vmul.f32 %v443, %v2060
          %v2065 = vmul.f32 %v444, %v2060
          %v2066 = vmul.f32 %v445, %v2060
          %v2067 = vmul.f32 %v446, %v2060
          %v2068 = vmul.f32 %v447, %v2060
          %v2069 = vmul.f32 %v448, %v2060
          %v2070 = vmul.f32 %v449, %v2060
          %v2071 = vmul.f32 %v450, %v2060
          %v2072 = vmul.f32 %v451, %v2060
          %v2073 = vmul.f32 %v452, %v2060
          %v2074 = vmul.f32 %v453, %v2060
          %v2075 = vmul.f32 %v454, %v2060
          %v2076 = vmul.f32 %v455, %v2060
          %v2077 = vmul.f32 %v456, %v2060
          %v2078 = vmul.f32 %v457, %v2060
          %v2079 = vmul.f32 %v458, %v2060
          %v2080 = vmul.f32 %v459, %v2060
          %v2081 = vmul.f32 %v460, %v2060
          %v2082 = vmul.f32 %v461, %v2060
          %v2083 = vmul.f32 %v462, %v2060
          %v2084 = vmul.f32 %v463, %v2060
          %v2085 = vadd.f32 %v2032, %v2061
          %v2086 = vadd.f32 %v2033, %v2062
          %v2087 = vadd.f32 %v2034, %v2063
          %v2088 = vadd.f32 %v2035, %v2064
          %v2089 = vadd.f32 %v2036, %v2065
          %v2090 = vadd.f32 %v2037, %v2066
          %v2091 = vadd.f32 %v2038, %v2067
          %v2092 = vadd.f32 %v2039, %v2068
          %v2093 = vadd.f32 %v2040, %v2069
          %v2094 = vadd.f32 %v2041, %v2070
          %v2095 = vadd.f32 %v2042, %v2071
          %v2096 = vadd.f32 %v2043, %v2072
          %v2097 = vadd.f32 %v2044, %v2073
          %v2098 = vadd.f32 %v2045, %v2074
          %v2099 = vadd.f32 %v2046, %v2075
          %v2100 = vadd.f32 %v2047, %v2076
          %v2101 = vadd.f32 %v2048, %v2077
          %v2102 = vadd.f32 %v2049, %v2078
          %v2103 = vadd.f32 %v2050, %v2079
          %v2104 = vadd.f32 %v2051, %v2080
          %v2105 = vadd.f32 %v2052, %v2081
          %v2106 = vadd.f32 %v2053, %v2082
          %v2107 = vadd.f32 %v2054, %v2083
          %v2108 = vadd.f32 %v2055, %v2084
          %v2109 = vld [vmem:[#allocation6 + $0x12] sm:$0x1]
          %v2110 = vlaneseq
          %v2111 = vshrl.u32 %v2110, 7
          %v2112 = vsub.s32 0, %v2111
          %v2113 = vrot.slane %v2109, %v2112
          %v2114 = vmul.f32 %v520, %v2113
          %v2115 = vmul.f32 %v521, %v2113
          %v2116 = vmul.f32 %v522, %v2113
          %v2117 = vmul.f32 %v523, %v2113
          %v2118 = vmul.f32 %v524, %v2113
          %v2119 = vmul.f32 %v525, %v2113
          %v2120 = vmul.f32 %v526, %v2113
          %v2121 = vmul.f32 %v527, %v2113
          %v2122 = vmul.f32 %v528, %v2113
          %v2123 = vmul.f32 %v529, %v2113
          %v2124 = vmul.f32 %v530, %v2113
          %v2125 = vmul.f32 %v531, %v2113
          %v2126 = vmul.f32 %v532, %v2113
          %v2127 = vmul.f32 %v533, %v2113
          %v2128 = vmul.f32 %v534, %v2113
          %v2129 = vmul.f32 %v535, %v2113
          %v2130 = vmul.f32 %v536, %v2113
          %v2131 = vmul.f32 %v537, %v2113
          %v2132 = vmul.f32 %v538, %v2113
          %v2133 = vmul.f32 %v539, %v2113
          %v2134 = vmul.f32 %v540, %v2113
          %v2135 = vmul.f32 %v541, %v2113
          %v2136 = vmul.f32 %v542, %v2113
          %v2137 = vmul.f32 %v543, %v2113
          %v2138 = vadd.f32 %v2085, %v2114
          %v2139 = vadd.f32 %v2086, %v2115
          %v2140 = vadd.f32 %v2087, %v2116
          %v2141 = vadd.f32 %v2088, %v2117
          %v2142 = vadd.f32 %v2089, %v2118
          %v2143 = vadd.f32 %v2090, %v2119
          %v2144 = vadd.f32 %v2091, %v2120
          %v2145 = vadd.f32 %v2092, %v2121
          %v2146 = vadd.f32 %v2093, %v2122
          %v2147 = vadd.f32 %v2094, %v2123
          %v2148 = vadd.f32 %v2095, %v2124
          %v2149 = vadd.f32 %v2096, %v2125
          %v2150 = vadd.f32 %v2097, %v2126
          %v2151 = vadd.f32 %v2098, %v2127
          %v2152 = vadd.f32 %v2099, %v2128
          %v2153 = vadd.f32 %v2100, %v2129
          %v2154 = vadd.f32 %v2101, %v2130
          %v2155 = vadd.f32 %v2102, %v2131
          %v2156 = vadd.f32 %v2103, %v2132
          %v2157 = vadd.f32 %v2104, %v2133
          %v2158 = vadd.f32 %v2105, %v2134
          %v2159 = vadd.f32 %v2106, %v2135
          %v2160 = vadd.f32 %v2107, %v2136
          %v2161 = vadd.f32 %v2108, %v2137
          %v2162 = vld [vmem:[#allocation6 + $0x19] sm:$0x1]
          %v2163 = vlaneseq
          %v2164 = vshrl.u32 %v2163, 7
          %v2165 = vsub.s32 0, %v2164
          %v2166 = vrot.slane %v2162, %v2165
          %v2167 = vmul.f32 %v600, %v2166
          %v2168 = vmul.f32 %v601, %v2166
          %v2169 = vmul.f32 %v602, %v2166
          %v2170 = vmul.f32 %v603, %v2166
          %v2171 = vmul.f32 %v604, %v2166
          %v2172 = vmul.f32 %v605, %v2166
          %v2173 = vmul.f32 %v606, %v2166
          %v2174 = vmul.f32 %v607, %v2166
          %v2175 = vmul.f32 %v608, %v2166
          %v2176 = vmul.f32 %v609, %v2166
          %v2177 = vmul.f32 %v610, %v2166
          %v2178 = vmul.f32 %v611, %v2166
          %v2179 = vmul.f32 %v612, %v2166
          %v2180 = vmul.f32 %v613, %v2166
          %v2181 = vmul.f32 %v614, %v2166
          %v2182 = vmul.f32 %v615, %v2166
          %v2183 = vmul.f32 %v616, %v2166
          %v2184 = vmul.f32 %v617, %v2166
          %v2185 = vmul.f32 %v618, %v2166
          %v2186 = vmul.f32 %v619, %v2166
          %v2187 = vmul.f32 %v620, %v2166
          %v2188 = vmul.f32 %v621, %v2166
          %v2189 = vmul.f32 %v622, %v2166
          %v2190 = vmul.f32 %v623, %v2166
          %v2191 = vadd.f32 %v2138, %v2167
          %v2192 = vadd.f32 %v2139, %v2168
          %v2193 = vadd.f32 %v2140, %v2169
          %v2194 = vadd.f32 %v2141, %v2170
          %v2195 = vadd.f32 %v2142, %v2171
          %v2196 = vadd.f32 %v2143, %v2172
          %v2197 = vadd.f32 %v2144, %v2173
          %v2198 = vadd.f32 %v2145, %v2174
          %v2199 = vadd.f32 %v2146, %v2175
          %v2200 = vadd.f32 %v2147, %v2176
          %v2201 = vadd.f32 %v2148, %v2177
          %v2202 = vadd.f32 %v2149, %v2178
          %v2203 = vadd.f32 %v2150, %v2179
          %v2204 = vadd.f32 %v2151, %v2180
          %v2205 = vadd.f32 %v2152, %v2181
          %v2206 = vadd.f32 %v2153, %v2182
          %v2207 = vadd.f32 %v2154, %v2183
          %v2208 = vadd.f32 %v2155, %v2184
          %v2209 = vadd.f32 %v2156, %v2185
          %v2210 = vadd.f32 %v2157, %v2186
          %v2211 = vadd.f32 %v2158, %v2187
          %v2212 = vadd.f32 %v2159, %v2188
          %v2213 = vadd.f32 %v2160, %v2189
          %v2214 = vadd.f32 %v2161, %v2190
          %v2215 = vld [vmem:[#allocation6 + $0x20] sm:$0x1]
          %v2216 = vlaneseq
          %v2217 = vshrl.u32 %v2216, 7
          %v2218 = vsub.s32 0, %v2217
          %v2219 = vrot.slane %v2215, %v2218
          %v2220 = vmul.f32 %v680, %v2219
          %v2221 = vmul.f32 %v681, %v2219
          %v2222 = vmul.f32 %v682, %v2219
          %v2223 = vmul.f32 %v683, %v2219
          %v2224 = vmul.f32 %v684, %v2219
          %v2225 = vmul.f32 %v685, %v2219
          %v2226 = vmul.f32 %v686, %v2219
          %v2227 = vmul.f32 %v687, %v2219
          %v2228 = vmul.f32 %v688, %v2219
          %v2229 = vmul.f32 %v689, %v2219
          %v2230 = vmul.f32 %v690, %v2219
          %v2231 = vmul.f32 %v691, %v2219
          %v2232 = vmul.f32 %v692, %v2219
          %v2233 = vmul.f32 %v693, %v2219
          %v2234 = vmul.f32 %v694, %v2219
          %v2235 = vmul.f32 %v695, %v2219
          %v2236 = vmul.f32 %v696, %v2219
          %v2237 = vmul.f32 %v697, %v2219
          %v2238 = vmul.f32 %v698, %v2219
          %v2239 = vmul.f32 %v699, %v2219
          %v2240 = vmul.f32 %v700, %v2219
          %v2241 = vmul.f32 %v701, %v2219
          %v2242 = vmul.f32 %v702, %v2219
          %v2243 = vmul.f32 %v703, %v2219
          %v2244 = vadd.f32 %v2191, %v2220
          %v2245 = vadd.f32 %v2192, %v2221
          %v2246 = vadd.f32 %v2193, %v2222
          %v2247 = vadd.f32 %v2194, %v2223
          %v2248 = vadd.f32 %v2195, %v2224
          %v2249 = vadd.f32 %v2196, %v2225
          %v2250 = vadd.f32 %v2197, %v2226
          %v2251 = vadd.f32 %v2198, %v2227
          %v2252 = vadd.f32 %v2199, %v2228
          %v2253 = vadd.f32 %v2200, %v2229
          %v2254 = vadd.f32 %v2201, %v2230
          %v2255 = vadd.f32 %v2202, %v2231
          %v2256 = vadd.f32 %v2203, %v2232
          %v2257 = vadd.f32 %v2204, %v2233
          %v2258 = vadd.f32 %v2205, %v2234
          %v2259 = vadd.f32 %v2206, %v2235
          %v2260 = vadd.f32 %v2207, %v2236
          %v2261 = vadd.f32 %v2208, %v2237
          %v2262 = vadd.f32 %v2209, %v2238
          %v2263 = vadd.f32 %v2210, %v2239
          %v2264 = vadd.f32 %v2211, %v2240
          %v2265 = vadd.f32 %v2212, %v2241
          %v2266 = vadd.f32 %v2213, %v2242
          %v2267 = vadd.f32 %v2214, %v2243
          %v2268 = vld [vmem:[#allocation6 + $0x27] sm:$0x1]
          %v2269 = vlaneseq
          %v2270 = vshrl.u32 %v2269, 7
          %v2271 = vsub.s32 0, %v2270
          %v2272 = vrot.slane %v2268, %v2271
          %v2273 = vmul.f32 %v760, %v2272
          %v2274 = vmul.f32 %v761, %v2272
          %v2275 = vmul.f32 %v762, %v2272
          %v2276 = vmul.f32 %v763, %v2272
          %v2277 = vmul.f32 %v764, %v2272
          %v2278 = vmul.f32 %v765, %v2272
          %v2279 = vmul.f32 %v766, %v2272
          %v2280 = vmul.f32 %v767, %v2272
          %v2281 = vmul.f32 %v768, %v2272
          %v2282 = vmul.f32 %v769, %v2272
          %v2283 = vmul.f32 %v770, %v2272
          %v2284 = vmul.f32 %v771, %v2272
          %v2285 = vmul.f32 %v772, %v2272
          %v2286 = vmul.f32 %v773, %v2272
          %v2287 = vmul.f32 %v774, %v2272
          %v2288 = vmul.f32 %v775, %v2272
          %v2289 = vmul.f32 %v776, %v2272
          %v2290 = vmul.f32 %v777, %v2272
          %v2291 = vmul.f32 %v778, %v2272
          %v2292 = vmul.f32 %v779, %v2272
          %v2293 = vmul.f32 %v780, %v2272
          %v2294 = vmul.f32 %v781, %v2272
          %v2295 = vmul.f32 %v782, %v2272
          %v2296 = vmul.f32 %v783, %v2272
          %v2297 = vadd.f32 %v2244, %v2273
          %v2298 = vadd.f32 %v2245, %v2274
          %v2299 = vadd.f32 %v2246, %v2275
          %v2300 = vadd.f32 %v2247, %v2276
          %v2301 = vadd.f32 %v2248, %v2277
          %v2302 = vadd.f32 %v2249, %v2278
          %v2303 = vadd.f32 %v2250, %v2279
          %v2304 = vadd.f32 %v2251, %v2280
          %v2305 = vadd.f32 %v2252, %v2281
          %v2306 = vadd.f32 %v2253, %v2282
          %v2307 = vadd.f32 %v2254, %v2283
          %v2308 = vadd.f32 %v2255, %v2284
          %v2309 = vadd.f32 %v2256, %v2285
          %v2310 = vadd.f32 %v2257, %v2286
          %v2311 = vadd.f32 %v2258, %v2287
          %v2312 = vadd.f32 %v2259, %v2288
          %v2313 = vadd.f32 %v2260, %v2289
          %v2314 = vadd.f32 %v2261, %v2290
          %v2315 = vadd.f32 %v2262, %v2291
          %v2316 = vadd.f32 %v2263, %v2292
          %v2317 = vadd.f32 %v2264, %v2293
          %v2318 = vadd.f32 %v2265, %v2294
          %v2319 = vadd.f32 %v2266, %v2295
          %v2320 = vadd.f32 %v2267, %v2296
          %v2321 = vld [vmem:[#allocation6 + $0x2e] sm:$0x1]
          %v2322 = vlaneseq
          %v2323 = vshrl.u32 %v2322, 7
          %v2324 = vsub.s32 0, %v2323
          %v2325 = vrot.slane %v2321, %v2324
          %v2326 = vmul.f32 %v840, %v2325
          %v2327 = vmul.f32 %v841, %v2325
          %v2328 = vmul.f32 %v842, %v2325
          %v2329 = vmul.f32 %v843, %v2325
          %v2330 = vmul.f32 %v844, %v2325
          %v2331 = vmul.f32 %v845, %v2325
          %v2332 = vmul.f32 %v846, %v2325
          %v2333 = vmul.f32 %v847, %v2325
          %v2334 = vmul.f32 %v848, %v2325
          %v2335 = vmul.f32 %v849, %v2325
          %v2336 = vmul.f32 %v850, %v2325
          %v2337 = vmul.f32 %v851, %v2325
          %v2338 = vmul.f32 %v852, %v2325
          %v2339 = vmul.f32 %v853, %v2325
          %v2340 = vmul.f32 %v854, %v2325
          %v2341 = vmul.f32 %v855, %v2325
          %v2342 = vmul.f32 %v856, %v2325
          %v2343 = vmul.f32 %v857, %v2325
          %v2344 = vmul.f32 %v858, %v2325
          %v2345 = vmul.f32 %v859, %v2325
          %v2346 = vmul.f32 %v860, %v2325
          %v2347 = vmul.f32 %v861, %v2325
          %v2348 = vmul.f32 %v862, %v2325
          %v2349 = vmul.f32 %v863, %v2325
          %v2350 = vadd.f32 %v2297, %v2326
          %v2351 = vadd.f32 %v2298, %v2327
          %v2352 = vadd.f32 %v2299, %v2328
          %v2353 = vadd.f32 %v2300, %v2329
          %v2354 = vadd.f32 %v2301, %v2330
          %v2355 = vadd.f32 %v2302, %v2331
          %v2356 = vadd.f32 %v2303, %v2332
          %v2357 = vadd.f32 %v2304, %v2333
          %v2358 = vadd.f32 %v2305, %v2334
          %v2359 = vadd.f32 %v2306, %v2335
          %v2360 = vadd.f32 %v2307, %v2336
          %v2361 = vadd.f32 %v2308, %v2337
          %v2362 = vadd.f32 %v2309, %v2338
          %v2363 = vadd.f32 %v2310, %v2339
          %v2364 = vadd.f32 %v2311, %v2340
          %v2365 = vadd.f32 %v2312, %v2341
          %v2366 = vadd.f32 %v2313, %v2342
          %v2367 = vadd.f32 %v2314, %v2343
          %v2368 = vadd.f32 %v2315, %v2344
          %v2369 = vadd.f32 %v2316, %v2345
          %v2370 = vadd.f32 %v2317, %v2346
          %v2371 = vadd.f32 %v2318, %v2347
          %v2372 = vadd.f32 %v2319, %v2348
          %v2373 = vadd.f32 %v2320, %v2349
          %v2374 = vrot.slane %v2350, 1
          %v2375 = vrot.slane %v2353, 1
          %v2376 = vrot.slane %v2356, 1
          %v2377 = vrot.slane %v2359, 1
          %v2378 = vrot.slane %v2362, 1
          %v2379 = vrot.slane %v2365, 1
          %v2380 = vrot.slane %v2368, 1
          %v2381 = vrot.slane %v2371, 1
          %v2382 = vrot.slane %v2351, 1
          %v2383 = vrot.slane %v2354, 1
          %v2384 = vrot.slane %v2357, 1
          %v2385 = vrot.slane %v2360, 1
          %v2386 = vrot.slane %v2363, 1
          %v2387 = vrot.slane %v2366, 1
          %v2388 = vrot.slane %v2369, 1
          %v2389 = vrot.slane %v2372, 1
          %v2390 = vrot.slane %v2352, 1
          %v2391 = vrot.slane %v2355, 1
          %v2392 = vrot.slane %v2358, 1
          %v2393 = vrot.slane %v2361, 1
          %v2394 = vrot.slane %v2364, 1
          %v2395 = vrot.slane %v2367, 1
          %v2396 = vrot.slane %v2370, 1
          %v2397 = vrot.slane %v2373, 1
          %vm2398 = vcmp.lt.s32.totalorder %v942, 7
          %v2399 = vsel %vm2398, %v2382, %v2390
          %v2400 = vsel %vm2398, %v2383, %v2391
          %v2401 = vsel %vm2398, %v2384, %v2392
          %v2402 = vsel %vm2398, %v2385, %v2393
          %v2403 = vsel %vm2398, %v2386, %v2394
          %v2404 = vsel %vm2398, %v2387, %v2395
          %v2405 = vsel %vm2398, %v2388, %v2396
          %v2406 = vsel %vm2398, %v2389, %v2397
          %v2407 = vsel %vm2398, %v2374, %v2382
          %v2408 = vsel %vm2398, %v2375, %v2383
          %v2409 = vsel %vm2398, %v2376, %v2384
          %v2410 = vsel %vm2398, %v2377, %v2385
          %v2411 = vsel %vm2398, %v2378, %v2386
          %v2412 = vsel %vm2398, %v2379, %v2387
          %v2413 = vsel %vm2398, %v2380, %v2388
          %v2414 = vsel %vm2398, %v2381, %v2389
          %v2415 = vadd.f32 %v2011, %v2407
          %v2416 = vadd.f32 %v2012, %v2399
          %v2417 = vadd.f32 %v2013, %v2408
          %v2418 = vadd.f32 %v2014, %v2400
          %v2419 = vadd.f32 %v2015, %v2409
          %v2420 = vadd.f32 %v2016, %v2401
          %v2421 = vadd.f32 %v2017, %v2410
          %v2422 = vadd.f32 %v2018, %v2402
          %v2423 = vadd.f32 %v2019, %v2411
          %v2424 = vadd.f32 %v2020, %v2403
          %v2425 = vadd.f32 %v2021, %v2412
          %v2426 = vadd.f32 %v2022, %v2404
          %v2427 = vadd.f32 %v2023, %v2413
          %v2428 = vadd.f32 %v2024, %v2405
          %v2429 = vadd.f32 %v2025, %v2414
          %v2430 = vadd.f32 %v2026, %v2406
          %v2431 = vld [vmem:[#allocation6 + $0x5] sm:$0x1]
          %v2432 = vlaneseq
          %v2433 = vshrl.u32 %v2432, 7
          %v2434 = vsub.s32 0, %v2433
          %v2435 = vrot.slane %v2431, %v2434
          %v2436 = vmul.f32 %v384, %v2435
          %v2437 = vmul.f32 %v385, %v2435
          %v2438 = vmul.f32 %v386, %v2435
          %v2439 = vmul.f32 %v387, %v2435
          %v2440 = vmul.f32 %v388, %v2435
          %v2441 = vmul.f32 %v389, %v2435
          %v2442 = vmul.f32 %v390, %v2435
          %v2443 = vmul.f32 %v391, %v2435
          %v2444 = vmul.f32 %v392, %v2435
          %v2445 = vmul.f32 %v393, %v2435
          %v2446 = vmul.f32 %v394, %v2435
          %v2447 = vmul.f32 %v395, %v2435
          %v2448 = vmul.f32 %v396, %v2435
          %v2449 = vmul.f32 %v397, %v2435
          %v2450 = vmul.f32 %v398, %v2435
          %v2451 = vmul.f32 %v399, %v2435
          %v2452 = vmul.f32 %v400, %v2435
          %v2453 = vmul.f32 %v401, %v2435
          %v2454 = vmul.f32 %v402, %v2435
          %v2455 = vmul.f32 %v403, %v2435
          %v2456 = vmul.f32 %v404, %v2435
          %v2457 = vmul.f32 %v405, %v2435
          %v2458 = vmul.f32 %v406, %v2435
          %v2459 = vmul.f32 %v407, %v2435
          %v2460 = vld [vmem:[#allocation6 + $0xc] sm:$0x1]
          %v2461 = vlaneseq
          %v2462 = vshrl.u32 %v2461, 7
          %v2463 = vsub.s32 0, %v2462
          %v2464 = vrot.slane %v2460, %v2463
          %v2465 = vmul.f32 %v440, %v2464
          %v2466 = vmul.f32 %v441, %v2464
          %v2467 = vmul.f32 %v442, %v2464
          %v2468 = vmul.f32 %v443, %v2464
          %v2469 = vmul.f32 %v444, %v2464
          %v2470 = vmul.f32 %v445, %v2464
          %v2471 = vmul.f32 %v446, %v2464
          %v2472 = vmul.f32 %v447, %v2464
          %v2473 = vmul.f32 %v448, %v2464
          %v2474 = vmul.f32 %v449, %v2464
          %v2475 = vmul.f32 %v450, %v2464
          %v2476 = vmul.f32 %v451, %v2464
          %v2477 = vmul.f32 %v452, %v2464
          %v2478 = vmul.f32 %v453, %v2464
          %v2479 = vmul.f32 %v454, %v2464
          %v2480 = vmul.f32 %v455, %v2464
          %v2481 = vmul.f32 %v456, %v2464
          %v2482 = vmul.f32 %v457, %v2464
          %v2483 = vmul.f32 %v458, %v2464
          %v2484 = vmul.f32 %v459, %v2464
          %v2485 = vmul.f32 %v460, %v2464
          %v2486 = vmul.f32 %v461, %v2464
          %v2487 = vmul.f32 %v462, %v2464
          %v2488 = vmul.f32 %v463, %v2464
          %v2489 = vadd.f32 %v2436, %v2465
          %v2490 = vadd.f32 %v2437, %v2466
          %v2491 = vadd.f32 %v2438, %v2467
          %v2492 = vadd.f32 %v2439, %v2468
          %v2493 = vadd.f32 %v2440, %v2469
          %v2494 = vadd.f32 %v2441, %v2470
          %v2495 = vadd.f32 %v2442, %v2471
          %v2496 = vadd.f32 %v2443, %v2472
          %v2497 = vadd.f32 %v2444, %v2473
          %v2498 = vadd.f32 %v2445, %v2474
          %v2499 = vadd.f32 %v2446, %v2475
          %v2500 = vadd.f32 %v2447, %v2476
          %v2501 = vadd.f32 %v2448, %v2477
          %v2502 = vadd.f32 %v2449, %v2478
          %v2503 = vadd.f32 %v2450, %v2479
          %v2504 = vadd.f32 %v2451, %v2480
          %v2505 = vadd.f32 %v2452, %v2481
          %v2506 = vadd.f32 %v2453, %v2482
          %v2507 = vadd.f32 %v2454, %v2483
          %v2508 = vadd.f32 %v2455, %v2484
          %v2509 = vadd.f32 %v2456, %v2485
          %v2510 = vadd.f32 %v2457, %v2486
          %v2511 = vadd.f32 %v2458, %v2487
          %v2512 = vadd.f32 %v2459, %v2488
          %v2513 = vld [vmem:[#allocation6 + $0x13] sm:$0x1]
          %v2514 = vlaneseq
          %v2515 = vshrl.u32 %v2514, 7
          %v2516 = vsub.s32 0, %v2515
          %v2517 = vrot.slane %v2513, %v2516
          %v2518 = vmul.f32 %v520, %v2517
          %v2519 = vmul.f32 %v521, %v2517
          %v2520 = vmul.f32 %v522, %v2517
          %v2521 = vmul.f32 %v523, %v2517
          %v2522 = vmul.f32 %v524, %v2517
          %v2523 = vmul.f32 %v525, %v2517
          %v2524 = vmul.f32 %v526, %v2517
          %v2525 = vmul.f32 %v527, %v2517
          %v2526 = vmul.f32 %v528, %v2517
          %v2527 = vmul.f32 %v529, %v2517
          %v2528 = vmul.f32 %v530, %v2517
          %v2529 = vmul.f32 %v531, %v2517
          %v2530 = vmul.f32 %v532, %v2517
          %v2531 = vmul.f32 %v533, %v2517
          %v2532 = vmul.f32 %v534, %v2517
          %v2533 = vmul.f32 %v535, %v2517
          %v2534 = vmul.f32 %v536, %v2517
          %v2535 = vmul.f32 %v537, %v2517
          %v2536 = vmul.f32 %v538, %v2517
          %v2537 = vmul.f32 %v539, %v2517
          %v2538 = vmul.f32 %v540, %v2517
          %v2539 = vmul.f32 %v541, %v2517
          %v2540 = vmul.f32 %v542, %v2517
          %v2541 = vmul.f32 %v543, %v2517
          %v2542 = vadd.f32 %v2489, %v2518
          %v2543 = vadd.f32 %v2490, %v2519
          %v2544 = vadd.f32 %v2491, %v2520
          %v2545 = vadd.f32 %v2492, %v2521
          %v2546 = vadd.f32 %v2493, %v2522
          %v2547 = vadd.f32 %v2494, %v2523
          %v2548 = vadd.f32 %v2495, %v2524
          %v2549 = vadd.f32 %v2496, %v2525
          %v2550 = vadd.f32 %v2497, %v2526
          %v2551 = vadd.f32 %v2498, %v2527
          %v2552 = vadd.f32 %v2499, %v2528
          %v2553 = vadd.f32 %v2500, %v2529
          %v2554 = vadd.f32 %v2501, %v2530
          %v2555 = vadd.f32 %v2502, %v2531
          %v2556 = vadd.f32 %v2503, %v2532
          %v2557 = vadd.f32 %v2504, %v2533
          %v2558 = vadd.f32 %v2505, %v2534
          %v2559 = vadd.f32 %v2506, %v2535
          %v2560 = vadd.f32 %v2507, %v2536
          %v2561 = vadd.f32 %v2508, %v2537
          %v2562 = vadd.f32 %v2509, %v2538
          %v2563 = vadd.f32 %v2510, %v2539
          %v2564 = vadd.f32 %v2511, %v2540
          %v2565 = vadd.f32 %v2512, %v2541
          %v2566 = vld [vmem:[#allocation6 + $0x1a] sm:$0x1]
          %v2567 = vlaneseq
          %v2568 = vshrl.u32 %v2567, 7
          %v2569 = vsub.s32 0, %v2568
          %v2570 = vrot.slane %v2566, %v2569
          %v2571 = vmul.f32 %v600, %v2570
          %v2572 = vmul.f32 %v601, %v2570
          %v2573 = vmul.f32 %v602, %v2570
          %v2574 = vmul.f32 %v603, %v2570
          %v2575 = vmul.f32 %v604, %v2570
          %v2576 = vmul.f32 %v605, %v2570
          %v2577 = vmul.f32 %v606, %v2570
          %v2578 = vmul.f32 %v607, %v2570
          %v2579 = vmul.f32 %v608, %v2570
          %v2580 = vmul.f32 %v609, %v2570
          %v2581 = vmul.f32 %v610, %v2570
          %v2582 = vmul.f32 %v611, %v2570
          %v2583 = vmul.f32 %v612, %v2570
          %v2584 = vmul.f32 %v613, %v2570
          %v2585 = vmul.f32 %v614, %v2570
          %v2586 = vmul.f32 %v615, %v2570
          %v2587 = vmul.f32 %v616, %v2570
          %v2588 = vmul.f32 %v617, %v2570
          %v2589 = vmul.f32 %v618, %v2570
          %v2590 = vmul.f32 %v619, %v2570
          %v2591 = vmul.f32 %v620, %v2570
          %v2592 = vmul.f32 %v621, %v2570
          %v2593 = vmul.f32 %v622, %v2570
          %v2594 = vmul.f32 %v623, %v2570
          %v2595 = vadd.f32 %v2542, %v2571
          %v2596 = vadd.f32 %v2543, %v2572
          %v2597 = vadd.f32 %v2544, %v2573
          %v2598 = vadd.f32 %v2545, %v2574
          %v2599 = vadd.f32 %v2546, %v2575
          %v2600 = vadd.f32 %v2547, %v2576
          %v2601 = vadd.f32 %v2548, %v2577
          %v2602 = vadd.f32 %v2549, %v2578
          %v2603 = vadd.f32 %v2550, %v2579
          %v2604 = vadd.f32 %v2551, %v2580
          %v2605 = vadd.f32 %v2552, %v2581
          %v2606 = vadd.f32 %v2553, %v2582
          %v2607 = vadd.f32 %v2554, %v2583
          %v2608 = vadd.f32 %v2555, %v2584
          %v2609 = vadd.f32 %v2556, %v2585
          %v2610 = vadd.f32 %v2557, %v2586
          %v2611 = vadd.f32 %v2558, %v2587
          %v2612 = vadd.f32 %v2559, %v2588
          %v2613 = vadd.f32 %v2560, %v2589
          %v2614 = vadd.f32 %v2561, %v2590
          %v2615 = vadd.f32 %v2562, %v2591
          %v2616 = vadd.f32 %v2563, %v2592
          %v2617 = vadd.f32 %v2564, %v2593
          %v2618 = vadd.f32 %v2565, %v2594
          %v2619 = vld [vmem:[#allocation6 + $0x21] sm:$0x1]
          %v2620 = vlaneseq
          %v2621 = vshrl.u32 %v2620, 7
          %v2622 = vsub.s32 0, %v2621
          %v2623 = vrot.slane %v2619, %v2622
          %v2624 = vmul.f32 %v680, %v2623
          %v2625 = vmul.f32 %v681, %v2623
          %v2626 = vmul.f32 %v682, %v2623
          %v2627 = vmul.f32 %v683, %v2623
          %v2628 = vmul.f32 %v684, %v2623
          %v2629 = vmul.f32 %v685, %v2623
          %v2630 = vmul.f32 %v686, %v2623
          %v2631 = vmul.f32 %v687, %v2623
          %v2632 = vmul.f32 %v688, %v2623
          %v2633 = vmul.f32 %v689, %v2623
          %v2634 = vmul.f32 %v690, %v2623
          %v2635 = vmul.f32 %v691, %v2623
          %v2636 = vmul.f32 %v692, %v2623
          %v2637 = vmul.f32 %v693, %v2623
          %v2638 = vmul.f32 %v694, %v2623
          %v2639 = vmul.f32 %v695, %v2623
          %v2640 = vmul.f32 %v696, %v2623
          %v2641 = vmul.f32 %v697, %v2623
          %v2642 = vmul.f32 %v698, %v2623
          %v2643 = vmul.f32 %v699, %v2623
          %v2644 = vmul.f32 %v700, %v2623
          %v2645 = vmul.f32 %v701, %v2623
          %v2646 = vmul.f32 %v702, %v2623
          %v2647 = vmul.f32 %v703, %v2623
          %v2648 = vadd.f32 %v2595, %v2624
          %v2649 = vadd.f32 %v2596, %v2625
          %v2650 = vadd.f32 %v2597, %v2626
          %v2651 = vadd.f32 %v2598, %v2627
          %v2652 = vadd.f32 %v2599, %v2628
          %v2653 = vadd.f32 %v2600, %v2629
          %v2654 = vadd.f32 %v2601, %v2630
          %v2655 = vadd.f32 %v2602, %v2631
          %v2656 = vadd.f32 %v2603, %v2632
          %v2657 = vadd.f32 %v2604, %v2633
          %v2658 = vadd.f32 %v2605, %v2634
          %v2659 = vadd.f32 %v2606, %v2635
          %v2660 = vadd.f32 %v2607, %v2636
          %v2661 = vadd.f32 %v2608, %v2637
          %v2662 = vadd.f32 %v2609, %v2638
          %v2663 = vadd.f32 %v2610, %v2639
          %v2664 = vadd.f32 %v2611, %v2640
          %v2665 = vadd.f32 %v2612, %v2641
          %v2666 = vadd.f32 %v2613, %v2642
          %v2667 = vadd.f32 %v2614, %v2643
          %v2668 = vadd.f32 %v2615, %v2644
          %v2669 = vadd.f32 %v2616, %v2645
          %v2670 = vadd.f32 %v2617, %v2646
          %v2671 = vadd.f32 %v2618, %v2647
          %v2672 = vld [vmem:[#allocation6 + $0x28] sm:$0x1]
          %v2673 = vlaneseq
          %v2674 = vshrl.u32 %v2673, 7
          %v2675 = vsub.s32 0, %v2674
          %v2676 = vrot.slane %v2672, %v2675
          %v2677 = vmul.f32 %v760, %v2676
          %v2678 = vmul.f32 %v761, %v2676
          %v2679 = vmul.f32 %v762, %v2676
          %v2680 = vmul.f32 %v763, %v2676
          %v2681 = vmul.f32 %v764, %v2676
          %v2682 = vmul.f32 %v765, %v2676
          %v2683 = vmul.f32 %v766, %v2676
          %v2684 = vmul.f32 %v767, %v2676
          %v2685 = vmul.f32 %v768, %v2676
          %v2686 = vmul.f32 %v769, %v2676
          %v2687 = vmul.f32 %v770, %v2676
          %v2688 = vmul.f32 %v771, %v2676
          %v2689 = vmul.f32 %v772, %v2676
          %v2690 = vmul.f32 %v773, %v2676
          %v2691 = vmul.f32 %v774, %v2676
          %v2692 = vmul.f32 %v775, %v2676
          %v2693 = vmul.f32 %v776, %v2676
          %v2694 = vmul.f32 %v777, %v2676
          %v2695 = vmul.f32 %v778, %v2676
          %v2696 = vmul.f32 %v779, %v2676
          %v2697 = vmul.f32 %v780, %v2676
          %v2698 = vmul.f32 %v781, %v2676
          %v2699 = vmul.f32 %v782, %v2676
          %v2700 = vmul.f32 %v783, %v2676
          %v2701 = vadd.f32 %v2648, %v2677
          %v2702 = vadd.f32 %v2649, %v2678
          %v2703 = vadd.f32 %v2650, %v2679
          %v2704 = vadd.f32 %v2651, %v2680
          %v2705 = vadd.f32 %v2652, %v2681
          %v2706 = vadd.f32 %v2653, %v2682
          %v2707 = vadd.f32 %v2654, %v2683
          %v2708 = vadd.f32 %v2655, %v2684
          %v2709 = vadd.f32 %v2656, %v2685
          %v2710 = vadd.f32 %v2657, %v2686
          %v2711 = vadd.f32 %v2658, %v2687
          %v2712 = vadd.f32 %v2659, %v2688
          %v2713 = vadd.f32 %v2660, %v2689
          %v2714 = vadd.f32 %v2661, %v2690
          %v2715 = vadd.f32 %v2662, %v2691
          %v2716 = vadd.f32 %v2663, %v2692
          %v2717 = vadd.f32 %v2664, %v2693
          %v2718 = vadd.f32 %v2665, %v2694
          %v2719 = vadd.f32 %v2666, %v2695
          %v2720 = vadd.f32 %v2667, %v2696
          %v2721 = vadd.f32 %v2668, %v2697
          %v2722 = vadd.f32 %v2669, %v2698
          %v2723 = vadd.f32 %v2670, %v2699
          %v2724 = vadd.f32 %v2671, %v2700
          %v2725 = vld [vmem:[#allocation6 + $0x2f] sm:$0x1]
          %v2726 = vlaneseq
          %v2727 = vshrl.u32 %v2726, 7
          %v2728 = vsub.s32 0, %v2727
          %v2729 = vrot.slane %v2725, %v2728
          %v2730 = vmul.f32 %v840, %v2729
          %v2731 = vmul.f32 %v841, %v2729
          %v2732 = vmul.f32 %v842, %v2729
          %v2733 = vmul.f32 %v843, %v2729
          %v2734 = vmul.f32 %v844, %v2729
          %v2735 = vmul.f32 %v845, %v2729
          %v2736 = vmul.f32 %v846, %v2729
          %v2737 = vmul.f32 %v847, %v2729
          %v2738 = vmul.f32 %v848, %v2729
          %v2739 = vmul.f32 %v849, %v2729
          %v2740 = vmul.f32 %v850, %v2729
          %v2741 = vmul.f32 %v851, %v2729
          %v2742 = vmul.f32 %v852, %v2729
          %v2743 = vmul.f32 %v853, %v2729
          %v2744 = vmul.f32 %v854, %v2729
          %v2745 = vmul.f32 %v855, %v2729
          %v2746 = vmul.f32 %v856, %v2729
          %v2747 = vmul.f32 %v857, %v2729
          %v2748 = vmul.f32 %v858, %v2729
          %v2749 = vmul.f32 %v859, %v2729
          %v2750 = vmul.f32 %v860, %v2729
          %v2751 = vmul.f32 %v861, %v2729
          %v2752 = vmul.f32 %v862, %v2729
          %v2753 = vmul.f32 %v863, %v2729
          %v2754 = vadd.f32 %v2701, %v2730
          %v2755 = vadd.f32 %v2702, %v2731
          %v2756 = vadd.f32 %v2703, %v2732
          %v2757 = vadd.f32 %v2704, %v2733
          %v2758 = vadd.f32 %v2705, %v2734
          %v2759 = vadd.f32 %v2706, %v2735
          %v2760 = vadd.f32 %v2707, %v2736
          %v2761 = vadd.f32 %v2708, %v2737
          %v2762 = vadd.f32 %v2709, %v2738
          %v2763 = vadd.f32 %v2710, %v2739
          %v2764 = vadd.f32 %v2711, %v2740
          %v2765 = vadd.f32 %v2712, %v2741
          %v2766 = vadd.f32 %v2713, %v2742
          %v2767 = vadd.f32 %v2714, %v2743
          %v2768 = vadd.f32 %v2715, %v2744
          %v2769 = vadd.f32 %v2716, %v2745
          %v2770 = vadd.f32 %v2717, %v2746
          %v2771 = vadd.f32 %v2718, %v2747
          %v2772 = vadd.f32 %v2719, %v2748
          %v2773 = vadd.f32 %v2720, %v2749
          %v2774 = vadd.f32 %v2721, %v2750
          %v2775 = vadd.f32 %v2722, %v2751
          %v2776 = vadd.f32 %v2723, %v2752
          %v2777 = vadd.f32 %v2724, %v2753
          %v2778 = vrot.slane %v2754, 2
          %v2779 = vrot.slane %v2757, 2
          %v2780 = vrot.slane %v2760, 2
          %v2781 = vrot.slane %v2763, 2
          %v2782 = vrot.slane %v2766, 2
          %v2783 = vrot.slane %v2769, 2
          %v2784 = vrot.slane %v2772, 2
          %v2785 = vrot.slane %v2775, 2
          %v2786 = vrot.slane %v2755, 2
          %v2787 = vrot.slane %v2758, 2
          %v2788 = vrot.slane %v2761, 2
          %v2789 = vrot.slane %v2764, 2
          %v2790 = vrot.slane %v2767, 2
          %v2791 = vrot.slane %v2770, 2
          %v2792 = vrot.slane %v2773, 2
          %v2793 = vrot.slane %v2776, 2
          %v2794 = vrot.slane %v2756, 2
          %v2795 = vrot.slane %v2759, 2
          %v2796 = vrot.slane %v2762, 2
          %v2797 = vrot.slane %v2765, 2
          %v2798 = vrot.slane %v2768, 2
          %v2799 = vrot.slane %v2771, 2
          %v2800 = vrot.slane %v2774, 2
          %v2801 = vrot.slane %v2777, 2
          %vm2802 = vcmp.lt.s32.totalorder %v942, 6
          %v2803 = vsel %vm2802, %v2786, %v2794
          %v2804 = vsel %vm2802, %v2787, %v2795
          %v2805 = vsel %vm2802, %v2788, %v2796
          %v2806 = vsel %vm2802, %v2789, %v2797
          %v2807 = vsel %vm2802, %v2790, %v2798
          %v2808 = vsel %vm2802, %v2791, %v2799
          %v2809 = vsel %vm2802, %v2792, %v2800
          %v2810 = vsel %vm2802, %v2793, %v2801
          %v2811 = vsel %vm2802, %v2778, %v2786
          %v2812 = vsel %vm2802, %v2779, %v2787
          %v2813 = vsel %vm2802, %v2780, %v2788
          %v2814 = vsel %vm2802, %v2781, %v2789
          %v2815 = vsel %vm2802, %v2782, %v2790
          %v2816 = vsel %vm2802, %v2783, %v2791
          %v2817 = vsel %vm2802, %v2784, %v2792
          %v2818 = vsel %vm2802, %v2785, %v2793
          %v2819 = vadd.f32 %v2415, %v2811
          %v2820 = vadd.f32 %v2416, %v2803
          %v2821 = vadd.f32 %v2417, %v2812
          %v2822 = vadd.f32 %v2418, %v2804
          %v2823 = vadd.f32 %v2419, %v2813
          %v2824 = vadd.f32 %v2420, %v2805
          %v2825 = vadd.f32 %v2421, %v2814
          %v2826 = vadd.f32 %v2422, %v2806
          %v2827 = vadd.f32 %v2423, %v2815
          %v2828 = vadd.f32 %v2424, %v2807
          %v2829 = vadd.f32 %v2425, %v2816
          %v2830 = vadd.f32 %v2426, %v2808
          %v2831 = vadd.f32 %v2427, %v2817
          %v2832 = vadd.f32 %v2428, %v2809
          %v2833 = vadd.f32 %v2429, %v2818
          %v2834 = vadd.f32 %v2430, %v2810
          %v2835 = vld [vmem:[#allocation6 + $0x6] sm:$0x1]
          %v2836 = vlaneseq
          %v2837 = vshrl.u32 %v2836, 7
          %v2838 = vsub.s32 0, %v2837
          %v2839 = vrot.slane %v2835, %v2838
          %v2840 = vmul.f32 %v384, %v2839
          %v2841 = vmul.f32 %v385, %v2839
          %v2842 = vmul.f32 %v386, %v2839
          %v2843 = vmul.f32 %v387, %v2839
          %v2844 = vmul.f32 %v388, %v2839
          %v2845 = vmul.f32 %v389, %v2839
          %v2846 = vmul.f32 %v390, %v2839
          %v2847 = vmul.f32 %v391, %v2839
          %v2848 = vmul.f32 %v392, %v2839
          %v2849 = vmul.f32 %v393, %v2839
          %v2850 = vmul.f32 %v394, %v2839
          %v2851 = vmul.f32 %v395, %v2839
          %v2852 = vmul.f32 %v396, %v2839
          %v2853 = vmul.f32 %v397, %v2839
          %v2854 = vmul.f32 %v398, %v2839
          %v2855 = vmul.f32 %v399, %v2839
          %v2856 = vmul.f32 %v400, %v2839
          %v2857 = vmul.f32 %v401, %v2839
          %v2858 = vmul.f32 %v402, %v2839
          %v2859 = vmul.f32 %v403, %v2839
          %v2860 = vmul.f32 %v404, %v2839
          %v2861 = vmul.f32 %v405, %v2839
          %v2862 = vmul.f32 %v406, %v2839
          %v2863 = vmul.f32 %v407, %v2839
          %v2864 = vld [vmem:[#allocation6 + $0xd] sm:$0x1]
          %v2865 = vlaneseq
          %v2866 = vshrl.u32 %v2865, 7
          %v2867 = vsub.s32 0, %v2866
          %v2868 = vrot.slane %v2864, %v2867
          %v2869 = vmul.f32 %v440, %v2868
          %v2870 = vmul.f32 %v441, %v2868
          %v2871 = vmul.f32 %v442, %v2868
          %v2872 = vmul.f32 %v443, %v2868
          %v2873 = vmul.f32 %v444, %v2868
          %v2874 = vmul.f32 %v445, %v2868
          %v2875 = vmul.f32 %v446, %v2868
          %v2876 = vmul.f32 %v447, %v2868
          %v2877 = vmul.f32 %v448, %v2868
          %v2878 = vmul.f32 %v449, %v2868
          %v2879 = vmul.f32 %v450, %v2868
          %v2880 = vmul.f32 %v451, %v2868
          %v2881 = vmul.f32 %v452, %v2868
          %v2882 = vmul.f32 %v453, %v2868
          %v2883 = vmul.f32 %v454, %v2868
          %v2884 = vmul.f32 %v455, %v2868
          %v2885 = vmul.f32 %v456, %v2868
          %v2886 = vmul.f32 %v457, %v2868
          %v2887 = vmul.f32 %v458, %v2868
          %v2888 = vmul.f32 %v459, %v2868
          %v2889 = vmul.f32 %v460, %v2868
          %v2890 = vmul.f32 %v461, %v2868
          %v2891 = vmul.f32 %v462, %v2868
          %v2892 = vmul.f32 %v463, %v2868
          %v2893 = vadd.f32 %v2840, %v2869
          %v2894 = vadd.f32 %v2841, %v2870
          %v2895 = vadd.f32 %v2842, %v2871
          %v2896 = vadd.f32 %v2843, %v2872
          %v2897 = vadd.f32 %v2844, %v2873
          %v2898 = vadd.f32 %v2845, %v2874
          %v2899 = vadd.f32 %v2846, %v2875
          %v2900 = vadd.f32 %v2847, %v2876
          %v2901 = vadd.f32 %v2848, %v2877
          %v2902 = vadd.f32 %v2849, %v2878
          %v2903 = vadd.f32 %v2850, %v2879
          %v2904 = vadd.f32 %v2851, %v2880
          %v2905 = vadd.f32 %v2852, %v2881
          %v2906 = vadd.f32 %v2853, %v2882
          %v2907 = vadd.f32 %v2854, %v2883
          %v2908 = vadd.f32 %v2855, %v2884
          %v2909 = vadd.f32 %v2856, %v2885
          %v2910 = vadd.f32 %v2857, %v2886
          %v2911 = vadd.f32 %v2858, %v2887
          %v2912 = vadd.f32 %v2859, %v2888
          %v2913 = vadd.f32 %v2860, %v2889
          %v2914 = vadd.f32 %v2861, %v2890
          %v2915 = vadd.f32 %v2862, %v2891
          %v2916 = vadd.f32 %v2863, %v2892
          %v2917 = vld [vmem:[#allocation6 + $0x14] sm:$0x1]
          %v2918 = vlaneseq
          %v2919 = vshrl.u32 %v2918, 7
          %v2920 = vsub.s32 0, %v2919
          %v2921 = vrot.slane %v2917, %v2920
          %v2922 = vmul.f32 %v520, %v2921
          %v2923 = vmul.f32 %v521, %v2921
          %v2924 = vmul.f32 %v522, %v2921
          %v2925 = vmul.f32 %v523, %v2921
          %v2926 = vmul.f32 %v524, %v2921
          %v2927 = vmul.f32 %v525, %v2921
          %v2928 = vmul.f32 %v526, %v2921
          %v2929 = vmul.f32 %v527, %v2921
          %v2930 = vmul.f32 %v528, %v2921
          %v2931 = vmul.f32 %v529, %v2921
          %v2932 = vmul.f32 %v530, %v2921
          %v2933 = vmul.f32 %v531, %v2921
          %v2934 = vmul.f32 %v532, %v2921
          %v2935 = vmul.f32 %v533, %v2921
          %v2936 = vmul.f32 %v534, %v2921
          %v2937 = vmul.f32 %v535, %v2921
          %v2938 = vmul.f32 %v536, %v2921
          %v2939 = vmul.f32 %v537, %v2921
          %v2940 = vmul.f32 %v538, %v2921
          %v2941 = vmul.f32 %v539, %v2921
          %v2942 = vmul.f32 %v540, %v2921
          %v2943 = vmul.f32 %v541, %v2921
          %v2944 = vmul.f32 %v542, %v2921
          %v2945 = vmul.f32 %v543, %v2921
          %v2946 = vadd.f32 %v2893, %v2922
          %v2947 = vadd.f32 %v2894, %v2923
          %v2948 = vadd.f32 %v2895, %v2924
          %v2949 = vadd.f32 %v2896, %v2925
          %v2950 = vadd.f32 %v2897, %v2926
          %v2951 = vadd.f32 %v2898, %v2927
          %v2952 = vadd.f32 %v2899, %v2928
          %v2953 = vadd.f32 %v2900, %v2929
          %v2954 = vadd.f32 %v2901, %v2930
          %v2955 = vadd.f32 %v2902, %v2931
          %v2956 = vadd.f32 %v2903, %v2932
          %v2957 = vadd.f32 %v2904, %v2933
          %v2958 = vadd.f32 %v2905, %v2934
          %v2959 = vadd.f32 %v2906, %v2935
          %v2960 = vadd.f32 %v2907, %v2936
          %v2961 = vadd.f32 %v2908, %v2937
          %v2962 = vadd.f32 %v2909, %v2938
          %v2963 = vadd.f32 %v2910, %v2939
          %v2964 = vadd.f32 %v2911, %v2940
          %v2965 = vadd.f32 %v2912, %v2941
          %v2966 = vadd.f32 %v2913, %v2942
          %v2967 = vadd.f32 %v2914, %v2943
          %v2968 = vadd.f32 %v2915, %v2944
          %v2969 = vadd.f32 %v2916, %v2945
          %v2970 = vld [vmem:[#allocation6 + $0x1b] sm:$0x1]
          %v2971 = vlaneseq
          %v2972 = vshrl.u32 %v2971, 7
          %v2973 = vsub.s32 0, %v2972
          %v2974 = vrot.slane %v2970, %v2973
          %v2975 = vmul.f32 %v600, %v2974
          %v2976 = vmul.f32 %v601, %v2974
          %v2977 = vmul.f32 %v602, %v2974
          %v2978 = vmul.f32 %v603, %v2974
          %v2979 = vmul.f32 %v604, %v2974
          %v2980 = vmul.f32 %v605, %v2974
          %v2981 = vmul.f32 %v606, %v2974
          %v2982 = vmul.f32 %v607, %v2974
          %v2983 = vmul.f32 %v608, %v2974
          %v2984 = vmul.f32 %v609, %v2974
          %v2985 = vmul.f32 %v610, %v2974
          %v2986 = vmul.f32 %v611, %v2974
          %v2987 = vmul.f32 %v612, %v2974
          %v2988 = vmul.f32 %v613, %v2974
          %v2989 = vmul.f32 %v614, %v2974
          %v2990 = vmul.f32 %v615, %v2974
          %v2991 = vmul.f32 %v616, %v2974
          %v2992 = vmul.f32 %v617, %v2974
          %v2993 = vmul.f32 %v618, %v2974
          %v2994 = vmul.f32 %v619, %v2974
          %v2995 = vmul.f32 %v620, %v2974
          %v2996 = vmul.f32 %v621, %v2974
          %v2997 = vmul.f32 %v622, %v2974
          %v2998 = vmul.f32 %v623, %v2974
          %v2999 = vadd.f32 %v2946, %v2975
          %v3000 = vadd.f32 %v2947, %v2976
          %v3001 = vadd.f32 %v2948, %v2977
          %v3002 = vadd.f32 %v2949, %v2978
          %v3003 = vadd.f32 %v2950, %v2979
          %v3004 = vadd.f32 %v2951, %v2980
          %v3005 = vadd.f32 %v2952, %v2981
          %v3006 = vadd.f32 %v2953, %v2982
          %v3007 = vadd.f32 %v2954, %v2983
          %v3008 = vadd.f32 %v2955, %v2984
          %v3009 = vadd.f32 %v2956, %v2985
          %v3010 = vadd.f32 %v2957, %v2986
          %v3011 = vadd.f32 %v2958, %v2987
          %v3012 = vadd.f32 %v2959, %v2988
          %v3013 = vadd.f32 %v2960, %v2989
          %v3014 = vadd.f32 %v2961, %v2990
          %v3015 = vadd.f32 %v2962, %v2991
          %v3016 = vadd.f32 %v2963, %v2992
          %v3017 = vadd.f32 %v2964, %v2993
          %v3018 = vadd.f32 %v2965, %v2994
          %v3019 = vadd.f32 %v2966, %v2995
          %v3020 = vadd.f32 %v2967, %v2996
          %v3021 = vadd.f32 %v2968, %v2997
          %v3022 = vadd.f32 %v2969, %v2998
          %v3023 = vld [vmem:[#allocation6 + $0x22] sm:$0x1]
          %v3024 = vlaneseq
          %v3025 = vshrl.u32 %v3024, 7
          %v3026 = vsub.s32 0, %v3025
          %v3027 = vrot.slane %v3023, %v3026
          %v3028 = vmul.f32 %v680, %v3027
          %v3029 = vmul.f32 %v681, %v3027
          %v3030 = vmul.f32 %v682, %v3027
          %v3031 = vmul.f32 %v683, %v3027
          %v3032 = vmul.f32 %v684, %v3027
          %v3033 = vmul.f32 %v685, %v3027
          %v3034 = vmul.f32 %v686, %v3027
          %v3035 = vmul.f32 %v687, %v3027
          %v3036 = vmul.f32 %v688, %v3027
          %v3037 = vmul.f32 %v689, %v3027
          %v3038 = vmul.f32 %v690, %v3027
          %v3039 = vmul.f32 %v691, %v3027
          %v3040 = vmul.f32 %v692, %v3027
          %v3041 = vmul.f32 %v693, %v3027
          %v3042 = vmul.f32 %v694, %v3027
          %v3043 = vmul.f32 %v695, %v3027
          %v3044 = vmul.f32 %v696, %v3027
          %v3045 = vmul.f32 %v697, %v3027
          %v3046 = vmul.f32 %v698, %v3027
          %v3047 = vmul.f32 %v699, %v3027
          %v3048 = vmul.f32 %v700, %v3027
          %v3049 = vmul.f32 %v701, %v3027
          %v3050 = vmul.f32 %v702, %v3027
          %v3051 = vmul.f32 %v703, %v3027
          %v3052 = vadd.f32 %v2999, %v3028
          %v3053 = vadd.f32 %v3000, %v3029
          %v3054 = vadd.f32 %v3001, %v3030
          %v3055 = vadd.f32 %v3002, %v3031
          %v3056 = vadd.f32 %v3003, %v3032
          %v3057 = vadd.f32 %v3004, %v3033
          %v3058 = vadd.f32 %v3005, %v3034
          %v3059 = vadd.f32 %v3006, %v3035
          %v3060 = vadd.f32 %v3007, %v3036
          %v3061 = vadd.f32 %v3008, %v3037
          %v3062 = vadd.f32 %v3009, %v3038
          %v3063 = vadd.f32 %v3010, %v3039
          %v3064 = vadd.f32 %v3011, %v3040
          %v3065 = vadd.f32 %v3012, %v3041
          %v3066 = vadd.f32 %v3013, %v3042
          %v3067 = vadd.f32 %v3014, %v3043
          %v3068 = vadd.f32 %v3015, %v3044
          %v3069 = vadd.f32 %v3016, %v3045
          %v3070 = vadd.f32 %v3017, %v3046
          %v3071 = vadd.f32 %v3018, %v3047
          %v3072 = vadd.f32 %v3019, %v3048
          %v3073 = vadd.f32 %v3020, %v3049
          %v3074 = vadd.f32 %v3021, %v3050
          %v3075 = vadd.f32 %v3022, %v3051
          %v3076 = vld [vmem:[#allocation6 + $0x29] sm:$0x1]
          %v3077 = vlaneseq
          %v3078 = vshrl.u32 %v3077, 7
          %v3079 = vsub.s32 0, %v3078
          %v3080 = vrot.slane %v3076, %v3079
          %v3081 = vmul.f32 %v760, %v3080
          %v3082 = vmul.f32 %v761, %v3080
          %v3083 = vmul.f32 %v762, %v3080
          %v3084 = vmul.f32 %v763, %v3080
          %v3085 = vmul.f32 %v764, %v3080
          %v3086 = vmul.f32 %v765, %v3080
          %v3087 = vmul.f32 %v766, %v3080
          %v3088 = vmul.f32 %v767, %v3080
          %v3089 = vmul.f32 %v768, %v3080
          %v3090 = vmul.f32 %v769, %v3080
          %v3091 = vmul.f32 %v770, %v3080
          %v3092 = vmul.f32 %v771, %v3080
          %v3093 = vmul.f32 %v772, %v3080
          %v3094 = vmul.f32 %v773, %v3080
          %v3095 = vmul.f32 %v774, %v3080
          %v3096 = vmul.f32 %v775, %v3080
          %v3097 = vmul.f32 %v776, %v3080
          %v3098 = vmul.f32 %v777, %v3080
          %v3099 = vmul.f32 %v778, %v3080
          %v3100 = vmul.f32 %v779, %v3080
          %v3101 = vmul.f32 %v780, %v3080
          %v3102 = vmul.f32 %v781, %v3080
          %v3103 = vmul.f32 %v782, %v3080
          %v3104 = vmul.f32 %v783, %v3080
          %v3105 = vadd.f32 %v3052, %v3081
          %v3106 = vadd.f32 %v3053, %v3082
          %v3107 = vadd.f32 %v3054, %v3083
          %v3108 = vadd.f32 %v3055, %v3084
          %v3109 = vadd.f32 %v3056, %v3085
          %v3110 = vadd.f32 %v3057, %v3086
          %v3111 = vadd.f32 %v3058, %v3087
          %v3112 = vadd.f32 %v3059, %v3088
          %v3113 = vadd.f32 %v3060, %v3089
          %v3114 = vadd.f32 %v3061, %v3090
          %v3115 = vadd.f32 %v3062, %v3091
          %v3116 = vadd.f32 %v3063, %v3092
          %v3117 = vadd.f32 %v3064, %v3093
          %v3118 = vadd.f32 %v3065, %v3094
          %v3119 = vadd.f32 %v3066, %v3095
          %v3120 = vadd.f32 %v3067, %v3096
          %v3121 = vadd.f32 %v3068, %v3097
          %v3122 = vadd.f32 %v3069, %v3098
          %v3123 = vadd.f32 %v3070, %v3099
          %v3124 = vadd.f32 %v3071, %v3100
          %v3125 = vadd.f32 %v3072, %v3101
          %v3126 = vadd.f32 %v3073, %v3102
          %v3127 = vadd.f32 %v3074, %v3103
          %v3128 = vadd.f32 %v3075, %v3104
          %v3129 = vld [vmem:[#allocation6 + $0x30] sm:$0x1]
          %v3130 = vlaneseq
          %v3131 = vshrl.u32 %v3130, 7
          %v3132 = vsub.s32 0, %v3131
          %v3133 = vrot.slane %v3129, %v3132
          %v3134 = vmul.f32 %v840, %v3133
          %v3135 = vmul.f32 %v841, %v3133
          %v3136 = vmul.f32 %v842, %v3133
          %v3137 = vmul.f32 %v843, %v3133
          %v3138 = vmul.f32 %v844, %v3133
          %v3139 = vmul.f32 %v845, %v3133
          %v3140 = vmul.f32 %v846, %v3133
          %v3141 = vmul.f32 %v847, %v3133
          %v3142 = vmul.f32 %v848, %v3133
          %v3143 = vmul.f32 %v849, %v3133
          %v3144 = vmul.f32 %v850, %v3133
          %v3145 = vmul.f32 %v851, %v3133
          %v3146 = vmul.f32 %v852, %v3133
          %v3147 = vmul.f32 %v853, %v3133
          %v3148 = vmul.f32 %v854, %v3133
          %v3149 = vmul.f32 %v855, %v3133
          %v3150 = vmul.f32 %v856, %v3133
          %v3151 = vmul.f32 %v857, %v3133
          %v3152 = vmul.f32 %v858, %v3133
          %v3153 = vmul.f32 %v859, %v3133
          %v3154 = vmul.f32 %v860, %v3133
          %v3155 = vmul.f32 %v861, %v3133
          %v3156 = vmul.f32 %v862, %v3133
          %v3157 = vmul.f32 %v863, %v3133
          %v3158 = vadd.f32 %v3105, %v3134
          %v3159 = vadd.f32 %v3106, %v3135
          %v3160 = vadd.f32 %v3107, %v3136
          %v3161 = vadd.f32 %v3108, %v3137
          %v3162 = vadd.f32 %v3109, %v3138
          %v3163 = vadd.f32 %v3110, %v3139
          %v3164 = vadd.f32 %v3111, %v3140
          %v3165 = vadd.f32 %v3112, %v3141
          %v3166 = vadd.f32 %v3113, %v3142
          %v3167 = vadd.f32 %v3114, %v3143
          %v3168 = vadd.f32 %v3115, %v3144
          %v3169 = vadd.f32 %v3116, %v3145
          %v3170 = vadd.f32 %v3117, %v3146
          %v3171 = vadd.f32 %v3118, %v3147
          %v3172 = vadd.f32 %v3119, %v3148
          %v3173 = vadd.f32 %v3120, %v3149
          %v3174 = vadd.f32 %v3121, %v3150
          %v3175 = vadd.f32 %v3122, %v3151
          %v3176 = vadd.f32 %v3123, %v3152
          %v3177 = vadd.f32 %v3124, %v3153
          %v3178 = vadd.f32 %v3125, %v3154
          %v3179 = vadd.f32 %v3126, %v3155
          %v3180 = vadd.f32 %v3127, %v3156
          %v3181 = vadd.f32 %v3128, %v3157
          %v3182 = vrot.slane %v3158, 3
          %v3183 = vrot.slane %v3161, 3
          %v3184 = vrot.slane %v3164, 3
          %v3185 = vrot.slane %v3167, 3
          %v3186 = vrot.slane %v3170, 3
          %v3187 = vrot.slane %v3173, 3
          %v3188 = vrot.slane %v3176, 3
          %v3189 = vrot.slane %v3179, 3
          %v3190 = vrot.slane %v3159, 3
          %v3191 = vrot.slane %v3162, 3
          %v3192 = vrot.slane %v3165, 3
          %v3193 = vrot.slane %v3168, 3
          %v3194 = vrot.slane %v3171, 3
          %v3195 = vrot.slane %v3174, 3
          %v3196 = vrot.slane %v3177, 3
          %v3197 = vrot.slane %v3180, 3
          %v3198 = vrot.slane %v3160, 3
          %v3199 = vrot.slane %v3163, 3
          %v3200 = vrot.slane %v3166, 3
          %v3201 = vrot.slane %v3169, 3
          %v3202 = vrot.slane %v3172, 3
          %v3203 = vrot.slane %v3175, 3
          %v3204 = vrot.slane %v3178, 3
          %v3205 = vrot.slane %v3181, 3
          %vm3206 = vcmp.lt.s32.totalorder %v942, 5
          %v3207 = vsel %vm3206, %v3190, %v3198
          %v3208 = vsel %vm3206, %v3191, %v3199
          %v3209 = vsel %vm3206, %v3192, %v3200
          %v3210 = vsel %vm3206, %v3193, %v3201
          %v3211 = vsel %vm3206, %v3194, %v3202
          %v3212 = vsel %vm3206, %v3195, %v3203
          %v3213 = vsel %vm3206, %v3196, %v3204
          %v3214 = vsel %vm3206, %v3197, %v3205
          %v3215 = vsel %vm3206, %v3182, %v3190
          %v3216 = vsel %vm3206, %v3183, %v3191
          %v3217 = vsel %vm3206, %v3184, %v3192
          %v3218 = vsel %vm3206, %v3185, %v3193
          %v3219 = vsel %vm3206, %v3186, %v3194
          %v3220 = vsel %vm3206, %v3187, %v3195
          %v3221 = vsel %vm3206, %v3188, %v3196
          %v3222 = vsel %vm3206, %v3189, %v3197
          %v3223 = vadd.f32 %v2819, %v3215
          %v3224 = vadd.f32 %v2820, %v3207
          %v3225 = vadd.f32 %v2821, %v3216
          %v3226 = vadd.f32 %v2822, %v3208
          %v3227 = vadd.f32 %v2823, %v3217
          %v3228 = vadd.f32 %v2824, %v3209
          %v3229 = vadd.f32 %v2825, %v3218
          %v3230 = vadd.f32 %v2826, %v3210
          %v3231 = vadd.f32 %v2827, %v3219
          %v3232 = vadd.f32 %v2828, %v3211
          %v3233 = vadd.f32 %v2829, %v3220
          %v3234 = vadd.f32 %v2830, %v3212
          %v3235 = vadd.f32 %v2831, %v3221
          %v3236 = vadd.f32 %v2832, %v3213
          %v3237 = vadd.f32 %v2833, %v3222
          %v3238 = vadd.f32 %v2834, %v3214
          %v3240 = vlaneseq
          %v3241 = vshrl.u32 %v3240, 7
          %v3242 = vsub.s32 0, %v3241
          %v3243 = vrot.slane %v374, %v3242
          %v3245 = vadd.f32 %v3223, %v3243
          %v3246 = vadd.f32 %v3224, %v3243
          %v3247 = vadd.f32 %v3225, %v3243
          %v3248 = vadd.f32 %v3226, %v3243
          %v3249 = vadd.f32 %v3227, %v3243
          %v3250 = vadd.f32 %v3228, %v3243
          %v3251 = vadd.f32 %v3229, %v3243
          %v3252 = vadd.f32 %v3230, %v3243
          %v3253 = vadd.f32 %v3231, %v3243
          %v3254 = vadd.f32 %v3232, %v3243
          %v3255 = vadd.f32 %v3233, %v3243
          %v3256 = vadd.f32 %v3234, %v3243
          %v3257 = vadd.f32 %v3235, %v3243
          %v3258 = vadd.f32 %v3236, %v3243
          %v3259 = vadd.f32 %v3237, %v3243
          %v3260 = vadd.f32 %v3238, %v3243
          %s3261 = smul.u32 %s381, 16
          %s3262 = scalar_lea.vmem %s238, %s3261 [#allocation8]
          %3263 = vst [vmem:[%s3262] sm:$0xff] %v3245
          %3264 = vst [vmem:[%s3262 + $0x8] sm:$0xff] %v3246
          %3265 = vst [vmem:[%s3262 + $0x10] sm:$0xff] %v3247
          %3266 = vst [vmem:[%s3262 + $0x18] sm:$0xff] %v3248
          %3267 = vst [vmem:[%s3262 + $0x20] sm:$0xff] %v3249
          %3268 = vst [vmem:[%s3262 + $0x28] sm:$0xff] %v3250
          %3269 = vst [vmem:[%s3262 + $0x30] sm:$0xff] %v3251
          %3270 = vst [vmem:[%s3262 + $0x38] sm:$0xff] %v3252
          %3271 = vst [vmem:[%s3262 + $0x40] sm:$0xff] %v3253
          %3272 = vst [vmem:[%s3262 + $0x48] sm:$0xff] %v3254
          %3273 = vst [vmem:[%s3262 + $0x50] sm:$0xff] %v3255
          %3274 = vst [vmem:[%s3262 + $0x58] sm:$0xff] %v3256
          %3275 = vst [vmem:[%s3262 + $0x60] sm:$0xff] %v3257
          %3276 = vst [vmem:[%s3262 + $0x68] sm:$0xff] %v3258
          %3277 = vst [vmem:[%s3262 + $0x70] sm:$0xff] %v3259
          %3278 = vst [vmem:[%s3262 + $0x78] sm:$0xff] %v3260
        $region45: #{tpu_custom_call.1} parent=31 // loop_footer
          %s380 = sadd.s32 1, %s376
        $region46: #{tpu_custom_call.1} parent=31 // loop_footer_branch
          %375 = sbr.rel target = $region42
        $region47: #{tpu_custom_call.1} parent=31 // loop_exit
          _
        %s3279 = sand.u32 %s123, 1
        %s3280 = scalar_lea.sflag [#allocation5], %s3279
        %s3281 = sand.u32 %s123, 1
        %s3282 = smul.addr %s3281, 256
        %s3283 = scalar_lea.vmem [#allocation8], %s3282
        // Predicated region
        $region48: #{tpu_custom_call.1} parent=31 // pred_check
          %p3284 = pneg %p133
        $region49: #{tpu_custom_call.1} parent=31 // pred_check_branch
          %3286 = sbr.rel (%p3284) target = $region51
        $region50: #{tpu_custom_call.1} parent=31 // pred_region
          %s3288 = ssub.s32 4096, 4096
          %3289 = vsyncadd %s3280, %s3288
          %s3290 = smul.addr %s25, 32
          %s3291 = sadd.s32 %s26, %s3290
          %s3292 = smul.addr %s3291, 128
          %s3293 = scalar_lea.hbm %s3, %s3292
          %s3294 = sshll.u32 %s3283, 4
          %s3295 = int_to_ptr.vmem [resolvable:$true] %s3294
          %3300 = dma.vmem_to_hbm [thread:$0]  %s3295, 4096, %s3293, %s3280, 128, 128, 8
        $region51: #{tpu_custom_call.1} parent=31 // pred_fallthru
          _
      $region32: #{tpu_custom_call.1} parent=5 // pred_fallthru
        _
      %p3301 = scmp.le.s32.totalorder 2, %s16
      // Predicated region
      $region52: #{tpu_custom_call.1} parent=5 // pred_check
        %p3302 = pneg %p3301
      $region53: #{tpu_custom_call.1} parent=5 // pred_check_branch
        %3304 = sbr.rel (%p3302) target = $region55
      $region54: #{tpu_custom_call.1} parent=5 // pred_region
        %s3305 = ssub.s32 %s16, 2
        // Predicated region
        $region56: #{tpu_custom_call.1} parent=54 // pred_check
          %p3306 = pneg %p139
        $region57: #{tpu_custom_call.1} parent=54 // pred_check_branch
          %3308 = sbr.rel (%p3306) target = $region59
        $region58: #{tpu_custom_call.1} parent=54 // pred_region
          %s3309 = sand.u32 %s124, 1
          %s3310 = scalar_lea.sflag [#allocation5], %s3309
          %s3311 = sand.u32 %s124, 1
          %s3312 = smul.addr %s3311, 256
          %s3313 = scalar_lea.vmem [#allocation8], %s3312
          %3314 = dma.done %s3310, 4096
        $region59: #{tpu_custom_call.1} parent=54 // pred_fallthru
          _
      $region55: #{tpu_custom_call.1} parent=5 // pred_fallthru
        _
    $region6: #{tpu_custom_call.1} parent=1 // loop_footer
      %s20 = sadd.s32 1, %s16
    $region7: #{tpu_custom_call.1} parent=1 // loop_footer_branch
      %15 = sbr.rel target = $region3
    $region8: #{tpu_custom_call.1} parent=1 // loop_exit
      _
    %3315 = vsyncpa [#allocation4], 1
    %s3316 = scalar_lea.sflag [#allocation4], 1
    %3317 = vsyncpa %s3316, 1
    %3318 = vsyncpa [#allocation7], 1
    %3319 = vsyncpa [#allocation5], 1
    %s3320 = scalar_lea.sflag [#allocation5], 1
    %3321 = vsyncpa %s3320, 1

</llo_original>
